<compile_context>
chip_gen: v7x
topology: tpu7x:2x2x1
jax: 0.10.0
libtpu: 0.0.40
codegen_flags: <defaults>
</compile_context>

<pallas_src>
import functools
import math

import jax
import jax.numpy as jnp
from jax import lax
from jax.experimental import pallas as pl
from jax.experimental.pallas import tpu as pltpu


_VMEM_LIMIT = 48 * 1024 * 1024          # leave headroom on v7x (64 MiB physical/TC)
_SQRT_2_OVER_PI = 0.7978845608028654    # sqrt(2/pi) for tanh-GELU
_LN_EPS = 1e-5


def _pick_row_tile(m, target=256):
    """Largest power-of-two-ish divisor of m <= target; halved once more (when
    possible) so the 'parallel' grid axis has >= 2 blocks (v7x has 2 TCs)."""
    tm = min(target, m)
    while m % tm != 0:
        tm //= 2
    if m // tm < 2 and tm % 2 == 0 and tm >= 16:
        tm //= 2
    return tm


# ---------------------------------------------------------------------------
# Fused LayerNorm1 + QKV projection (no bias: qkv_bias=False)
#   x (tm,E) f32 -> LN -> bf16 @ W_qkv(bf16, resident) -> qkv (tm,3E) bf16
# ---------------------------------------------------------------------------
def _ln_qkv_kernel(x_ref, g_ref, b_ref, w_ref, o_ref):
    x = x_ref[...]                                            # (tm, E) f32
    mean = jnp.mean(x, axis=-1, keepdims=True)
    xc = x - mean
    var = jnp.mean(xc * xc, axis=-1, keepdims=True)           # unbiased=False
    h = xc * lax.rsqrt(var + _LN_EPS) * g_ref[...] + b_ref[...]
    o_ref[...] = jnp.dot(h.astype(jnp.bfloat16), w_ref[...],
                         preferred_element_type=jnp.float32).astype(o_ref.dtype)


def ln_qkv_proj(x2d, gamma, beta, w, *, tm=None):
    M, E = x2d.shape
    N = w.shape[1]
    tm = _pick_row_tile(M) if tm is None else tm
    assert M % tm == 0
    w_bf = w.astype(jnp.bfloat16)
    # TODO(synk): for large E (w_qkv >> VMEM) add N/K grid axes with weight
    # tiles + accumulator instead of the resident-weight BlockSpec below.
    cost = pl.CostEstimate(flops=2 * M * E * N, transcendentals=0,
                           bytes_accessed=M * E * 4 + E * N * 2 + M * N * 2)
    return pl.pallas_call(
        _ln_qkv_kernel,
        out_shape=jax.ShapeDtypeStruct((M, N), jnp.bfloat16),
        grid_spec=pltpu.PrefetchScalarGridSpec(
            num_scalar_prefetch=0,
            grid=(M // tm,),
            in_specs=[
                pl.BlockSpec((tm, E), lambda i: (i, 0)),
                pl.BlockSpec((1, E), lambda i: (0, 0)),
                pl.BlockSpec((1, E), lambda i: (0, 0)),
                pl.BlockSpec((E, N), lambda i: (0, 0)),     # resident weight
            ],
            out_specs=pl.BlockSpec((tm, N), lambda i: (i, 0)),
        ),
        compiler_params=pltpu.CompilerParams(
            dimension_semantics=("parallel",), vmem_limit_bytes=_VMEM_LIMIT),
        cost_estimate=cost,
    )(x2d, gamma.reshape(1, E), beta.reshape(1, E), w_bf)


# ---------------------------------------------------------------------------
# Causal self-attention: grid over batch, all heads per step.
#   qkv (S, 3E) bf16  ->  ctx (S, E) bf16   (softmax in f32)
# ---------------------------------------------------------------------------
def _attention_kernel(qkv_ref, o_ref, *, n_heads, head_dim, emb_dim):
    qkv = qkv_ref[...]                                        # (S, 3E) bf16
    S = qkv.shape[0]
    scale = 1.0 / math.sqrt(head_dim)
    row = lax.broadcasted_iota(jnp.int32, (S, S), 0)
    col = lax.broadcasted_iota(jnp.int32, (S, S), 1)
    causal = col > row

    ctx_heads = []
    for h in range(n_heads):                                  # static unroll
        lo = h * head_dim
        q = qkv[:, lo:lo + head_dim]                          # (S, hd) bf16
        k = qkv[:, emb_dim + lo:emb_dim + lo + head_dim]
        v = qkv[:, 2 * emb_dim + lo:2 * emb_dim + lo + head_dim]
        # q @ k^T without an explicit transpose (contract last dims).
        s = lax.dot_general(q, k, (((1,), (1,)), ((), ())),
                            preferred_element_type=jnp.float32) * scale
        s = jnp.where(causal, -jnp.inf, s)                    # diagonal kept
        m = jnp.max(s, axis=-1, keepdims=True)
        p = jnp.exp(s - m)
        w = p * pl.reciprocal(jnp.sum(p, axis=-1, keepdims=True), approx=True)
        ctx = jnp.dot(w.astype(jnp.bfloat16), v,
                      preferred_element_type=jnp.float32)     # (S, hd) f32
        ctx_heads.append(ctx)
    # One lane-dense (S, E) store (E multiple of 128 -> unmasked vst).
    o_ref[...] = jnp.concatenate(ctx_heads, axis=-1).astype(o_ref.dtype)


def attention(qkv3, *, n_heads):
    # qkv3: (B, S, 3E) bf16 laid out as [Q heads | K heads | V heads]
    B, S, threeE = qkv3.shape
    E = threeE // 3
    hd = E // n_heads
    kern = functools.partial(_attention_kernel, n_heads=n_heads,
                             head_dim=hd, emb_dim=E)
    # TODO(synk): replace with a flash-style online-softmax kernel for long S.
    cost = pl.CostEstimate(flops=4 * B * n_heads * S * S * hd,
                           transcendentals=B * n_heads * S * S,
                           bytes_accessed=B * S * threeE * 2 + B * S * E * 2)
    return pl.pallas_call(
        kern,
        out_shape=jax.ShapeDtypeStruct((B, S, E), jnp.bfloat16),
        grid_spec=pltpu.PrefetchScalarGridSpec(
            num_scalar_prefetch=0,
            grid=(B,),
            in_specs=[pl.BlockSpec((None, S, threeE), lambda b: (b, 0, 0))],
            out_specs=pl.BlockSpec((None, S, E), lambda b: (b, 0, 0)),
        ),
        compiler_params=pltpu.CompilerParams(
            dimension_semantics=("parallel",), vmem_limit_bytes=_VMEM_LIMIT),
        cost_estimate=cost,
    )(qkv3)


# ---------------------------------------------------------------------------
# Output projection with fused residual add: ctx(bf16) @ Wo(bf16) + bo + x
# ---------------------------------------------------------------------------
def _proj_residual_kernel(x_ref, w_ref, b_ref, res_ref, o_ref):
    y = jnp.dot(x_ref[...], w_ref[...], preferred_element_type=jnp.float32)
    o_ref[...] = (y + b_ref[...] + res_ref[...]).astype(o_ref.dtype)


def out_proj(ctx2d, w, b, residual2d, *, tm=None):
    M, E = ctx2d.shape
    N = w.shape[1]
    tm = _pick_row_tile(M) if tm is None else tm
    assert M % tm == 0
    w_bf = w.astype(jnp.bfloat16)
    b2d = b.reshape(1, N).astype(jnp.float32)
    cost = pl.CostEstimate(flops=2 * M * E * N, transcendentals=0,
                           bytes_accessed=M * E * 2 + E * N * 2 + 2 * M * N * 4)
    return pl.pallas_call(
        _proj_residual_kernel,
        out_shape=jax.ShapeDtypeStruct((M, N), jnp.float32),
        grid_spec=pltpu.PrefetchScalarGridSpec(
            num_scalar_prefetch=0,
            grid=(M // tm,),
            in_specs=[
                pl.BlockSpec((tm, E), lambda i: (i, 0)),
                pl.BlockSpec((E, N), lambda i: (0, 0)),     # resident weight
                pl.BlockSpec((1, N), lambda i: (0, 0)),
                pl.BlockSpec((tm, N), lambda i: (i, 0)),    # residual (x)
            ],
            out_specs=pl.BlockSpec((tm, N), lambda i: (i, 0)),
        ),
        compiler_params=pltpu.CompilerParams(
            dimension_semantics=("parallel",), vmem_limit_bytes=_VMEM_LIMIT),
        cost_estimate=cost,
    )(ctx2d, w_bf, b2d, residual2d)


# ---------------------------------------------------------------------------
# Fused LayerNorm2 + FeedForward + residual:
#   out = attn_out + b2 + sum_j GELU(LN2(attn_out) @ W1_j + b1_j) @ W2_j
# LN2 computed once (j==0) into a bf16 VMEM scratch; accumulation happens
# directly in the resident f32 output block (no extra accumulator scratch).
# ---------------------------------------------------------------------------
def _ln_ffn_kernel(x_ref, g_ref, beta_ref, w1_ref, b1_ref, w2_ref, b2_ref,
                   o_ref, h_ref):
    j = pl.program_id(1)

    @pl.when(j == 0)
    def _():
        x = x_ref[...]                                        # (tm, E) f32
        mean = jnp.mean(x, axis=-1, keepdims=True)
        xc = x - mean
        var = jnp.mean(xc * xc, axis=-1, keepdims=True)
        h_ref[...] = (xc * lax.rsqrt(var + _LN_EPS) * g_ref[...]
                      + beta_ref[...]).astype(h_ref.dtype)    # bf16 normed x
        o_ref[...] = x + b2_ref[...]                          # residual + final bias

    a = jnp.dot(h_ref[...], w1_ref[...],
                preferred_element_type=jnp.float32) + b1_ref[...]   # (tm, th) f32
    # tanh-GELU in f32; a + 0.044715*a^3 rewritten as a*(1 + 0.044715*a*a)
    c = jnp.float32(_SQRT_2_OVER_PI)
    g = 0.5 * a * (1.0 + jnp.tanh(c * a * (1.0 + 0.044715 * (a * a))))
    o_ref[...] += jnp.dot(g.astype(jnp.bfloat16), w2_ref[...],
                          preferred_element_type=jnp.float32)


def ln_feed_forward(x2d, gamma, beta, w1, b1, w2, b2, *, tm=None, th=256):
    M, E = x2d.shape
    H4 = w1.shape[1]
    tm = _pick_row_tile(M) if tm is None else tm
    th = min(th, H4)
    assert M % tm == 0 and H4 % th == 0
    w1_bf = w1.astype(jnp.bfloat16)
    w2_bf = w2.astype(jnp.bfloat16)
    b1_2d = b1.reshape(1, H4).astype(jnp.float32)
    b2_2d = b2.reshape(1, E).astype(jnp.float32)
    cost = pl.CostEstimate(flops=4 * M * E * H4, transcendentals=M * H4,
                           bytes_accessed=2 * M * E * 4 + 2 * E * H4 * 2)
    return pl.pallas_call(
        _ln_ffn_kernel,
        out_shape=jax.ShapeDtypeStruct((M, E), jnp.float32),
        grid_spec=pltpu.PrefetchScalarGridSpec(
            num_scalar_prefetch=0,
            grid=(M // tm, H4 // th),              # hidden (reduction) axis last
            in_specs=[
                pl.BlockSpec((tm, E), lambda i, j: (i, 0)),   # attn_out (LN2 in + residual)
                pl.BlockSpec((1, E), lambda i, j: (0, 0)),    # ln2 scale
                pl.BlockSpec((1, E), lambda i, j: (0, 0)),    # ln2 shift
                pl.BlockSpec((E, th), lambda i, j: (0, j)),   # W1 tile
                pl.BlockSpec((1, th), lambda i, j: (0, j)),   # b1 tile
                pl.BlockSpec((th, E), lambda i, j: (j, 0)),   # W2 tile
                pl.BlockSpec((1, E), lambda i, j: (0, 0)),    # b2 (used at j==0)
            ],
            out_specs=pl.BlockSpec((tm, E), lambda i, j: (i, 0)),
            scratch_shapes=[pltpu.VMEM((tm, E), jnp.bfloat16)],   # LN2(x) cache
        ),
        compiler_params=pltpu.CompilerParams(
            dimension_semantics=("parallel", "arbitrary"),
            vmem_limit_bytes=_VMEM_LIMIT),
        cost_estimate=cost,
    )(x2d, gamma.reshape(1, E), beta.reshape(1, E), w1_bf, b1_2d, w2_bf, b2_2d)


# ---------------------------------------------------------------------------
# TransformerBlock forward
# ---------------------------------------------------------------------------
@functools.partial(jax.jit, static_argnames=("n_heads",))
def transformer_block(x, params, *, n_heads):
    B, S, E = x.shape
    M = B * S
    x2d = x.reshape(M, E)

    # --- attention sub-block:  x + out_proj(attn(LN1(x))) ---
    qkv = ln_qkv_proj(x2d, params["ln1_scale"], params["ln1_shift"],
                      params["w_qkv"])                        # (M, 3E) bf16
    ctx = attention(qkv.reshape(B, S, 3 * E), n_heads=n_heads)  # (B, S, E) bf16
    attn_out = out_proj(ctx.reshape(M, E), params["w_o"], params["b_o"], x2d)
    # TODO(synk): nn.Dropout (attn weights + drop_shortcut) is eval-mode identity.

    # --- feed-forward sub-block:  attn_out + FFN(LN2(attn_out)), LN2 fused ---
    out2d = ln_feed_forward(attn_out, params["ln2_scale"], params["ln2_shift"],
                            params["w1"], params["b1"],
                            params["w2"], params["b2"])
    return out2d.reshape(B, S, E)


# ---------------------------------------------------------------------------
# Parameter init (nn.Linear-style uniform, math-friendly (in, out) layout)
# ---------------------------------------------------------------------------
def init_params(key, emb_dim, n_heads):
    del n_heads
    hidden = 4 * emb_dim
    ks = jax.random.split(key, 6)

    def lin(k, fan_in, shape_w, shape_b):
        s = 1.0 / jnp.sqrt(fan_in)
        kw, kb = jax.random.split(k)
        w = jax.random.uniform(kw, shape_w, jnp.float32, -s, s)
        b = jax.random.uniform(kb, shape_b, jnp.float32, -s, s)
        return w, b

    wq, _ = lin(ks[0], emb_dim, (emb_dim, emb_dim), (emb_dim,))
    wk, _ = lin(ks[1], emb_dim, (emb_dim, emb_dim), (emb_dim,))
    wv, _ = lin(ks[2], emb_dim, (emb_dim, emb_dim), (emb_dim,))
    wo, bo = lin(ks[3], emb_dim, (emb_dim, emb_dim), (emb_dim,))
    w1, b1 = lin(ks[4], emb_dim, (emb_dim, hidden), (hidden,))
    w2, b2 = lin(ks[5], hidden, (hidden, emb_dim), (emb_dim,))

    return {
        "ln1_scale": jnp.ones((emb_dim,), jnp.float32),
        "ln1_shift": jnp.zeros((emb_dim,), jnp.float32),
        "ln2_scale": jnp.ones((emb_dim,), jnp.float32),
        "ln2_shift": jnp.zeros((emb_dim,), jnp.float32),
        "w_qkv": jnp.concatenate([wq, wk, wv], axis=1),       # (E, 3E), qkv_bias=False
        "w_o": wo, "b_o": bo,
        "w1": w1, "b1": b1, "w2": w2, "b2": b2,
    }


# ---------------------------------------------------------------------------
# Pure-JAX f32 reference of the same TransformerBlock math
# ---------------------------------------------------------------------------
def reference_block(x, p, n_heads):
    B, S, E = x.shape
    hd = E // n_heads

    def ln(t, g, b):
        m = t.mean(-1, keepdims=True)
        v = ((t - m) ** 2).mean(-1, keepdims=True)
        return g * (t - m) / jnp.sqrt(v + _LN_EPS) + b

    shortcut = x
    h = ln(x, p["ln1_scale"], p["ln1_shift"])
    q = h @ p["w_qkv"][:, :E]
    k = h @ p["w_qkv"][:, E:2 * E]
    v = h @ p["w_qkv"][:, 2 * E:]

    def split(t):
        return t.reshape(B, S, n_heads, hd).transpose(0, 2, 1, 3)

    q, k, v = split(q), split(k), split(v)
    s = q @ k.transpose(0, 1, 3, 2)
    mask = jnp.triu(jnp.ones((S, S), bool), 1)
    s = jnp.where(mask, -jnp.inf, s)
    w = jax.nn.softmax(s / jnp.sqrt(jnp.float32(hd)), axis=-1)
    ctx = (w @ v).transpose(0, 2, 1, 3).reshape(B, S, E)
    x1 = ctx @ p["w_o"] + p["b_o"] + shortcut

    h2 = ln(x1, p["ln2_scale"], p["ln2_shift"])
    a = h2 @ p["w1"] + p["b1"]
    g = 0.5 * a * (1.0 + jnp.tanh(jnp.sqrt(2.0 / jnp.pi) * (a + 0.044715 * a ** 3)))
    return g @ p["w2"] + p["b2"] + x1


if __name__ == "__main__":
    # Lane-dense config: emb_dim multiple of 128 keeps every kernel's output
    # last dim a multiple of 128 (unmasked vector stores).
    batch, seq, emb_dim, n_heads = 2, 64, 128, 4

    key = jax.random.PRNGKey(0)
    kx, kp = jax.random.split(key)
    x = jax.random.normal(kx, (batch, seq, emb_dim), jnp.float32)
    params = init_params(kp, emb_dim, n_heads)

    out = transformer_block(x, params, n_heads=n_heads)
    out = jax.block_until_ready(out)
    assert out.shape == (batch, seq, emb_dim)

    ref = reference_block(x, params, n_heads)
    # bf16 MXU operands + bf16 qkv/ctx activations loosen the match vs pure f32.
    err = float(jnp.max(jnp.abs(out - ref)))
    assert jnp.allclose(out, ref, atol=5e-2, rtol=5e-2), err

    print("KERNEL_OK")
</pallas_src>

<mosaic_0001>
module attributes {stable_mosaic.version = 11 : i64} {
  func.func @_ln_qkv_kernel(%arg0: i32, %arg1: memref<64x128xf32, #tpu.memory_space<vmem>>, %arg2: memref<1x128xf32, #tpu.memory_space<vmem>>, %arg3: memref<1x128xf32, #tpu.memory_space<vmem>>, %arg4: memref<128x384xbf16, #tpu.memory_space<vmem>>, %arg5: memref<64x384xbf16, #tpu.memory_space<vmem>>) attributes {dimension_semantics = [#tpu.dimension_semantics<parallel>], iteration_bounds = array<i64: 2>, scalar_prefetch = 0 : i64, scratch_operands = 0 : i64, tpu.core_type = #tpu.core_type<tc>, window_params = [{transform_indices = @transform_0, window_bounds = array<i64: 64, 128>}, {pipeline_mode = #tpu.pipeline_mode<synchronous>, transform_indices = @transform_1, window_bounds = array<i64: 1, 128>}, {pipeline_mode = #tpu.pipeline_mode<synchronous>, transform_indices = @transform_2, window_bounds = array<i64: 1, 128>}, {pipeline_mode = #tpu.pipeline_mode<synchronous>, transform_indices = @transform_3, window_bounds = array<i64: 128, 384>}, {transform_indices = @transform_4, window_bounds = array<i64: 64, 384>}]} {
    %c0 = arith.constant 0 : index
    %c0_0 = arith.constant 0 : index
    %0 = vector.load %arg1[%c0, %c0_0] : memref<64x128xf32, #tpu.memory_space<vmem>>, vector<64x128xf32>
    %cst = arith.constant dense<0.000000e+00> : vector<64xf32>
    %1 = vector.multi_reduction <add>, %0, %cst [1] : vector<64x128xf32> to vector<64xf32>
    %2 = vector.shape_cast %1 : vector<64xf32> to vector<64x1xf32>
    %cst_1 = arith.constant 1.280000e+02 : f32
    %3 = vector.broadcast %cst_1 : f32 to vector<64x1xf32>
    %4 = arith.divf %2, %3 : vector<64x1xf32>
    %5 = vector.broadcast %4 : vector<64x1xf32> to vector<64x128xf32>
    %6 = arith.subf %0, %5 : vector<64x128xf32>
    %7 = arith.mulf %6, %6 : vector<64x128xf32>
    %cst_2 = arith.constant dense<0.000000e+00> : vector<64xf32>
    %8 = vector.multi_reduction <add>, %7, %cst_2 [1] : vector<64x128xf32> to vector<64xf32>
    %9 = vector.shape_cast %8 : vector<64xf32> to vector<64x1xf32>
    %cst_3 = arith.constant 1.280000e+02 : f32
    %10 = vector.broadcast %cst_3 : f32 to vector<64x1xf32>
    %11 = arith.divf %9, %10 : vector<64x1xf32>
    %cst_4 = arith.constant 9.99999974E-6 : f32
    %12 = vector.broadcast %cst_4 : f32 to vector<64x1xf32>
    %13 = arith.addf %11, %12 : vector<64x1xf32>
    %14 = math.rsqrt %13 : vector<64x1xf32>
    %15 = vector.broadcast %14 : vector<64x1xf32> to vector<64x128xf32>
    %16 = arith.mulf %6, %15 : vector<64x128xf32>
    %c0_5 = arith.constant 0 : index
    %c0_6 = arith.constant 0 : index
    %17 = vector.load %arg2[%c0_5, %c0_6] : memref<1x128xf32, #tpu.memory_space<vmem>>, vector<1x128xf32>
    %18 = vector.broadcast %17 : vector<1x128xf32> to vector<64x128xf32>
    %19 = arith.mulf %16, %18 : vector<64x128xf32>
    %c0_7 = arith.constant 0 : index
    %c0_8 = arith.constant 0 : index
    %20 = vector.load %arg3[%c0_7, %c0_8] : memref<1x128xf32, #tpu.memory_space<vmem>>, vector<1x128xf32>
    %21 = vector.broadcast %20 : vector<1x128xf32> to vector<64x128xf32>
    %22 = arith.addf %19, %21 : vector<64x128xf32>
    %23 = arith.truncf %22 : vector<64x128xf32> to vector<64x128xbf16>
    %c0_9 = arith.constant 0 : index
    %c0_10 = arith.constant 0 : index
    %24 = vector.load %arg4[%c0_9, %c0_10] : memref<128x384xbf16, #tpu.memory_space<vmem>>, vector<128x384xbf16>
    %cst_11 = arith.constant dense<0.000000e+00> : vector<64x384xf32>
    %25 = tpu.matmul %23, %24, %cst_11 {dimension_numbers = #tpu.dot_dimension_numbers<[1], [0], [0], [1], [0, 0, 1, 1], [], []>} : vector<64x128xbf16>, vector<128x384xbf16>, vector<64x384xf32> -> vector<64x384xf32>
    %26 = arith.truncf %25 : vector<64x384xf32> to vector<64x384xbf16>
    %c0_12 = arith.constant 0 : index
    %c0_13 = arith.constant 0 : index
    %27 = vector.load %arg5[%c0_12, %c0_13] : memref<64x384xbf16, #tpu.memory_space<vmem>>, vector<64x384xbf16>
    tpu.vector_store %arg5[%c0_12, %c0_13], %26 {strides = array<i32>} : memref<64x384xbf16, #tpu.memory_space<vmem>>, vector<64x384xbf16>,
    return
  }
  func.func @transform_0(%arg0: i32) -> (i32, i32) {
    %c0_i32 = arith.constant 0 : i32
    %c0_i32_0 = arith.constant 0 : i32
    return %arg0, %c0_i32 : i32, i32
  }
  func.func @transform_1(%arg0: i32) -> (i32, i32) {
    %c0_i32 = arith.constant 0 : i32
    %c0_i32_0 = arith.constant 0 : i32
    %c0_i32_1 = arith.constant 0 : i32
    return %c0_i32, %c0_i32_0 : i32, i32
  }
  func.func @transform_2(%arg0: i32) -> (i32, i32) {
    %c0_i32 = arith.constant 0 : i32
    %c0_i32_0 = arith.constant 0 : i32
    %c0_i32_1 = arith.constant 0 : i32
    return %c0_i32, %c0_i32_0 : i32, i32
  }
  func.func @transform_3(%arg0: i32) -> (i32, i32) {
    %c0_i32 = arith.constant 0 : i32
    %c0_i32_0 = arith.constant 0 : i32
    %c0_i32_1 = arith.constant 0 : i32
    return %c0_i32, %c0_i32_0 : i32, i32
  }
  func.func @transform_4(%arg0: i32) -> (i32, i32) {
    %c0_i32 = arith.constant 0 : i32
    %c0_i32_0 = arith.constant 0 : i32
    return %arg0, %c0_i32 : i32, i32
  }
}

module attributes {stable_mosaic.version = 11 : i64} {
  func.func @_attention_kernel(%arg0: i32, %arg1: memref<1x64x384xbf16, #tpu.memory_space<vmem>>, %arg2: memref<1x64x128xbf16, #tpu.memory_space<vmem>>) attributes {dimension_semantics = [#tpu.dimension_semantics<parallel>], iteration_bounds = array<i64: 2>, scalar_prefetch = 0 : i64, scratch_operands = 0 : i64, tpu.core_type = #tpu.core_type<tc>, window_params = [{transform_indices = @transform_0, window_bounds = array<i64: 1, 64, 384>}, {transform_indices = @transform_1, window_bounds = array<i64: 1, 64, 128>}]} {
    %c0 = arith.constant 0 : index
    %c0_0 = arith.constant 0 : index
    %c0_1 = arith.constant 0 : index
    %0 = vector.load %arg1[%c0, %c0_0, %c0_1] : memref<1x64x384xbf16, #tpu.memory_space<vmem>>, vector<1x64x384xbf16>
    %1 = vector.shape_cast %0 : vector<1x64x384xbf16> to vector<64x384xbf16>
    %2 = tpu.iota {dimensions = array<i32: 0>} : vector<64x64xi32>
    %3 = tpu.iota {dimensions = array<i32: 1>} : vector<64x64xi32>
    %4 = arith.cmpi sgt, %3, %2 : vector<64x64xi32>
    %5 = vector.extract_strided_slice %1 {offsets = [0, 0], sizes = [64, 32], strides = [1, 1]} : vector<64x384xbf16> to vector<64x32xbf16>
    %6 = vector.extract_strided_slice %1 {offsets = [0, 128], sizes = [64, 32], strides = [1, 1]} : vector<64x384xbf16> to vector<64x32xbf16>
    %7 = vector.extract_strided_slice %1 {offsets = [0, 256], sizes = [64, 32], strides = [1, 1]} : vector<64x384xbf16> to vector<64x32xbf16>
    %cst = arith.constant dense<0.000000e+00> : vector<64x64xf32>
    %8 = tpu.matmul %5, %6, %cst {dimension_numbers = #tpu.dot_dimension_numbers<[1], [1], [0], [0], [0, 0, 1, 0], [], []>} : vector<64x32xbf16>, vector<64x32xbf16>, vector<64x64xf32> -> vector<64x64xf32>
    %cst_2 = arith.constant 0.176776692 : f32
    %9 = vector.broadcast %cst_2 : f32 to vector<64x64xf32>
    %10 = arith.mulf %8, %9 : vector<64x64xf32>
    %cst_3 = arith.constant 0xFF800000 : f32
    %11 = vector.broadcast %cst_3 : f32 to vector<64x64xf32>
    %12 = arith.select %4, %11, %10 : vector<64x64xi1>, vector<64x64xf32>
    %cst_4 = arith.constant dense<0xFF800000> : vector<64xf32>
    %13 = vector.multi_reduction <maximumf>, %12, %cst_4 [1] : vector<64x64xf32> to vector<64xf32>
    %14 = vector.shape_cast %13 : vector<64xf32> to vector<64x1xf32>
    %15 = vector.broadcast %14 : vector<64x1xf32> to vector<64x64xf32>
    %16 = arith.subf %12, %15 : vector<64x64xf32>
    %17 = math.exp %16 : vector<64x64xf32>
    %cst_5 = arith.constant dense<0.000000e+00> : vector<64xf32>
    %18 = vector.multi_reduction <add>, %17, %cst_5 [1] : vector<64x64xf32> to vector<64xf32>
    %19 = vector.shape_cast %18 : vector<64xf32> to vector<64x1xf32>
    %20 = tpu.reciprocal %19 {approx = true} : vector<64x1xf32> -> vector<64x1xf32>
    %21 = vector.broadcast %20 : vector<64x1xf32> to vector<64x64xf32>
    %22 = arith.mulf %17, %21 : vector<64x64xf32>
    %23 = arith.truncf %22 : vector<64x64xf32> to vector<64x64xbf16>
    %cst_6 = arith.constant dense<0.000000e+00> : vector<64x32xf32>
    %24 = tpu.matmul %23, %7, %cst_6 {dimension_numbers = #tpu.dot_dimension_numbers<[1], [0], [0], [1], [0, 0, 1, 1], [], []>} : vector<64x64xbf16>, vector<64x32xbf16>, vector<64x32xf32> -> vector<64x32xf32>
    %25 = vector.extract_strided_slice %1 {offsets = [0, 32], sizes = [64, 32], strides = [1, 1]} : vector<64x384xbf16> to vector<64x32xbf16>
    %26 = vector.extract_strided_slice %1 {offsets = [0, 160], sizes = [64, 32], strides = [1, 1]} : vector<64x384xbf16> to vector<64x32xbf16>
    %27 = vector.extract_strided_slice %1 {offsets = [0, 288], sizes = [64, 32], strides = [1, 1]} : vector<64x384xbf16> to vector<64x32xbf16>
    %cst_7 = arith.constant dense<0.000000e+00> : vector<64x64xf32>
    %28 = tpu.matmul %25, %26, %cst_7 {dimension_numbers = #tpu.dot_dimension_numbers<[1], [1], [0], [0], [0, 0, 1, 0], [], []>} : vector<64x32xbf16>, vector<64x32xbf16>, vector<64x64xf32> -> vector<64x64xf32>
    %cst_8 = arith.constant 0.176776692 : f32
    %29 = vector.broadcast %cst_8 : f32 to vector<64x64xf32>
    %30 = arith.mulf %28, %29 : vector<64x64xf32>
    %cst_9 = arith.constant 0xFF800000 : f32
    %31 = vector.broadcast %cst_9 : f32 to vector<64x64xf32>
    %32 = arith.select %4, %31, %30 : vector<64x64xi1>, vector<64x64xf32>
    %cst_10 = arith.constant dense<0xFF800000> : vector<64xf32>
    %33 = vector.multi_reduction <maximumf>, %32, %cst_10 [1] : vector<64x64xf32> to vector<64xf32>
    %34 = vector.shape_cast %33 : vector<64xf32> to vector<64x1xf32>
    %35 = vector.broadcast %34 : vector<64x1xf32> to vector<64x64xf32>
    %36 = arith.subf %32, %35 : vector<64x64xf32>
    %37 = math.exp %36 : vector<64x64xf32>
    %cst_11 = arith.constant dense<0.000000e+00> : vector<64xf32>
    %38 = vector.multi_reduction <add>, %37, %cst_11 [1] : vector<64x64xf32> to vector<64xf32>
    %39 = vector.shape_cast %38 : vector<64xf32> to vector<64x1xf32>
    %40 = tpu.reciprocal %39 {approx = true} : vector<64x1xf32> -> vector<64x1xf32>
    %41 = vector.broadcast %40 : vector<64x1xf32> to vector<64x64xf32>
    %42 = arith.mulf %37, %41 : vector<64x64xf32>
    %43 = arith.truncf %42 : vector<64x64xf32> to vector<64x64xbf16>
    %cst_12 = arith.constant dense<0.000000e+00> : vector<64x32xf32>
    %44 = tpu.matmul %43, %27, %cst_12 {dimension_numbers = #tpu.dot_dimension_numbers<[1], [0], [0], [1], [0, 0, 1, 1], [], []>} : vector<64x64xbf16>, vector<64x32xbf16>, vector<64x32xf32> -> vector<64x32xf32>
    %45 = vector.extract_strided_slice %1 {offsets = [0, 64], sizes = [64, 32], strides = [1, 1]} : vector<64x384xbf16> to vector<64x32xbf16>
    %46 = vector.extract_strided_slice %1 {offsets = [0, 192], sizes = [64, 32], strides = [1, 1]} : vector<64x384xbf16> to vector<64x32xbf16>
    %47 = vector.extract_strided_slice %1 {offsets = [0, 320], sizes = [64, 32], strides = [1, 1]} : vector<64x384xbf16> to vector<64x32xbf16>
    %cst_13 = arith.constant dense<0.000000e+00> : vector<64x64xf32>
    %48 = tpu.matmul %45, %46, %cst_13 {dimension_numbers = #tpu.dot_dimension_numbers<[1], [1], [0], [0], [0, 0, 1, 0], [], []>} : vector<64x32xbf16>, vector<64x32xbf16>, vector<64x64xf32> -> vector<64x64xf32>
    %cst_14 = arith.constant 0.176776692 : f32
    %49 = vector.broadcast %cst_14 : f32 to vector<64x64xf32>
    %50 = arith.mulf %48, %49 : vector<64x64xf32>
    %cst_15 = arith.constant 0xFF800000 : f32
    %51 = vector.broadcast %cst_15 : f32 to vector<64x64xf32>
    %52 = arith.select %4, %51, %50 : vector<64x64xi1>, vector<64x64xf32>
    %cst_16 = arith.constant dense<0xFF800000> : vector<64xf32>
    %53 = vector.multi_reduction <maximumf>, %52, %cst_16 [1] : vector<64x64xf32> to vector<64xf32>
    %54 = vector.shape_cast %53 : vector<64xf32> to vector<64x1xf32>
    %55 = vector.broadcast %54 : vector<64x1xf32> to vector<64x64xf32>
    %56 = arith.subf %52, %55 : vector<64x64xf32>
    %57 = math.exp %56 : vector<64x64xf32>
    %cst_17 = arith.constant dense<0.000000e+00> : vector<64xf32>
    %58 = vector.multi_reduction <add>, %57, %cst_17 [1] : vector<64x64xf32> to vector<64xf32>
    %59 = vector.shape_cast %58 : vector<64xf32> to vector<64x1xf32>
    %60 = tpu.reciprocal %59 {approx = true} : vector<64x1xf32> -> vector<64x1xf32>
    %61 = vector.broadcast %60 : vector<64x1xf32> to vector<64x64xf32>
    %62 = arith.mulf %57, %61 : vector<64x64xf32>
    %63 = arith.truncf %62 : vector<64x64xf32> to vector<64x64xbf16>
    %cst_18 = arith.constant dense<0.000000e+00> : vector<64x32xf32>
    %64 = tpu.matmul %63, %47, %cst_18 {dimension_numbers = #tpu.dot_dimension_numbers<[1], [0], [0], [1], [0, 0, 1, 1], [], []>} : vector<64x64xbf16>, vector<64x32xbf16>, vector<64x32xf32> -> vector<64x32xf32>
    %65 = vector.extract_strided_slice %1 {offsets = [0, 96], sizes = [64, 32], strides = [1, 1]} : vector<64x384xbf16> to vector<64x32xbf16>
    %66 = vector.extract_strided_slice %1 {offsets = [0, 224], sizes = [64, 32], strides = [1, 1]} : vector<64x384xbf16> to vector<64x32xbf16>
    %67 = vector.extract_strided_slice %1 {offsets = [0, 352], sizes = [64, 32], strides = [1, 1]} : vector<64x384xbf16> to vector<64x32xbf16>
    %cst_19 = arith.constant dense<0.000000e+00> : vector<64x64xf32>
    %68 = tpu.matmul %65, %66, %cst_19 {dimension_numbers = #tpu.dot_dimension_numbers<[1], [1], [0], [0], [0, 0, 1, 0], [], []>} : vector<64x32xbf16>, vector<64x32xbf16>, vector<64x64xf32> -> vector<64x64xf32>
    %cst_20 = arith.constant 0.176776692 : f32
    %69 = vector.broadcast %cst_20 : f32 to vector<64x64xf32>
    %70 = arith.mulf %68, %69 : vector<64x64xf32>
    %cst_21 = arith.constant 0xFF800000 : f32
    %71 = vector.broadcast %cst_21 : f32 to vector<64x64xf32>
    %72 = arith.select %4, %71, %70 : vector<64x64xi1>, vector<64x64xf32>
    %cst_22 = arith.constant dense<0xFF800000> : vector<64xf32>
    %73 = vector.multi_reduction <maximumf>, %72, %cst_22 [1] : vector<64x64xf32> to vector<64xf32>
    %74 = vector.shape_cast %73 : vector<64xf32> to vector<64x1xf32>
    %75 = vector.broadcast %74 : vector<64x1xf32> to vector<64x64xf32>
    %76 = arith.subf %72, %75 : vector<64x64xf32>
    %77 = math.exp %76 : vector<64x64xf32>
    %cst_23 = arith.constant dense<0.000000e+00> : vector<64xf32>
    %78 = vector.multi_reduction <add>, %77, %cst_23 [1] : vector<64x64xf32> to vector<64xf32>
    %79 = vector.shape_cast %78 : vector<64xf32> to vector<64x1xf32>
    %80 = tpu.reciprocal %79 {approx = true} : vector<64x1xf32> -> vector<64x1xf32>
    %81 = vector.broadcast %80 : vector<64x1xf32> to vector<64x64xf32>
    %82 = arith.mulf %77, %81 : vector<64x64xf32>
    %83 = arith.truncf %82 : vector<64x64xf32> to vector<64x64xbf16>
    %cst_24 = arith.constant dense<0.000000e+00> : vector<64x32xf32>
    %84 = tpu.matmul %83, %67, %cst_24 {dimension_numbers = #tpu.dot_dimension_numbers<[1], [0], [0], [1], [0, 0, 1, 1], [], []>} : vector<64x64xbf16>, vector<64x32xbf16>, vector<64x32xf32> -> vector<64x32xf32>
    %85 = tpu.concatenate %24, %44, %64, %84 in 1 : vector<64x32xf32>, vector<64x32xf32>, vector<64x32xf32>, vector<64x32xf32> -> vector<64x128xf32>
    %86 = arith.truncf %85 : vector<64x128xf32> to vector<64x128xbf16>
    %c0_25 = arith.constant 0 : index
    %c0_26 = arith.constant 0 : index
    %c0_27 = arith.constant 0 : index
    %87 = vector.load %arg2[%c0_25, %c0_26, %c0_27] : memref<1x64x128xbf16, #tpu.memory_space<vmem>>, vector<1x64x128xbf16>
    %88 = vector.shape_cast %87 : vector<1x64x128xbf16> to vector<64x128xbf16>
    %89 = vector.shape_cast %86 : vector<64x128xbf16> to vector<1x64x128xbf16>
    tpu.vector_store %arg2[%c0_25, %c0_26, %c0_27], %89 {strides = array<i32>} : memref<1x64x128xbf16, #tpu.memory_space<vmem>>, vector<1x64x128xbf16>,
    return
  }
  func.func @transform_0(%arg0: i32) -> (i32, i32, i32) {
    %c0_i32 = arith.constant 0 : i32
    %c0_i32_0 = arith.constant 0 : i32
    %c0_i32_1 = arith.constant 0 : i32
    return %arg0, %c0_i32, %c0_i32_0 : i32, i32, i32
  }
  func.func @transform_1(%arg0: i32) -> (i32, i32, i32) {
    %c0_i32 = arith.constant 0 : i32
    %c0_i32_0 = arith.constant 0 : i32
    %c0_i32_1 = arith.constant 0 : i32
    return %arg0, %c0_i32, %c0_i32_0 : i32, i32, i32
  }
}

module attributes {stable_mosaic.version = 11 : i64} {
  func.func @_ln_ffn_kernel(%arg0: i32, %arg1: i32, %arg2: memref<64x128xf32, #tpu.memory_space<vmem>>, %arg3: memref<1x128xf32, #tpu.memory_space<vmem>>, %arg4: memref<1x128xf32, #tpu.memory_space<vmem>>, %arg5: memref<128x256xbf16, #tpu.memory_space<vmem>>, %arg6: memref<1x256xf32, #tpu.memory_space<vmem>>, %arg7: memref<256x128xbf16, #tpu.memory_space<vmem>>, %arg8: memref<1x128xf32, #tpu.memory_space<vmem>>, %arg9: memref<64x128xf32, #tpu.memory_space<vmem>>, %arg10: memref<64x128xbf16, #tpu.memory_space<vmem>>) attributes {dimension_semantics = [#tpu.dimension_semantics<parallel>, #tpu.dimension_semantics<arbitrary>], iteration_bounds = array<i64: 2, 2>, scalar_prefetch = 0 : i64, scratch_operands = 1 : i64, tpu.core_type = #tpu.core_type<tc>, window_params = [{transform_indices = @transform_0, window_bounds = array<i64: 64, 128>}, {pipeline_mode = #tpu.pipeline_mode<synchronous>, transform_indices = @transform_1, window_bounds = array<i64: 1, 128>}, {pipeline_mode = #tpu.pipeline_mode<synchronous>, transform_indices = @transform_2, window_bounds = array<i64: 1, 128>}, {transform_indices = @transform_3, window_bounds = array<i64: 128, 256>}, {transform_indices = @transform_4, window_bounds = array<i64: 1, 256>}, {transform_indices = @transform_5, window_bounds = array<i64: 256, 128>}, {pipeline_mode = #tpu.pipeline_mode<synchronous>, transform_indices = @transform_6, window_bounds = array<i64: 1, 128>}, {transform_indices = @transform_7, window_bounds = array<i64: 64, 128>}]} {
    %c0_i32 = arith.constant 0 : i32
    %0 = arith.cmpi eq, %arg1, %c0_i32 : i32
    %1 = arith.extui %0 : i1 to i32
    %c0_i32_0 = arith.constant 0 : i32
    %2 = arith.cmpi ne, %1, %c0_i32_0 : i32
    scf.if %2 {
      %c0_18 = arith.constant 0 : index
      %c0_19 = arith.constant 0 : index
      %29 = vector.load %arg2[%c0_18, %c0_19] : memref<64x128xf32, #tpu.memory_space<vmem>>, vector<64x128xf32>
      %cst_20 = arith.constant dense<0.000000e+00> : vector<64xf32>
      %30 = vector.multi_reduction <add>, %29, %cst_20 [1] : vector<64x128xf32> to vector<64xf32>
      %31 = vector.shape_cast %30 : vector<64xf32> to vector<64x1xf32>
      %cst_21 = arith.constant 1.280000e+02 : f32
      %32 = vector.broadcast %cst_21 : f32 to vector<64x1xf32>
      %33 = arith.divf %31, %32 : vector<64x1xf32>
      %34 = vector.broadcast %33 : vector<64x1xf32> to vector<64x128xf32>
      %35 = arith.subf %29, %34 : vector<64x128xf32>
      %36 = arith.mulf %35, %35 : vector<64x128xf32>
      %cst_22 = arith.constant dense<0.000000e+00> : vector<64xf32>
      %37 = vector.multi_reduction <add>, %36, %cst_22 [1] : vector<64x128xf32> to vector<64xf32>
      %38 = vector.shape_cast %37 : vector<64xf32> to vector<64x1xf32>
      %cst_23 = arith.constant 1.280000e+02 : f32
      %39 = vector.broadcast %cst_23 : f32 to vector<64x1xf32>
      %40 = arith.divf %38, %39 : vector<64x1xf32>
      %cst_24 = arith.constant 9.99999974E-6 : f32
      %41 = vector.broadcast %cst_24 : f32 to vector<64x1xf32>
      %42 = arith.addf %40, %41 : vector<64x1xf32>
      %43 = math.rsqrt %42 : vector<64x1xf32>
      %44 = vector.broadcast %43 : vector<64x1xf32> to vector<64x128xf32>
      %45 = arith.mulf %35, %44 : vector<64x128xf32>
      %c0_25 = arith.constant 0 : index
      %c0_26 = arith.constant 0 : index
      %46 = vector.load %arg3[%c0_25, %c0_26] : memref<1x128xf32, #tpu.memory_space<vmem>>, vector<1x128xf32>
      %47 = vector.broadcast %46 : vector<1x128xf32> to vector<64x128xf32>
      %48 = arith.mulf %45, %47 : vector<64x128xf32>
      %c0_27 = arith.constant 0 : index
      %c0_28 = arith.constant 0 : index
      %49 = vector.load %arg4[%c0_27, %c0_28] : memref<1x128xf32, #tpu.memory_space<vmem>>, vector<1x128xf32>
      %50 = vector.broadcast %49 : vector<1x128xf32> to vector<64x128xf32>
      %51 = arith.addf %48, %50 : vector<64x128xf32>
      %52 = arith.truncf %51 : vector<64x128xf32> to vector<64x128xbf16>
      %c0_29 = arith.constant 0 : index
      %c0_30 = arith.constant 0 : index
      %53 = vector.load %arg10[%c0_29, %c0_30] : memref<64x128xbf16, #tpu.memory_space<vmem>>, vector<64x128xbf16>
      tpu.vector_store %arg10[%c0_29, %c0_30], %52 {strides = array<i32>} : memref<64x128xbf16, #tpu.memory_space<vmem>>, vector<64x128xbf16>,
      %c0_31 = arith.constant 0 : index
      %c0_32 = arith.constant 0 : index
      %54 = vector.load %arg8[%c0_31, %c0_32] : memref<1x128xf32, #tpu.memory_space<vmem>>, vector<1x128xf32>
      %55 = vector.broadcast %54 : vector<1x128xf32> to vector<64x128xf32>
      %56 = arith.addf %29, %55 : vector<64x128xf32>
      %c0_33 = arith.constant 0 : index
      %c0_34 = arith.constant 0 : index
      %57 = vector.load %arg9[%c0_33, %c0_34] : memref<64x128xf32, #tpu.memory_space<vmem>>, vector<64x128xf32>
      tpu.vector_store %arg9[%c0_33, %c0_34], %56 {strides = array<i32>} : memref<64x128xf32, #tpu.memory_space<vmem>>, vector<64x128xf32>,
    } else {
    }
    %c0 = arith.constant 0 : index
    %c0_1 = arith.constant 0 : index
    %3 = vector.load %arg10[%c0, %c0_1] : memref<64x128xbf16, #tpu.memory_space<vmem>>, vector<64x128xbf16>
    %c0_2 = arith.constant 0 : index
    %c0_3 = arith.constant 0 : index
    %4 = vector.load %arg5[%c0_2, %c0_3] : memref<128x256xbf16, #tpu.memory_space<vmem>>, vector<128x256xbf16>
    %cst = arith.constant dense<0.000000e+00> : vector<64x256xf32>
    %5 = tpu.matmul %3, %4, %cst {dimension_numbers = #tpu.dot_dimension_numbers<[1], [0], [0], [1], [0, 0, 1, 1], [], []>} : vector<64x128xbf16>, vector<128x256xbf16>, vector<64x256xf32> -> vector<64x256xf32>
    %c0_4 = arith.constant 0 : index
    %c0_5 = arith.constant 0 : index
    %6 = vector.load %arg6[%c0_4, %c0_5] : memref<1x256xf32, #tpu.memory_space<vmem>>, vector<1x256xf32>
    %7 = vector.broadcast %6 : vector<1x256xf32> to vector<64x256xf32>
    %8 = arith.addf %5, %7 : vector<64x256xf32>
    %cst_6 = arith.constant 5.000000e-01 : f32
    %9 = vector.broadcast %cst_6 : f32 to vector<64x256xf32>
    %10 = arith.mulf %9, %8 : vector<64x256xf32>
    %cst_7 = arith.constant 0.797884583 : f32
    %11 = vector.broadcast %cst_7 : f32 to vector<64x256xf32>
    %12 = arith.mulf %11, %8 : vector<64x256xf32>
    %13 = arith.mulf %8, %8 : vector<64x256xf32>
    %cst_8 = arith.constant 4.471500e-02 : f32
    %14 = vector.broadcast %cst_8 : f32 to vector<64x256xf32>
    %15 = arith.mulf %14, %13 : vector<64x256xf32>
    %cst_9 = arith.constant 1.000000e+00 : f32
    %16 = vector.broadcast %cst_9 : f32 to vector<64x256xf32>
    %17 = arith.addf %16, %15 : vector<64x256xf32>
    %18 = arith.mulf %12, %17 : vector<64x256xf32>
    %19 = math.tanh %18 : vector<64x256xf32>
    %cst_10 = arith.constant 1.000000e+00 : f32
    %20 = vector.broadcast %cst_10 : f32 to vector<64x256xf32>
    %21 = arith.addf %20, %19 : vector<64x256xf32>
    %22 = arith.mulf %10, %21 : vector<64x256xf32>
    %c0_11 = arith.constant 0 : index
    %c0_12 = arith.constant 0 : index
    %23 = vector.load %arg9[%c0_11, %c0_12] : memref<64x128xf32, #tpu.memory_space<vmem>>, vector<64x128xf32>
    %24 = arith.truncf %22 : vector<64x256xf32> to vector<64x256xbf16>
    %c0_13 = arith.constant 0 : index
    %c0_14 = arith.constant 0 : index
    %25 = vector.load %arg7[%c0_13, %c0_14] : memref<256x128xbf16, #tpu.memory_space<vmem>>, vector<256x128xbf16>
    %cst_15 = arith.constant dense<0.000000e+00> : vector<64x128xf32>
    %26 = tpu.matmul %24, %25, %cst_15 {dimension_numbers = #tpu.dot_dimension_numbers<[1], [0], [0], [1], [0, 0, 1, 1], [], []>} : vector<64x256xbf16>, vector<256x128xbf16>, vector<64x128xf32> -> vector<64x128xf32>
    %27 = arith.addf %23, %26 : vector<64x128xf32>
    %c0_16 = arith.constant 0 : index
    %c0_17 = arith.constant 0 : index
    %28 = vector.load %arg9[%c0_16, %c0_17] : memref<64x128xf32, #tpu.memory_space<vmem>>, vector<64x128xf32>
    tpu.vector_store %arg9[%c0_16, %c0_17], %27 {strides = array<i32>} : memref<64x128xf32, #tpu.memory_space<vmem>>, vector<64x128xf32>,
    return
  }
  func.func @transform_0(%arg0: i32, %arg1: i32) -> (i32, i32) {
    %c0_i32 = arith.constant 0 : i32
    %c0_i32_0 = arith.constant 0 : i32
    return %arg0, %c0_i32 : i32, i32
  }
  func.func @transform_1(%arg0: i32, %arg1: i32) -> (i32, i32) {
    %c0_i32 = arith.constant 0 : i32
    %c0_i32_0 = arith.constant 0 : i32
    %c0_i32_1 = arith.constant 0 : i32
    return %c0_i32, %c0_i32_0 : i32, i32
  }
  func.func @transform_2(%arg0: i32, %arg1: i32) -> (i32, i32) {
    %c0_i32 = arith.constant 0 : i32
    %c0_i32_0 = arith.constant 0 : i32
    %c0_i32_1 = arith.constant 0 : i32
    return %c0_i32, %c0_i32_0 : i32, i32
  }
  func.func @transform_3(%arg0: i32, %arg1: i32) -> (i32, i32) {
    %c0_i32 = arith.constant 0 : i32
    %c0_i32_0 = arith.constant 0 : i32
    return %c0_i32, %arg1 : i32, i32
  }
  func.func @transform_4(%arg0: i32, %arg1: i32) -> (i32, i32) {
    %c0_i32 = arith.constant 0 : i32
    %c0_i32_0 = arith.constant 0 : i32
    return %c0_i32, %arg1 : i32, i32
  }
  func.func @transform_5(%arg0: i32, %arg1: i32) -> (i32, i32) {
    %c0_i32 = arith.constant 0 : i32
    %c0_i32_0 = arith.constant 0 : i32
    return %arg1, %c0_i32 : i32, i32
  }
  func.func @transform_6(%arg0: i32, %arg1: i32) -> (i32, i32) {
    %c0_i32 = arith.constant 0 : i32
    %c0_i32_0 = arith.constant 0 : i32
    %c0_i32_1 = arith.constant 0 : i32
    return %c0_i32, %c0_i32_0 : i32, i32
  }
  func.func @transform_7(%arg0: i32, %arg1: i32) -> (i32, i32) {
    %c0_i32 = arith.constant 0 : i32
    %c0_i32_0 = arith.constant 0 : i32
    return %arg0, %c0_i32 : i32, i32
  }
}

module attributes {stable_mosaic.version = 11 : i64} {
  func.func @_proj_residual_kernel(%arg0: i32, %arg1: memref<64x128xbf16, #tpu.memory_space<vmem>>, %arg2: memref<128x128xbf16, #tpu.memory_space<vmem>>, %arg3: memref<1x128xf32, #tpu.memory_space<vmem>>, %arg4: memref<64x128xf32, #tpu.memory_space<vmem>>, %arg5: memref<64x128xf32, #tpu.memory_space<vmem>>) attributes {dimension_semantics = [#tpu.dimension_semantics<parallel>], iteration_bounds = array<i64: 2>, scalar_prefetch = 0 : i64, scratch_operands = 0 : i64, tpu.core_type = #tpu.core_type<tc>, window_params = [{transform_indices = @transform_0, window_bounds = array<i64: 64, 128>}, {pipeline_mode = #tpu.pipeline_mode<synchronous>, transform_indices = @transform_1, window_bounds = array<i64: 128, 128>}, {pipeline_mode = #tpu.pipeline_mode<synchronous>, transform_indices = @transform_2, window_bounds = array<i64: 1, 128>}, {transform_indices = @transform_3, window_bounds = array<i64: 64, 128>}, {transform_indices = @transform_4, window_bounds = array<i64: 64, 128>}]} {
    %c0 = arith.constant 0 : index
    %c0_0 = arith.constant 0 : index
    %0 = vector.load %arg1[%c0, %c0_0] : memref<64x128xbf16, #tpu.memory_space<vmem>>, vector<64x128xbf16>
    %c0_1 = arith.constant 0 : index
    %c0_2 = arith.constant 0 : index
    %1 = vector.load %arg2[%c0_1, %c0_2] : memref<128x128xbf16, #tpu.memory_space<vmem>>, vector<128x128xbf16>
    %cst = arith.constant dense<0.000000e+00> : vector<64x128xf32>
    %2 = tpu.matmul %0, %1, %cst {dimension_numbers = #tpu.dot_dimension_numbers<[1], [0], [0], [1], [0, 0, 1, 1], [], []>} : vector<64x128xbf16>, vector<128x128xbf16>, vector<64x128xf32> -> vector<64x128xf32>
    %c0_3 = arith.constant 0 : index
    %c0_4 = arith.constant 0 : index
    %3 = vector.load %arg3[%c0_3, %c0_4] : memref<1x128xf32, #tpu.memory_space<vmem>>, vector<1x128xf32>
    %4 = vector.broadcast %3 : vector<1x128xf32> to vector<64x128xf32>
    %5 = arith.addf %2, %4 : vector<64x128xf32>
    %c0_5 = arith.constant 0 : index
    %c0_6 = arith.constant 0 : index
    %6 = vector.load %arg4[%c0_5, %c0_6] : memref<64x128xf32, #tpu.memory_space<vmem>>, vector<64x128xf32>
    %7 = arith.addf %5, %6 : vector<64x128xf32>
    %c0_7 = arith.constant 0 : index
    %c0_8 = arith.constant 0 : index
    %8 = vector.load %arg5[%c0_7, %c0_8] : memref<64x128xf32, #tpu.memory_space<vmem>>, vector<64x128xf32>
    tpu.vector_store %arg5[%c0_7, %c0_8], %7 {strides = array<i32>} : memref<64x128xf32, #tpu.memory_space<vmem>>, vector<64x128xf32>,
    return
  }
  func.func @transform_0(%arg0: i32) -> (i32, i32) {
    %c0_i32 = arith.constant 0 : i32
    %c0_i32_0 = arith.constant 0 : i32
    return %arg0, %c0_i32 : i32, i32
  }
  func.func @transform_1(%arg0: i32) -> (i32, i32) {
    %c0_i32 = arith.constant 0 : i32
    %c0_i32_0 = arith.constant 0 : i32
    %c0_i32_1 = arith.constant 0 : i32
    return %c0_i32, %c0_i32_0 : i32, i32
  }
  func.func @transform_2(%arg0: i32) -> (i32, i32) {
    %c0_i32 = arith.constant 0 : i32
    %c0_i32_0 = arith.constant 0 : i32
    %c0_i32_1 = arith.constant 0 : i32
    return %c0_i32, %c0_i32_0 : i32, i32
  }
  func.func @transform_3(%arg0: i32) -> (i32, i32) {
    %c0_i32 = arith.constant 0 : i32
    %c0_i32_0 = arith.constant 0 : i32
    return %arg0, %c0_i32 : i32, i32
  }
  func.func @transform_4(%arg0: i32) -> (i32, i32) {
    %c0_i32 = arith.constant 0 : i32
    %c0_i32_0 = arith.constant 0 : i32
    return %arg0, %c0_i32 : i32, i32
  }
}

</mosaic_0001>

<llo_original>
// kernel: transformer_block.4
$region0: #{transformer_block.4}
  #allocation0 [shape = 'u32[]', space=smem, size = 0x4, offset = 0x4, fixed_abs, tag = 'smem constant byte address 0x4 - core index']
  #allocation1 [shape = 'u32[144,128]{1,0:T(1,128)}', space=vmem, size = 0x12000, scoped, tag = 'internal scratch']
  %s0 = inlined_call_operand.vmem [shape: f32[128,128], index: 0, kind: input, shape index: {}]
  %s1 = inlined_call_operand.vmem [shape: f32[1,128], index: 1, kind: input, shape index: {}]
  %s2 = inlined_call_operand.vmem [shape: f32[1,128], index: 2, kind: input, shape index: {}]
  %s3 = inlined_call_operand.vmem [shape: bf16[128,384], index: 3, kind: input, shape index: {}]
  %s4 = inlined_call_operand.vmem [shape: bf16[128,384], index: 4, kind: output, shape index: {}]
  %s5 = sld [smem:[#allocation0]]
  $region49: #{transformer_block.4} parent=0
    _
  %s7 = ssub.s32 1, %s5
  %s8 = scalar_select 0, %s7, %s5
  loop: start=0, step=1, limit=4
  $region2: #{transformer_block.4} parent=0 // loop_pre_header
    _
  $region3: #{transformer_block.4} parent=0 // loop_header
    %s10 = sphi 0, %s14
    %p11 = scmp.ge.s32.totalorder %s10, 4
    %s20 = sphi 0, %s22
    %s23 = sphi 0, %s20
    %s24 = sphi 0, %s23
    %s40 = sphi 0, %s24
    %s44 = sphi 0, %s44
    %s46 = sphi 0, %s44
    %s47 = sphi 0, %s46
    %s61 = sphi 0, %s47
    %s65 = sphi 0, %s65
    %s67 = sphi 0, %s65
    %s68 = sphi 0, %s67
    %s82 = sphi 0, %s68
    %s86 = sphi 0, %s86
    %s88 = sphi 0, %s86
    %s89 = sphi 0, %s88
    %s103 = sphi 0, %s89
    %s109 = sphi 0, %s111
    %s112 = sphi 0, %s109
    %s113 = sphi 0, %s112
    %s129 = sphi 0, %s113
  $region4: #{transformer_block.4} parent=0 // loop_header_branch
    %13 = sbr.rel (%p11) target = $region8
  $region5: #{transformer_block.4} parent=0 // loop_body
    %s15 = ssub.s32 %s10, 1
    %s16 = ssub.s32 %s10, 2
    %s17 = sadd.s32 %s10, 1
    %s18 = ssub.s32 %s10, %s17
    %p19 = scmp.eq.s32.totalorder %s18, 0
    %s21 = sadd.s32 %s20, 1
    %s22 = scalar_select %p19, %s20, %s21
    %p25 = pneg %p19
    %p26 = scmp.eq.s32.totalorder %s10, 1
    %p27 = por %p25, %p26
    %p28 = scmp.ne.s32.totalorder %s20, %s23
    %p29 = scmp.eq.s32.totalorder %s10, 0
    %p30 = por %p28, %p29
    %p31 = scmp.ne.s32.totalorder %s20, %s23
    %p32 = scmp.eq.s32.totalorder %s15, 1
    %p33 = por %p31, %p32
    %p34 = scmp.ne.s32.totalorder %s23, %s24
    %p35 = scmp.eq.s32.totalorder %s15, 0
    %p36 = por %p34, %p35
    %p37 = scmp.ne.s32.totalorder %s23, %s24
    %p38 = scmp.eq.s32.totalorder %s16, 1
    %p39 = por %p37, %p38
    %p41 = scmp.ne.s32.totalorder %s24, %s40
    %p42 = scmp.eq.s32.totalorder %s16, 0
    %p43 = por %p41, %p42
    %s45 = sadd.s32 %s44, 1
    %p48 = scmp.eq.s32.totalorder %s10, 1
    %p49 = scmp.ne.s32.totalorder %s44, %s46
    %p50 = scmp.eq.s32.totalorder %s10, 0
    %p51 = por %p49, %p50
    %p52 = scmp.ne.s32.totalorder %s44, %s46
    %p53 = scmp.eq.s32.totalorder %s15, 1
    %p54 = por %p52, %p53
    %p55 = scmp.ne.s32.totalorder %s46, %s47
    %p56 = scmp.eq.s32.totalorder %s15, 0
    %p57 = por %p55, %p56
    %p58 = scmp.ne.s32.totalorder %s46, %s47
    %p59 = scmp.eq.s32.totalorder %s16, 1
    %p60 = por %p58, %p59
    %p62 = scmp.ne.s32.totalorder %s47, %s61
    %p63 = scmp.eq.s32.totalorder %s16, 0
    %p64 = por %p62, %p63
    %s66 = sadd.s32 %s65, 1
    %p69 = scmp.eq.s32.totalorder %s10, 1
    %p70 = scmp.ne.s32.totalorder %s65, %s67
    %p71 = scmp.eq.s32.totalorder %s10, 0
    %p72 = por %p70, %p71
    %p73 = scmp.ne.s32.totalorder %s65, %s67
    %p74 = scmp.eq.s32.totalorder %s15, 1
    %p75 = por %p73, %p74
    %p76 = scmp.ne.s32.totalorder %s67, %s68
    %p77 = scmp.eq.s32.totalorder %s15, 0
    %p78 = por %p76, %p77
    %p79 = scmp.ne.s32.totalorder %s67, %s68
    %p80 = scmp.eq.s32.totalorder %s16, 1
    %p81 = por %p79, %p80
    %p83 = scmp.ne.s32.totalorder %s68, %s82
    %p84 = scmp.eq.s32.totalorder %s16, 0
    %p85 = por %p83, %p84
    %s87 = sadd.s32 %s86, 1
    %p90 = scmp.eq.s32.totalorder %s10, 1
    %p91 = scmp.ne.s32.totalorder %s86, %s88
    %p92 = scmp.eq.s32.totalorder %s10, 0
    %p93 = por %p91, %p92
    %p94 = scmp.ne.s32.totalorder %s86, %s88
    %p95 = scmp.eq.s32.totalorder %s15, 1
    %p96 = por %p94, %p95
    %p97 = scmp.ne.s32.totalorder %s88, %s89
    %p98 = scmp.eq.s32.totalorder %s15, 0
    %p99 = por %p97, %p98
    %p100 = scmp.ne.s32.totalorder %s88, %s89
    %p101 = scmp.eq.s32.totalorder %s16, 1
    %p102 = por %p100, %p101
    %p104 = scmp.ne.s32.totalorder %s89, %s103
    %p105 = scmp.eq.s32.totalorder %s16, 0
    %p106 = por %p104, %p105
    %s107 = ssub.s32 %s10, %s17
    %p108 = scmp.eq.s32.totalorder %s107, 0
    %s110 = sadd.s32 %s109, 1
    %s111 = scalar_select %p108, %s109, %s110
    %p114 = pneg %p108
    %p115 = scmp.eq.s32.totalorder %s10, 1
    %p116 = por %p114, %p115
    %p117 = scmp.ne.s32.totalorder %s109, %s112
    %p118 = scmp.eq.s32.totalorder %s10, 0
    %p119 = por %p117, %p118
    %p120 = scmp.ne.s32.totalorder %s109, %s112
    %p121 = scmp.eq.s32.totalorder %s15, 1
    %p122 = por %p120, %p121
    %p123 = scmp.ne.s32.totalorder %s112, %s113
    %p124 = scmp.eq.s32.totalorder %s15, 0
    %p125 = por %p123, %p124
    %p126 = scmp.ne.s32.totalorder %s112, %s113
    %p127 = scmp.eq.s32.totalorder %s16, 1
    %p128 = por %p126, %p127
    %p130 = scmp.ne.s32.totalorder %s113, %s129
    %p131 = scmp.eq.s32.totalorder %s16, 0
    %p132 = por %p130, %p131
    %p133 = scmp.le.s32.totalorder 1, %s10
    %p134 = scmp.lt.s32.totalorder %s10, 3
    %p135 = pnand %p133, %p134
    %p136 = pneg %p135
    // Predicated region
    $region9: #{transformer_block.4} parent=5 // pred_check
      _
    $region10: #{transformer_block.4} parent=5 // pred_check_branch
      %138 = sbr.rel (%p135) target = $region12
    $region11: #{transformer_block.4} parent=5 // pred_region
      %s139 = ssub.s32 %s10, 1
      // Predicated region
      $region13: #{transformer_block.4} parent=11 // pred_check
        %p140 = pneg %p57
      $region14: #{transformer_block.4} parent=11 // pred_check_branch
        %142 = sbr.rel (%p140) target = $region16
      $region15: #{transformer_block.4} parent=11 // pred_region
        _
      $region16: #{transformer_block.4} parent=11 // pred_fallthru
        _
      // Predicated region
      $region17: #{transformer_block.4} parent=11 // pred_check
        %p143 = pneg %p78
      $region18: #{transformer_block.4} parent=11 // pred_check_branch
        %145 = sbr.rel (%p143) target = $region20
      $region19: #{transformer_block.4} parent=11 // pred_region
        _
      $region20: #{transformer_block.4} parent=11 // pred_fallthru
        _
      // Predicated region
      $region21: #{transformer_block.4} parent=11 // pred_check
        %p146 = pneg %p99
      $region22: #{transformer_block.4} parent=11 // pred_check_branch
        %148 = sbr.rel (%p146) target = $region24
      $region23: #{transformer_block.4} parent=11 // pred_region
        _
      $region24: #{transformer_block.4} parent=11 // pred_fallthru
        _
    $region12: #{transformer_block.4} parent=5 // pred_fallthru
      _
    %p149 = scmp.lt.s32.totalorder %s10, 2
    // Predicated region
    $region25: #{transformer_block.4} parent=5 // pred_check
      %p150 = pneg %p149
    $region26: #{transformer_block.4} parent=5 // pred_check_branch
      %152 = sbr.rel (%p150) target = $region28
    $region27: #{transformer_block.4} parent=5 // pred_region
      // Predicated region
      $region29: #{transformer_block.4} parent=27 // pred_check
        %p153 = pneg %p30
      $region30: #{transformer_block.4} parent=27 // pred_check_branch
        %155 = sbr.rel (%p153) target = $region32
      $region31: #{transformer_block.4} parent=27 // pred_region
        %s156 = smul.u32 8, %s10
        %p157 = scmp.lt.s32.totalorder %s156, 15
        %s158 = scalar_select %p157, %s156, 15
        %s159 = smul.addr %s158, 8
        %s160 = scalar_lea.vmem %s0, %s159
        %s161 = smul.u32 8, %s10
      $region32: #{transformer_block.4} parent=27 // pred_fallthru
        _
    $region28: #{transformer_block.4} parent=5 // pred_fallthru
      _
    %p162 = scmp.le.s32.totalorder 1, %s10
    %p163 = scmp.lt.s32.totalorder %s10, 3
    %p164 = pnand %p162, %p163
    %p165 = pneg %p164
    // Predicated region
    $region33: #{transformer_block.4} parent=5 // pred_check
      _
    $region34: #{transformer_block.4} parent=5 // pred_check_branch
      %167 = sbr.rel (%p164) target = $region36
    $region35: #{transformer_block.4} parent=5 // pred_region
      %s168 = ssub.s32 %s10, 1
      %s169 = smul.u32 8, %s15
      %p170 = scmp.lt.s32.totalorder %s169, 15
      %s171 = scalar_select %p170, %s169, 15
      %s172 = smul.addr %s171, 8
      %s173 = scalar_lea.vmem %s0, %s172
      %p174 = pneg %p36
      %p175 = pneg %p33
      %p176 = pneg %p57
      %p177 = pneg %p54
      %p178 = pneg %p78
      %p179 = pneg %p75
      %p180 = pneg %p99
      %p181 = pneg %p96
      %p182 = pneg %p125
      %p183 = pneg %p122
      %s184 = smul.u32 8, %s15
      %p185 = scmp.lt.s32.totalorder %s184, 15
      %s186 = scalar_select %p185, %s184, 15
      %s187 = smul.addr %s186, 3
      %s188 = smul.addr %s187, 4
      %s189 = scalar_lea.vmem %s4, %s188
      %s190 = smul.u32 8, %s15
      %p191 = scmp.lt.s32.totalorder %s190, 15
      %s192 = scalar_select %p191, %s190, 15
      %s193 = smul.addr %s192, 8
      %s194 = scalar_lea.vmem %s0, %s193
      %s195 = smul.u32 8, %s15
      %s196 = smul.u32 8, %s15
      %p197 = scmp.lt.s32.totalorder %s196, 15
      %s198 = scalar_select %p197, %s196, 15
      %s199 = smul.addr %s198, 3
      %s200 = smul.addr %s199, 4
      %s201 = scalar_lea.vmem %s4, %s200
      %s202 = smul.u32 8, %s15
      %v204 = vld [vmem:[%s194] sm:$0xff]
      %v205 = vld [vmem:[%s194 + $0x8] sm:$0xff]
      %v206 = vld [vmem:[%s194 + $0x10] sm:$0xff]
      %v207 = vld [vmem:[%s194 + $0x18] sm:$0xff]
      %v208 = vld [vmem:[%s194 + $0x20] sm:$0xff]
      %v209 = vld [vmem:[%s194 + $0x28] sm:$0xff]
      %v210 = vld [vmem:[%s194 + $0x30] sm:$0xff]
      %v211 = vld [vmem:[%s194 + $0x38] sm:$0xff]
      %212 = vadd.xlane.f32.xlu0 %v204
      %v213 = vpop.xlane.xlu0 %212
      %214 = vadd.xlane.f32.xlu0 %v205
      %v215 = vpop.xlane.xlu0 %214
      %216 = vadd.xlane.f32.xlu0 %v206
      %v217 = vpop.xlane.xlu0 %216
      %218 = vadd.xlane.f32.xlu0 %v207
      %v219 = vpop.xlane.xlu0 %218
      %220 = vadd.xlane.f32.xlu0 %v208
      %v221 = vpop.xlane.xlu0 %220
      %222 = vadd.xlane.f32.xlu0 %v209
      %v223 = vpop.xlane.xlu0 %222
      %224 = vadd.xlane.f32.xlu0 %v210
      %v225 = vpop.xlane.xlu0 %224
      %226 = vadd.xlane.f32.xlu0 %v211
      %v227 = vpop.xlane.xlu0 %226
      %v228 = vrcp.pop 128.0
      %v229 = vmul.f32 %v213, %v228
      %v230 = vmul.f32 %v215, %v228
      %v231 = vmul.f32 %v217, %v228
      %v232 = vmul.f32 %v219, %v228
      %v233 = vmul.f32 %v221, %v228
      %v234 = vmul.f32 %v223, %v228
      %v235 = vmul.f32 %v225, %v228
      %v236 = vmul.f32 %v227, %v228
      %v237 = vsub.f32 %v204, %v229
      %v238 = vsub.f32 %v205, %v230
      %v239 = vsub.f32 %v206, %v231
      %v240 = vsub.f32 %v207, %v232
      %v241 = vsub.f32 %v208, %v233
      %v242 = vsub.f32 %v209, %v234
      %v243 = vsub.f32 %v210, %v235
      %v244 = vsub.f32 %v211, %v236
      %v245 = vmul.f32 %v237, %v237
      %v246 = vmul.f32 %v238, %v238
      %v247 = vmul.f32 %v239, %v239
      %v248 = vmul.f32 %v240, %v240
      %v249 = vmul.f32 %v241, %v241
      %v250 = vmul.f32 %v242, %v242
      %v251 = vmul.f32 %v243, %v243
      %v252 = vmul.f32 %v244, %v244
      %253 = vadd.xlane.f32.xlu0 %v245
      %v254 = vpop.xlane.xlu0 %253
      %255 = vadd.xlane.f32.xlu0 %v246
      %v256 = vpop.xlane.xlu0 %255
      %257 = vadd.xlane.f32.xlu0 %v247
      %v258 = vpop.xlane.xlu0 %257
      %259 = vadd.xlane.f32.xlu0 %v248
      %v260 = vpop.xlane.xlu0 %259
      %261 = vadd.xlane.f32.xlu0 %v249
      %v262 = vpop.xlane.xlu0 %261
      %263 = vadd.xlane.f32.xlu0 %v250
      %v264 = vpop.xlane.xlu0 %263
      %265 = vadd.xlane.f32.xlu0 %v251
      %v266 = vpop.xlane.xlu0 %265
      %267 = vadd.xlane.f32.xlu0 %v252
      %v268 = vpop.xlane.xlu0 %267
      %v269 = vmul.f32 %v254, %v228
      %v270 = vmul.f32 %v256, %v228
      %v271 = vmul.f32 %v258, %v228
      %v272 = vmul.f32 %v260, %v228
      %v273 = vmul.f32 %v262, %v228
      %v274 = vmul.f32 %v264, %v228
      %v275 = vmul.f32 %v266, %v228
      %v276 = vmul.f32 %v268, %v228
      %v277 = vadd.f32 %v269, 1e-05
      %v278 = vadd.f32 %v270, 1e-05
      %v279 = vadd.f32 %v271, 1e-05
      %v280 = vadd.f32 %v272, 1e-05
      %v281 = vadd.f32 %v273, 1e-05
      %v282 = vadd.f32 %v274, 1e-05
      %v283 = vadd.f32 %v275, 1e-05
      %v284 = vadd.f32 %v276, 1e-05
      %v285 = vrsqrt.pop %v277
      %v286 = vrsqrt.pop %v278
      %v287 = vrsqrt.pop %v279
      %v288 = vrsqrt.pop %v280
      %v289 = vrsqrt.pop %v281
      %v290 = vrsqrt.pop %v282
      %v291 = vrsqrt.pop %v283
      %v292 = vrsqrt.pop %v284
      %v293 = vmul.f32 %v237, %v285
      %v294 = vmul.f32 %v238, %v286
      %v295 = vmul.f32 %v239, %v287
      %v296 = vmul.f32 %v240, %v288
      %v297 = vmul.f32 %v241, %v289
      %v298 = vmul.f32 %v242, %v290
      %v299 = vmul.f32 %v243, %v291
      %v300 = vmul.f32 %v244, %v292
      %v301 = vld [vmem:[%s1] sm:$0x1]
      %v303 = vlaneseq
      %v304 = vshrl.u32 %v303, 7
      %v305 = vsub.s32 0, %v304
      %v306 = vrot.slane %v301, %v305
      %v308 = vmul.f32 %v293, %v306
      %v309 = vmul.f32 %v294, %v306
      %v310 = vmul.f32 %v295, %v306
      %v311 = vmul.f32 %v296, %v306
      %v312 = vmul.f32 %v297, %v306
      %v313 = vmul.f32 %v298, %v306
      %v314 = vmul.f32 %v299, %v306
      %v315 = vmul.f32 %v300, %v306
      %v316 = vld [vmem:[%s2] sm:$0x1]
      %v318 = vlaneseq
      %v319 = vshrl.u32 %v318, 7
      %v320 = vsub.s32 0, %v319
      %v321 = vrot.slane %v316, %v320
      %v323 = vadd.f32 %v308, %v321
      %v324 = vadd.f32 %v309, %v321
      %v325 = vadd.f32 %v310, %v321
      %v326 = vadd.f32 %v311, %v321
      %v327 = vadd.f32 %v312, %v321
      %v328 = vadd.f32 %v313, %v321
      %v329 = vadd.f32 %v314, %v321
      %v330 = vadd.f32 %v315, %v321
      %v331 = vpack.c.bf16 %v324, %v323
      %v332 = vpack.c.bf16 %v326, %v325
      %v333 = vpack.c.bf16 %v328, %v327
      %v334 = vpack.c.bf16 %v330, %v329
      %v335 = vld [vmem:[%s3] sm:$0xff]
      %v336 = vld [vmem:[%s3 + $0x8] sm:$0xf]
      %v337 = vld [vmem:[%s3 + $0xc] sm:$0xff]
      %v338 = vld [vmem:[%s3 + $0x14] sm:$0xf]
      %v339 = vld [vmem:[%s3 + $0x18] sm:$0xff]
      %v340 = vld [vmem:[%s3 + $0x20] sm:$0xf]
      %v341 = vld [vmem:[%s3 + $0x24] sm:$0xff]
      %v342 = vld [vmem:[%s3 + $0x2c] sm:$0xf]
      %v343 = vld [vmem:[%s3 + $0x30] sm:$0xff]
      %v344 = vld [vmem:[%s3 + $0x38] sm:$0xf]
      %v345 = vld [vmem:[%s3 + $0x3c] sm:$0xff]
      %v346 = vld [vmem:[%s3 + $0x44] sm:$0xf]
      %v347 = vld [vmem:[%s3 + $0x48] sm:$0xff]
      %v348 = vld [vmem:[%s3 + $0x50] sm:$0xf]
      %v349 = vld [vmem:[%s3 + $0x54] sm:$0xff]
      %v350 = vld [vmem:[%s3 + $0x5c] sm:$0xf]
      %v351 = vld [vmem:[%s3 + $0x60] sm:$0xff]
      %v352 = vld [vmem:[%s3 + $0x68] sm:$0xf]
      %v353 = vld [vmem:[%s3 + $0x6c] sm:$0xff]
      %v354 = vld [vmem:[%s3 + $0x74] sm:$0xf]
      %v355 = vld [vmem:[%s3 + $0x78] sm:$0xff]
      %v356 = vld [vmem:[%s3 + $0x80] sm:$0xf]
      %v357 = vld [vmem:[%s3 + $0x84] sm:$0xff]
      %v358 = vld [vmem:[%s3 + $0x8c] sm:$0xf]
      %v359 = vld [vmem:[%s3 + $0x90] sm:$0xff]
      %v360 = vld [vmem:[%s3 + $0x98] sm:$0xf]
      %v361 = vld [vmem:[%s3 + $0x9c] sm:$0xff]
      %v362 = vld [vmem:[%s3 + $0xa4] sm:$0xf]
      %v363 = vld [vmem:[%s3 + $0xa8] sm:$0xff]
      %v364 = vld [vmem:[%s3 + $0xb0] sm:$0xf]
      %v365 = vld [vmem:[%s3 + $0xb4] sm:$0xff]
      %v366 = vld [vmem:[%s3 + $0xbc] sm:$0xf]
      %v399 = vunpack.c.l.b16 %v335
      %v400 = vunpack.c.h.b16 %v335
      %v401 = vunpack.c.l.b16 %v336
      %v402 = vunpack.c.l.b16 %v337
      %v403 = vunpack.c.h.b16 %v337
      %v404 = vunpack.c.l.b16 %v338
      %v405 = vunpack.c.l.b16 %v339
      %v406 = vunpack.c.h.b16 %v339
      %v407 = vunpack.c.l.b16 %v340
      %v408 = vunpack.c.l.b16 %v341
      %v409 = vunpack.c.h.b16 %v341
      %v410 = vunpack.c.l.b16 %v342
      %v411 = vunpack.c.l.b16 %v343
      %v412 = vunpack.c.h.b16 %v343
      %v413 = vunpack.c.l.b16 %v344
      %v414 = vunpack.c.l.b16 %v345
      %v415 = vunpack.c.h.b16 %v345
      %v416 = vunpack.c.l.b16 %v346
      %v417 = vunpack.c.l.b16 %v347
      %v418 = vunpack.c.h.b16 %v347
      %v419 = vunpack.c.l.b16 %v348
      %v420 = vunpack.c.l.b16 %v349
      %v421 = vunpack.c.h.b16 %v349
      %v422 = vunpack.c.l.b16 %v350
      %v423 = vunpack.c.l.b16 %v351
      %v424 = vunpack.c.h.b16 %v351
      %v425 = vunpack.c.l.b16 %v352
      %v426 = vunpack.c.l.b16 %v353
      %v427 = vunpack.c.h.b16 %v353
      %v428 = vunpack.c.l.b16 %v354
      %v429 = vunpack.c.l.b16 %v355
      %v430 = vunpack.c.h.b16 %v355
      %v431 = vunpack.c.l.b16 %v356
      %v432 = vunpack.c.l.b16 %v357
      %v433 = vunpack.c.h.b16 %v357
      %v434 = vunpack.c.l.b16 %v358
      %v435 = vunpack.c.l.b16 %v359
      %v436 = vunpack.c.h.b16 %v359
      %v437 = vunpack.c.l.b16 %v360
      %v438 = vunpack.c.l.b16 %v361
      %v439 = vunpack.c.h.b16 %v361
      %v440 = vunpack.c.l.b16 %v362
      %v441 = vunpack.c.l.b16 %v363
      %v442 = vunpack.c.h.b16 %v363
      %v443 = vunpack.c.l.b16 %v364
      %v444 = vunpack.c.l.b16 %v365
      %v445 = vunpack.c.h.b16 %v365
      %v446 = vunpack.c.l.b16 %v366
      %v447 = vpack.c.b16 %v402, %v399
      %v448 = vpack.c.b16 %v403, %v400
      %v449 = vpack.c.b16 %v404, %v401
      %v450 = vpack.c.b16 %v408, %v405
      %v451 = vpack.c.b16 %v409, %v406
      %v452 = vpack.c.b16 %v410, %v407
      %v453 = vpack.c.b16 %v414, %v411
      %v454 = vpack.c.b16 %v415, %v412
      %v455 = vpack.c.b16 %v416, %v413
      %v456 = vpack.c.b16 %v420, %v417
      %v457 = vpack.c.b16 %v421, %v418
      %v458 = vpack.c.b16 %v422, %v419
      %v459 = vpack.c.b16 %v426, %v423
      %v460 = vpack.c.b16 %v427, %v424
      %v461 = vpack.c.b16 %v428, %v425
      %v462 = vpack.c.b16 %v432, %v429
      %v463 = vpack.c.b16 %v433, %v430
      %v464 = vpack.c.b16 %v434, %v431
      %v465 = vpack.c.b16 %v438, %v435
      %v466 = vpack.c.b16 %v439, %v436
      %v467 = vpack.c.b16 %v440, %v437
      %v468 = vpack.c.b16 %v444, %v441
      %v469 = vpack.c.b16 %v445, %v442
      %v470 = vpack.c.b16 %v446, %v443
      %495 = vmatprep.subr.bf16.mxu0 %v448
      %496 = vmatpush1.bf16.msra.mxu0 %v447
      %497 = vmatprep.subr.bf16.mxu0 %v451
      %498 = vmatpush1.bf16.msra.mxu0 %v450
      %499 = vmatprep.subr.bf16.mxu0 %v454
      %500 = vmatpush1.bf16.msra.mxu0 %v453
      %501 = vmatprep.subr.bf16.mxu0 %v457
      %502 = vmatpush1.bf16.msra.mxu0 %v456
      %503 = vmatprep.subr.bf16.mxu0 %v460
      %504 = vmatpush1.bf16.msra.mxu0 %v459
      %505 = vmatprep.subr.bf16.mxu0 %v463
      %506 = vmatpush1.bf16.msra.mxu0 %v462
      %507 = vmatprep.subr.bf16.mxu0 %v466
      %508 = vmatpush1.bf16.msra.mxu0 %v465
      %509 = vmatprep.subr.bf16.mxu0 %v469
      %510 = vmatpush1.bf16.msra.mxu0 %v468
      %511 = vmatprep.subr.bf16.mxu0 0
      %512 = vmatpush1.bf16.msra.mxu0 0
      %513 = vmatprep.subr.bf16.mxu0 0
      %514 = vmatpush1.bf16.msra.mxu0 0
      %515 = vmatprep.subr.bf16.mxu0 0
      %516 = vmatpush1.bf16.msra.mxu0 0
      %517 = vmatprep.subr.bf16.mxu0 0
      %518 = vmatpush1.bf16.msra.mxu0 0
      %519 = vmatprep.subr.bf16.mxu0 0
      %520 = vmatpush1.bf16.msra.mxu0 0
      %521 = vmatprep.subr.bf16.mxu0 0
      %522 = vmatpush1.bf16.msra.mxu0 0
      %523 = vmatprep.subr.bf16.mxu0 0
      %524 = vmatpush1.bf16.msra.mxu0 0
      %525 = vmatprep.subr.bf16.mxu0 0
      %526 = vmatpush1.bf16.msra.mxu0 0
      %527 = vmatprep.mubr.bf16.mxu0 0
      %528 = vmatmul.mubr.bf16.gmra.mrb[0].mxu0 %v331
      %v529 = vpop.f32.mrb[0].mxu0
      %v530 = vadd.f32 0.0, %v529
      %v531 = vpop.f32.mrb[0].mxu0
      %v532 = vadd.f32 0.0, %v531
      %v533 = vpop.f32.mrb[0].mxu0
      %v534 = vadd.f32 0.0, %v533
      %v535 = vpop.f32.mrb[0].mxu0
      %v536 = vadd.f32 0.0, %v535
      %537 = vmatprep.mubr.bf16.mxu0 0
      %538 = vmatmul.mubr.bf16.gmra.mrb[0].mxu0 %v332
      %v539 = vpop.f32.mrb[0].mxu0
      %v540 = vadd.f32 0.0, %v539
      %v541 = vpop.f32.mrb[0].mxu0
      %v542 = vadd.f32 0.0, %v541
      %v543 = vpop.f32.mrb[0].mxu0
      %v544 = vadd.f32 0.0, %v543
      %v545 = vpop.f32.mrb[0].mxu0
      %v546 = vadd.f32 0.0, %v545
      %547 = vmatprep.mubr.bf16.mxu0 0
      %548 = vmatmul.mubr.bf16.gmra.mrb[0].mxu0 %v333
      %v549 = vpop.f32.mrb[0].mxu0
      %v550 = vadd.f32 0.0, %v549
      %v551 = vpop.f32.mrb[0].mxu0
      %v552 = vadd.f32 0.0, %v551
      %v553 = vpop.f32.mrb[0].mxu0
      %v554 = vadd.f32 0.0, %v553
      %v555 = vpop.f32.mrb[0].mxu0
      %v556 = vadd.f32 0.0, %v555
      %557 = vmatprep.mubr.bf16.mxu0 0
      %558 = vmatmul.mubr.bf16.gmra.mrb[0].mxu0 %v334
      %v559 = vpop.f32.mrb[0].mxu0
      %v560 = vadd.f32 0.0, %v559
      %v561 = vpop.f32.mrb[0].mxu0
      %v562 = vadd.f32 0.0, %v561
      %v563 = vpop.f32.mrb[0].mxu0
      %v564 = vadd.f32 0.0, %v563
      %v565 = vpop.f32.mrb[0].mxu0
      %v566 = vadd.f32 0.0, %v565
      %567 = vdwg.mxu0
      %568 = vmatprep.subr.bf16.mxu0 0
      %569 = vmatpush1.bf16.msra.mxu0 %v449
      %570 = vmatprep.subr.bf16.mxu0 0
      %571 = vmatpush1.bf16.msra.mxu0 %v452
      %572 = vmatprep.subr.bf16.mxu0 0
      %573 = vmatpush1.bf16.msra.mxu0 %v455
      %574 = vmatprep.subr.bf16.mxu0 0
      %575 = vmatpush1.bf16.msra.mxu0 %v458
      %576 = vmatprep.subr.bf16.mxu0 0
      %577 = vmatpush1.bf16.msra.mxu0 %v461
      %578 = vmatprep.subr.bf16.mxu0 0
      %579 = vmatpush1.bf16.msra.mxu0 %v464
      %580 = vmatprep.subr.bf16.mxu0 0
      %581 = vmatpush1.bf16.msra.mxu0 %v467
      %582 = vmatprep.subr.bf16.mxu0 0
      %583 = vmatpush1.bf16.msra.mxu0 %v470
      %584 = vmatprep.subr.bf16.mxu0 0
      %585 = vmatpush1.bf16.msra.mxu0 0
      %586 = vmatprep.subr.bf16.mxu0 0
      %587 = vmatpush1.bf16.msra.mxu0 0
      %588 = vmatprep.subr.bf16.mxu0 0
      %589 = vmatpush1.bf16.msra.mxu0 0
      %590 = vmatprep.subr.bf16.mxu0 0
      %591 = vmatpush1.bf16.msra.mxu0 0
      %592 = vmatprep.subr.bf16.mxu0 0
      %593 = vmatpush1.bf16.msra.mxu0 0
      %594 = vmatprep.subr.bf16.mxu0 0
      %595 = vmatpush1.bf16.msra.mxu0 0
      %596 = vmatprep.subr.bf16.mxu0 0
      %597 = vmatpush1.bf16.msra.mxu0 0
      %598 = vmatprep.subr.bf16.mxu0 0
      %599 = vmatpush1.bf16.msra.mxu0 0
      %600 = vmatprep.mubr.bf16.mxu0 0
      %601 = vmatmul.mubr.bf16.gmra.mrb[0].mxu0 %v331
      %v602 = vpop.f32.mrb[0].mxu0
      %v603 = vadd.f32 0.0, %v602
      %v604 = vpop.f32.mrb[0].mxu0
      %v605 = vpop.f32.mrb[0].mxu0
      %v606 = vadd.f32 0.0, %v605
      %v607 = vpop.f32.mrb[0].mxu0
      %608 = vmatprep.mubr.bf16.mxu0 0
      %609 = vmatmul.mubr.bf16.gmra.mrb[0].mxu0 %v332
      %v610 = vpop.f32.mrb[0].mxu0
      %v611 = vadd.f32 0.0, %v610
      %v612 = vpop.f32.mrb[0].mxu0
      %v613 = vpop.f32.mrb[0].mxu0
      %v614 = vadd.f32 0.0, %v613
      %v615 = vpop.f32.mrb[0].mxu0
      %616 = vmatprep.mubr.bf16.mxu0 0
      %617 = vmatmul.mubr.bf16.gmra.mrb[0].mxu0 %v333
      %v618 = vpop.f32.mrb[0].mxu0
      %v619 = vadd.f32 0.0, %v618
      %v620 = vpop.f32.mrb[0].mxu0
      %v621 = vpop.f32.mrb[0].mxu0
      %v622 = vadd.f32 0.0, %v621
      %v623 = vpop.f32.mrb[0].mxu0
      %624 = vmatprep.mubr.bf16.mxu0 0
      %625 = vmatmul.mubr.bf16.gmra.mrb[0].mxu0 %v334
      %v626 = vpop.f32.mrb[0].mxu0
      %v627 = vadd.f32 0.0, %v626
      %v628 = vpop.f32.mrb[0].mxu0
      %v629 = vpop.f32.mrb[0].mxu0
      %v630 = vadd.f32 0.0, %v629
      %v631 = vpop.f32.mrb[0].mxu0
      %632 = vdwg.mxu0
      %v633 = vpack.c.bf16 %v534, %v530
      %v634 = vpack.c.bf16 %v536, %v532
      %v635 = vpack.c.bf16 %v606, %v603
      %v636 = vpack.c.bf16 %v544, %v540
      %v637 = vpack.c.bf16 %v546, %v542
      %v638 = vpack.c.bf16 %v614, %v611
      %v639 = vpack.c.bf16 %v554, %v550
      %v640 = vpack.c.bf16 %v556, %v552
      %v641 = vpack.c.bf16 %v622, %v619
      %v642 = vpack.c.bf16 %v564, %v560
      %v643 = vpack.c.bf16 %v566, %v562
      %v644 = vpack.c.bf16 %v630, %v627
      %v657 = vunpack.c.l.b16 %v633
      %v658 = vunpack.c.l.b16 %v634
      %v659 = vunpack.c.l.b16 %v635
      %v660 = vunpack.c.h.b16 %v633
      %v661 = vunpack.c.h.b16 %v634
      %v662 = vunpack.c.h.b16 %v635
      %v663 = vunpack.c.l.b16 %v636
      %v664 = vunpack.c.l.b16 %v637
      %v665 = vunpack.c.l.b16 %v638
      %v666 = vunpack.c.h.b16 %v636
      %v667 = vunpack.c.h.b16 %v637
      %v668 = vunpack.c.h.b16 %v638
      %v669 = vunpack.c.l.b16 %v639
      %v670 = vunpack.c.l.b16 %v640
      %v671 = vunpack.c.l.b16 %v641
      %v672 = vunpack.c.h.b16 %v639
      %v673 = vunpack.c.h.b16 %v640
      %v674 = vunpack.c.h.b16 %v641
      %v675 = vunpack.c.l.b16 %v642
      %v676 = vunpack.c.l.b16 %v643
      %v677 = vunpack.c.l.b16 %v644
      %v678 = vunpack.c.h.b16 %v642
      %v679 = vunpack.c.h.b16 %v643
      %v680 = vunpack.c.h.b16 %v644
      %v681 = vpack.c.b16 %v658, %v657
      %v682 = vpack.c.b16 %v659, %v659
      %v683 = vpack.c.b16 %v661, %v660
      %v684 = vpack.c.b16 %v662, %v662
      %v685 = vpack.c.b16 %v664, %v663
      %v686 = vpack.c.b16 %v665, %v665
      %v687 = vpack.c.b16 %v667, %v666
      %v688 = vpack.c.b16 %v668, %v668
      %v689 = vpack.c.b16 %v670, %v669
      %v690 = vpack.c.b16 %v671, %v671
      %v691 = vpack.c.b16 %v673, %v672
      %v692 = vpack.c.b16 %v674, %v674
      %v693 = vpack.c.b16 %v676, %v675
      %v694 = vpack.c.b16 %v677, %v677
      %v695 = vpack.c.b16 %v679, %v678
      %v696 = vpack.c.b16 %v680, %v680
      %713 = vst [vmem:[%s201] sm:$0xff] %v681
      %714 = vst [vmem:[%s201 + $0x8] sm:$0xf] %v682
      %715 = vst [vmem:[%s201 + $0xc] sm:$0xff] %v683
      %716 = vst [vmem:[%s201 + $0x14] sm:$0xf] %v684
      %717 = vst [vmem:[%s201 + $0x18] sm:$0xff] %v685
      %718 = vst [vmem:[%s201 + $0x20] sm:$0xf] %v686
      %719 = vst [vmem:[%s201 + $0x24] sm:$0xff] %v687
      %720 = vst [vmem:[%s201 + $0x2c] sm:$0xf] %v688
      %721 = vst [vmem:[%s201 + $0x30] sm:$0xff] %v689
      %722 = vst [vmem:[%s201 + $0x38] sm:$0xf] %v690
      %723 = vst [vmem:[%s201 + $0x3c] sm:$0xff] %v691
      %724 = vst [vmem:[%s201 + $0x44] sm:$0xf] %v692
      %725 = vst [vmem:[%s201 + $0x48] sm:$0xff] %v693
      %726 = vst [vmem:[%s201 + $0x50] sm:$0xf] %v694
      %727 = vst [vmem:[%s201 + $0x54] sm:$0xff] %v695
      %728 = vst [vmem:[%s201 + $0x5c] sm:$0xf] %v696
      %s729 = smul.u32 8, %s15
      %p730 = scmp.lt.s32.totalorder %s729, 15
      %s731 = scalar_select %p730, %s729, 15
      %s732 = smul.addr %s731, 3
      %s733 = smul.addr %s732, 4
      %s734 = scalar_lea.vmem %s4, %s733
      // Predicated region
      $region37: #{transformer_block.4} parent=35 // pred_check
        %p735 = pneg %p122
      $region38: #{transformer_block.4} parent=35 // pred_check_branch
        %737 = sbr.rel (%p735) target = $region40
      $region39: #{transformer_block.4} parent=35 // pred_region
        %s738 = smul.u32 8, %s15
      $region40: #{transformer_block.4} parent=35 // pred_fallthru
        _
    $region36: #{transformer_block.4} parent=5 // pred_fallthru
      _
    %p739 = scmp.le.s32.totalorder 2, %s10
    // Predicated region
    $region41: #{transformer_block.4} parent=5 // pred_check
      %p740 = pneg %p739
    $region42: #{transformer_block.4} parent=5 // pred_check_branch
      %742 = sbr.rel (%p740) target = $region44
    $region43: #{transformer_block.4} parent=5 // pred_region
      %s743 = ssub.s32 %s10, 2
      // Predicated region
      $region45: #{transformer_block.4} parent=43 // pred_check
        %p744 = pneg %p128
      $region46: #{transformer_block.4} parent=43 // pred_check_branch
        %746 = sbr.rel (%p744) target = $region48
      $region47: #{transformer_block.4} parent=43 // pred_region
        %s747 = smul.u32 8, %s16
        %p748 = scmp.lt.s32.totalorder %s747, 15
        %s749 = scalar_select %p748, %s747, 15
        %s750 = smul.addr %s749, 3
        %s751 = smul.addr %s750, 4
        %s752 = scalar_lea.vmem %s4, %s751
      $region48: #{transformer_block.4} parent=43 // pred_fallthru
        _
    $region44: #{transformer_block.4} parent=5 // pred_fallthru
      _
  $region6: #{transformer_block.4} parent=0 // loop_footer
    %s14 = sadd.s32 1, %s10
  $region7: #{transformer_block.4} parent=0 // loop_footer_branch
    %9 = sbr.rel target = $region3
  $region8: #{transformer_block.4} parent=0 // loop_exit
    _

// kernel: transformer_block.6
$region0: #{transformer_block.6}
  #allocation0 [shape = 'u32[]', space=smem, size = 0x4, offset = 0x4, fixed_abs, tag = 'smem constant byte address 0x4 - core index']
  #allocation1 [shape = 'u32[144,128]{1,0:T(1,128)}', space=vmem, size = 0x12000, scoped, tag = 'internal scratch']
  %s0 = inlined_call_operand.vmem [shape: bf16[128,128], index: 0, kind: input, shape index: {}]
  %s1 = inlined_call_operand.vmem [shape: bf16[128,128], index: 1, kind: input, shape index: {}]
  %s2 = inlined_call_operand.vmem [shape: f32[1,128], index: 2, kind: input, shape index: {}]
  %s3 = inlined_call_operand.vmem [shape: f32[128,128], index: 3, kind: input, shape index: {}]
  %s4 = inlined_call_operand.vmem [shape: f32[128,128], index: 4, kind: output, shape index: {}]
  %s5 = sld [smem:[#allocation0]]
  $region49: #{transformer_block.6} parent=0
    _
  %s7 = ssub.s32 1, %s5
  %s8 = scalar_select 0, %s7, %s5
  loop: start=0, step=1, limit=4
  $region2: #{transformer_block.6} parent=0 // loop_pre_header
    _
  $region3: #{transformer_block.6} parent=0 // loop_header
    %s10 = sphi 0, %s14
    %p11 = scmp.ge.s32.totalorder %s10, 4
    %s20 = sphi 0, %s22
    %s23 = sphi 0, %s20
    %s24 = sphi 0, %s23
    %s40 = sphi 0, %s24
    %s44 = sphi 0, %s44
    %s46 = sphi 0, %s44
    %s47 = sphi 0, %s46
    %s61 = sphi 0, %s47
    %s65 = sphi 0, %s65
    %s67 = sphi 0, %s65
    %s68 = sphi 0, %s67
    %s82 = sphi 0, %s68
    %s88 = sphi 0, %s90
    %s91 = sphi 0, %s88
    %s92 = sphi 0, %s91
    %s108 = sphi 0, %s92
    %s114 = sphi 0, %s116
    %s117 = sphi 0, %s114
    %s118 = sphi 0, %s117
    %s134 = sphi 0, %s118
  $region4: #{transformer_block.6} parent=0 // loop_header_branch
    %13 = sbr.rel (%p11) target = $region8
  $region5: #{transformer_block.6} parent=0 // loop_body
    %s15 = ssub.s32 %s10, 1
    %s16 = ssub.s32 %s10, 2
    %s17 = sadd.s32 %s10, 1
    %s18 = ssub.s32 %s10, %s17
    %p19 = scmp.eq.s32.totalorder %s18, 0
    %s21 = sadd.s32 %s20, 1
    %s22 = scalar_select %p19, %s20, %s21
    %p25 = pneg %p19
    %p26 = scmp.eq.s32.totalorder %s10, 1
    %p27 = por %p25, %p26
    %p28 = scmp.ne.s32.totalorder %s20, %s23
    %p29 = scmp.eq.s32.totalorder %s10, 0
    %p30 = por %p28, %p29
    %p31 = scmp.ne.s32.totalorder %s20, %s23
    %p32 = scmp.eq.s32.totalorder %s15, 1
    %p33 = por %p31, %p32
    %p34 = scmp.ne.s32.totalorder %s23, %s24
    %p35 = scmp.eq.s32.totalorder %s15, 0
    %p36 = por %p34, %p35
    %p37 = scmp.ne.s32.totalorder %s23, %s24
    %p38 = scmp.eq.s32.totalorder %s16, 1
    %p39 = por %p37, %p38
    %p41 = scmp.ne.s32.totalorder %s24, %s40
    %p42 = scmp.eq.s32.totalorder %s16, 0
    %p43 = por %p41, %p42
    %s45 = sadd.s32 %s44, 1
    %p48 = scmp.eq.s32.totalorder %s10, 1
    %p49 = scmp.ne.s32.totalorder %s44, %s46
    %p50 = scmp.eq.s32.totalorder %s10, 0
    %p51 = por %p49, %p50
    %p52 = scmp.ne.s32.totalorder %s44, %s46
    %p53 = scmp.eq.s32.totalorder %s15, 1
    %p54 = por %p52, %p53
    %p55 = scmp.ne.s32.totalorder %s46, %s47
    %p56 = scmp.eq.s32.totalorder %s15, 0
    %p57 = por %p55, %p56
    %p58 = scmp.ne.s32.totalorder %s46, %s47
    %p59 = scmp.eq.s32.totalorder %s16, 1
    %p60 = por %p58, %p59
    %p62 = scmp.ne.s32.totalorder %s47, %s61
    %p63 = scmp.eq.s32.totalorder %s16, 0
    %p64 = por %p62, %p63
    %s66 = sadd.s32 %s65, 1
    %p69 = scmp.eq.s32.totalorder %s10, 1
    %p70 = scmp.ne.s32.totalorder %s65, %s67
    %p71 = scmp.eq.s32.totalorder %s10, 0
    %p72 = por %p70, %p71
    %p73 = scmp.ne.s32.totalorder %s65, %s67
    %p74 = scmp.eq.s32.totalorder %s15, 1
    %p75 = por %p73, %p74
    %p76 = scmp.ne.s32.totalorder %s67, %s68
    %p77 = scmp.eq.s32.totalorder %s15, 0
    %p78 = por %p76, %p77
    %p79 = scmp.ne.s32.totalorder %s67, %s68
    %p80 = scmp.eq.s32.totalorder %s16, 1
    %p81 = por %p79, %p80
    %p83 = scmp.ne.s32.totalorder %s68, %s82
    %p84 = scmp.eq.s32.totalorder %s16, 0
    %p85 = por %p83, %p84
    %s86 = ssub.s32 %s10, %s17
    %p87 = scmp.eq.s32.totalorder %s86, 0
    %s89 = sadd.s32 %s88, 1
    %s90 = scalar_select %p87, %s88, %s89
    %p93 = pneg %p87
    %p94 = scmp.eq.s32.totalorder %s10, 1
    %p95 = por %p93, %p94
    %p96 = scmp.ne.s32.totalorder %s88, %s91
    %p97 = scmp.eq.s32.totalorder %s10, 0
    %p98 = por %p96, %p97
    %p99 = scmp.ne.s32.totalorder %s88, %s91
    %p100 = scmp.eq.s32.totalorder %s15, 1
    %p101 = por %p99, %p100
    %p102 = scmp.ne.s32.totalorder %s91, %s92
    %p103 = scmp.eq.s32.totalorder %s15, 0
    %p104 = por %p102, %p103
    %p105 = scmp.ne.s32.totalorder %s91, %s92
    %p106 = scmp.eq.s32.totalorder %s16, 1
    %p107 = por %p105, %p106
    %p109 = scmp.ne.s32.totalorder %s92, %s108
    %p110 = scmp.eq.s32.totalorder %s16, 0
    %p111 = por %p109, %p110
    %s112 = ssub.s32 %s10, %s17
    %p113 = scmp.eq.s32.totalorder %s112, 0
    %s115 = sadd.s32 %s114, 1
    %s116 = scalar_select %p113, %s114, %s115
    %p119 = pneg %p113
    %p120 = scmp.eq.s32.totalorder %s10, 1
    %p121 = por %p119, %p120
    %p122 = scmp.ne.s32.totalorder %s114, %s117
    %p123 = scmp.eq.s32.totalorder %s10, 0
    %p124 = por %p122, %p123
    %p125 = scmp.ne.s32.totalorder %s114, %s117
    %p126 = scmp.eq.s32.totalorder %s15, 1
    %p127 = por %p125, %p126
    %p128 = scmp.ne.s32.totalorder %s117, %s118
    %p129 = scmp.eq.s32.totalorder %s15, 0
    %p130 = por %p128, %p129
    %p131 = scmp.ne.s32.totalorder %s117, %s118
    %p132 = scmp.eq.s32.totalorder %s16, 1
    %p133 = por %p131, %p132
    %p135 = scmp.ne.s32.totalorder %s118, %s134
    %p136 = scmp.eq.s32.totalorder %s16, 0
    %p137 = por %p135, %p136
    %p138 = scmp.le.s32.totalorder 1, %s10
    %p139 = scmp.lt.s32.totalorder %s10, 3
    %p140 = pnand %p138, %p139
    %p141 = pneg %p140
    // Predicated region
    $region9: #{transformer_block.6} parent=5 // pred_check
      _
    $region10: #{transformer_block.6} parent=5 // pred_check_branch
      %143 = sbr.rel (%p140) target = $region12
    $region11: #{transformer_block.6} parent=5 // pred_region
      %s144 = ssub.s32 %s10, 1
      // Predicated region
      $region13: #{transformer_block.6} parent=11 // pred_check
        %p145 = pneg %p57
      $region14: #{transformer_block.6} parent=11 // pred_check_branch
        %147 = sbr.rel (%p145) target = $region16
      $region15: #{transformer_block.6} parent=11 // pred_region
        _
      $region16: #{transformer_block.6} parent=11 // pred_fallthru
        _
      // Predicated region
      $region17: #{transformer_block.6} parent=11 // pred_check
        %p148 = pneg %p78
      $region18: #{transformer_block.6} parent=11 // pred_check_branch
        %150 = sbr.rel (%p148) target = $region20
      $region19: #{transformer_block.6} parent=11 // pred_region
        _
      $region20: #{transformer_block.6} parent=11 // pred_fallthru
        _
    $region12: #{transformer_block.6} parent=5 // pred_fallthru
      _
    %p151 = scmp.lt.s32.totalorder %s10, 2
    // Predicated region
    $region21: #{transformer_block.6} parent=5 // pred_check
      %p152 = pneg %p151
    $region22: #{transformer_block.6} parent=5 // pred_check_branch
      %154 = sbr.rel (%p152) target = $region24
    $region23: #{transformer_block.6} parent=5 // pred_region
      // Predicated region
      $region25: #{transformer_block.6} parent=23 // pred_check
        %p155 = pneg %p30
      $region26: #{transformer_block.6} parent=23 // pred_check_branch
        %157 = sbr.rel (%p155) target = $region28
      $region27: #{transformer_block.6} parent=23 // pred_region
        %s158 = smul.u32 8, %s10
        %p159 = scmp.lt.s32.totalorder %s158, 15
        %s160 = scalar_select %p159, %s158, 15
        %s161 = smul.addr %s160, 4
        %s162 = scalar_lea.vmem %s0, %s161
        %s163 = smul.u32 8, %s10
      $region28: #{transformer_block.6} parent=23 // pred_fallthru
        _
      // Predicated region
      $region29: #{transformer_block.6} parent=23 // pred_check
        %p164 = pneg %p98
      $region30: #{transformer_block.6} parent=23 // pred_check_branch
        %166 = sbr.rel (%p164) target = $region32
      $region31: #{transformer_block.6} parent=23 // pred_region
        %s167 = smul.u32 8, %s10
        %p168 = scmp.lt.s32.totalorder %s167, 15
        %s169 = scalar_select %p168, %s167, 15
        %s170 = smul.addr %s169, 8
        %s171 = scalar_lea.vmem %s3, %s170
        %s172 = smul.u32 8, %s10
      $region32: #{transformer_block.6} parent=23 // pred_fallthru
        _
    $region24: #{transformer_block.6} parent=5 // pred_fallthru
      _
    %p173 = scmp.le.s32.totalorder 1, %s10
    %p174 = scmp.lt.s32.totalorder %s10, 3
    %p175 = pnand %p173, %p174
    %p176 = pneg %p175
    // Predicated region
    $region33: #{transformer_block.6} parent=5 // pred_check
      _
    $region34: #{transformer_block.6} parent=5 // pred_check_branch
      %178 = sbr.rel (%p175) target = $region36
    $region35: #{transformer_block.6} parent=5 // pred_region
      %s179 = ssub.s32 %s10, 1
      %s180 = smul.u32 8, %s15
      %p181 = scmp.lt.s32.totalorder %s180, 15
      %s182 = scalar_select %p181, %s180, 15
      %s183 = smul.addr %s182, 4
      %s184 = scalar_lea.vmem %s0, %s183
      %p185 = pneg %p36
      %p186 = pneg %p33
      %p187 = pneg %p57
      %p188 = pneg %p54
      %p189 = pneg %p78
      %p190 = pneg %p75
      %s191 = smul.u32 8, %s15
      %p192 = scmp.lt.s32.totalorder %s191, 15
      %s193 = scalar_select %p192, %s191, 15
      %s194 = smul.addr %s193, 8
      %s195 = scalar_lea.vmem %s3, %s194
      %p196 = pneg %p104
      %p197 = pneg %p101
      %p198 = pneg %p130
      %p199 = pneg %p127
      %s200 = smul.u32 8, %s15
      %p201 = scmp.lt.s32.totalorder %s200, 15
      %s202 = scalar_select %p201, %s200, 15
      %s203 = smul.addr %s202, 8
      %s204 = scalar_lea.vmem %s4, %s203
      %s205 = smul.u32 8, %s15
      %p206 = scmp.lt.s32.totalorder %s205, 15
      %s207 = scalar_select %p206, %s205, 15
      %s208 = smul.addr %s207, 4
      %s209 = scalar_lea.vmem %s0, %s208
      %s210 = smul.u32 8, %s15
      %s211 = smul.u32 8, %s15
      %p212 = scmp.lt.s32.totalorder %s211, 15
      %s213 = scalar_select %p212, %s211, 15
      %s214 = smul.addr %s213, 8
      %s215 = scalar_lea.vmem %s3, %s214
      %s216 = smul.u32 8, %s15
      %s217 = smul.u32 8, %s15
      %p218 = scmp.lt.s32.totalorder %s217, 15
      %s219 = scalar_select %p218, %s217, 15
      %s220 = smul.addr %s219, 8
      %s221 = scalar_lea.vmem %s4, %s220
      %s222 = smul.u32 8, %s15
      %v224 = vld [vmem:[%s209] sm:$0xf]
      %v225 = vld [vmem:[%s209 + $0x4] sm:$0xf]
      %v226 = vld [vmem:[%s209 + $0x8] sm:$0xf]
      %v227 = vld [vmem:[%s209 + $0xc] sm:$0xf]
      %v228 = vld [vmem:[%s209 + $0x10] sm:$0xf]
      %v229 = vld [vmem:[%s209 + $0x14] sm:$0xf]
      %v230 = vld [vmem:[%s209 + $0x18] sm:$0xf]
      %v231 = vld [vmem:[%s209 + $0x1c] sm:$0xf]
      %v232 = vld [vmem:[%s1] sm:$0xf]
      %v233 = vld [vmem:[%s1 + $0x4] sm:$0xf]
      %v234 = vld [vmem:[%s1 + $0x8] sm:$0xf]
      %v235 = vld [vmem:[%s1 + $0xc] sm:$0xf]
      %v236 = vld [vmem:[%s1 + $0x10] sm:$0xf]
      %v237 = vld [vmem:[%s1 + $0x14] sm:$0xf]
      %v238 = vld [vmem:[%s1 + $0x18] sm:$0xf]
      %v239 = vld [vmem:[%s1 + $0x1c] sm:$0xf]
      %v240 = vld [vmem:[%s1 + $0x20] sm:$0xf]
      %v241 = vld [vmem:[%s1 + $0x24] sm:$0xf]
      %v242 = vld [vmem:[%s1 + $0x28] sm:$0xf]
      %v243 = vld [vmem:[%s1 + $0x2c] sm:$0xf]
      %v244 = vld [vmem:[%s1 + $0x30] sm:$0xf]
      %v245 = vld [vmem:[%s1 + $0x34] sm:$0xf]
      %v246 = vld [vmem:[%s1 + $0x38] sm:$0xf]
      %v247 = vld [vmem:[%s1 + $0x3c] sm:$0xf]
      %v248 = vld [vmem:[%s2] sm:$0x1]
      %v250 = vlaneseq
      %v251 = vshrl.u32 %v250, 7
      %v252 = vsub.s32 0, %v251
      %v253 = vrot.slane %v248, %v252
      %v263 = vunpack.c.l.b16 %v224
      %v264 = vunpack.c.l.b16 %v225
      %v265 = vunpack.c.l.b16 %v226
      %v266 = vunpack.c.l.b16 %v227
      %v267 = vunpack.c.l.b16 %v228
      %v268 = vunpack.c.l.b16 %v229
      %v269 = vunpack.c.l.b16 %v230
      %v270 = vunpack.c.l.b16 %v231
      %v271 = vpack.c.b16 %v264, %v263
      %v272 = vpack.c.b16 %v266, %v265
      %v273 = vpack.c.b16 %v268, %v267
      %v274 = vpack.c.b16 %v270, %v269
      %v295 = vunpack.c.l.b16 %v232
      %v296 = vunpack.c.l.b16 %v233
      %v297 = vunpack.c.l.b16 %v234
      %v298 = vunpack.c.l.b16 %v235
      %v299 = vunpack.c.l.b16 %v236
      %v300 = vunpack.c.l.b16 %v237
      %v301 = vunpack.c.l.b16 %v238
      %v302 = vunpack.c.l.b16 %v239
      %v303 = vunpack.c.l.b16 %v240
      %v304 = vunpack.c.l.b16 %v241
      %v305 = vunpack.c.l.b16 %v242
      %v306 = vunpack.c.l.b16 %v243
      %v307 = vunpack.c.l.b16 %v244
      %v308 = vunpack.c.l.b16 %v245
      %v309 = vunpack.c.l.b16 %v246
      %v310 = vunpack.c.l.b16 %v247
      %v311 = vpack.c.b16 %v296, %v295
      %v312 = vpack.c.b16 %v298, %v297
      %v313 = vpack.c.b16 %v300, %v299
      %v314 = vpack.c.b16 %v302, %v301
      %v315 = vpack.c.b16 %v304, %v303
      %v316 = vpack.c.b16 %v306, %v305
      %v317 = vpack.c.b16 %v308, %v307
      %v318 = vpack.c.b16 %v310, %v309
      %327 = vmatprep.subr.bf16.mxu0 0
      %328 = vmatpush1.bf16.msra.mxu0 %v311
      %329 = vmatprep.subr.bf16.mxu0 0
      %330 = vmatpush1.bf16.msra.mxu0 %v312
      %331 = vmatprep.subr.bf16.mxu0 0
      %332 = vmatpush1.bf16.msra.mxu0 %v313
      %333 = vmatprep.subr.bf16.mxu0 0
      %334 = vmatpush1.bf16.msra.mxu0 %v314
      %335 = vmatprep.subr.bf16.mxu0 0
      %336 = vmatpush1.bf16.msra.mxu0 %v315
      %337 = vmatprep.subr.bf16.mxu0 0
      %338 = vmatpush1.bf16.msra.mxu0 %v316
      %339 = vmatprep.subr.bf16.mxu0 0
      %340 = vmatpush1.bf16.msra.mxu0 %v317
      %341 = vmatprep.subr.bf16.mxu0 0
      %342 = vmatpush1.bf16.msra.mxu0 %v318
      %343 = vmatprep.subr.bf16.mxu0 0
      %344 = vmatpush1.bf16.msra.mxu0 0
      %345 = vmatprep.subr.bf16.mxu0 0
      %346 = vmatpush1.bf16.msra.mxu0 0
      %347 = vmatprep.subr.bf16.mxu0 0
      %348 = vmatpush1.bf16.msra.mxu0 0
      %349 = vmatprep.subr.bf16.mxu0 0
      %350 = vmatpush1.bf16.msra.mxu0 0
      %351 = vmatprep.subr.bf16.mxu0 0
      %352 = vmatpush1.bf16.msra.mxu0 0
      %353 = vmatprep.subr.bf16.mxu0 0
      %354 = vmatpush1.bf16.msra.mxu0 0
      %355 = vmatprep.subr.bf16.mxu0 0
      %356 = vmatpush1.bf16.msra.mxu0 0
      %357 = vmatprep.subr.bf16.mxu0 0
      %358 = vmatpush1.bf16.msra.mxu0 0
      %359 = vmatprep.mubr.bf16.mxu0 0
      %360 = vmatmul.mubr.bf16.gmra.mrb[0].mxu0 %v271
      %v361 = vpop.f32.mrb[0].mxu0
      %v362 = vadd.f32 %v253, %v361
      %v363 = vpop.f32.mrb[0].mxu0
      %v364 = vpop.f32.mrb[0].mxu0
      %v365 = vadd.f32 %v253, %v364
      %v366 = vpop.f32.mrb[0].mxu0
      %367 = vmatprep.mubr.bf16.mxu0 0
      %368 = vmatmul.mubr.bf16.gmra.mrb[0].mxu0 %v272
      %v369 = vpop.f32.mrb[0].mxu0
      %v370 = vadd.f32 %v253, %v369
      %v371 = vpop.f32.mrb[0].mxu0
      %v372 = vpop.f32.mrb[0].mxu0
      %v373 = vadd.f32 %v253, %v372
      %v374 = vpop.f32.mrb[0].mxu0
      %375 = vmatprep.mubr.bf16.mxu0 0
      %376 = vmatmul.mubr.bf16.gmra.mrb[0].mxu0 %v273
      %v377 = vpop.f32.mrb[0].mxu0
      %v378 = vadd.f32 %v253, %v377
      %v379 = vpop.f32.mrb[0].mxu0
      %v380 = vpop.f32.mrb[0].mxu0
      %v381 = vadd.f32 %v253, %v380
      %v382 = vpop.f32.mrb[0].mxu0
      %383 = vmatprep.mubr.bf16.mxu0 0
      %384 = vmatmul.mubr.bf16.gmra.mrb[0].mxu0 %v274
      %v385 = vpop.f32.mrb[0].mxu0
      %v386 = vadd.f32 %v253, %v385
      %v387 = vpop.f32.mrb[0].mxu0
      %v388 = vpop.f32.mrb[0].mxu0
      %v389 = vadd.f32 %v253, %v388
      %v390 = vpop.f32.mrb[0].mxu0
      %391 = vdwg.mxu0
      %v392 = vld [vmem:[%s215] sm:$0xff]
      %v393 = vld [vmem:[%s215 + $0x8] sm:$0xff]
      %v394 = vld [vmem:[%s215 + $0x10] sm:$0xff]
      %v395 = vld [vmem:[%s215 + $0x18] sm:$0xff]
      %v396 = vld [vmem:[%s215 + $0x20] sm:$0xff]
      %v397 = vld [vmem:[%s215 + $0x28] sm:$0xff]
      %v398 = vld [vmem:[%s215 + $0x30] sm:$0xff]
      %v399 = vld [vmem:[%s215 + $0x38] sm:$0xff]
      %v400 = vadd.f32 %v362, %v392
      %v401 = vadd.f32 %v365, %v393
      %v402 = vadd.f32 %v370, %v394
      %v403 = vadd.f32 %v373, %v395
      %v404 = vadd.f32 %v378, %v396
      %v405 = vadd.f32 %v381, %v397
      %v406 = vadd.f32 %v386, %v398
      %v407 = vadd.f32 %v389, %v399
      %408 = vst [vmem:[%s221] sm:$0xff] %v400
      %409 = vst [vmem:[%s221 + $0x8] sm:$0xff] %v401
      %410 = vst [vmem:[%s221 + $0x10] sm:$0xff] %v402
      %411 = vst [vmem:[%s221 + $0x18] sm:$0xff] %v403
      %412 = vst [vmem:[%s221 + $0x20] sm:$0xff] %v404
      %413 = vst [vmem:[%s221 + $0x28] sm:$0xff] %v405
      %414 = vst [vmem:[%s221 + $0x30] sm:$0xff] %v406
      %415 = vst [vmem:[%s221 + $0x38] sm:$0xff] %v407
      %s416 = smul.u32 8, %s15
      %p417 = scmp.lt.s32.totalorder %s416, 15
      %s418 = scalar_select %p417, %s416, 15
      %s419 = smul.addr %s418, 8
      %s420 = scalar_lea.vmem %s4, %s419
      // Predicated region
      $region37: #{transformer_block.6} parent=35 // pred_check
        %p421 = pneg %p127
      $region38: #{transformer_block.6} parent=35 // pred_check_branch
        %423 = sbr.rel (%p421) target = $region40
      $region39: #{transformer_block.6} parent=35 // pred_region
        %s424 = smul.u32 8, %s15
      $region40: #{transformer_block.6} parent=35 // pred_fallthru
        _
    $region36: #{transformer_block.6} parent=5 // pred_fallthru
      _
    %p425 = scmp.le.s32.totalorder 2, %s10
    // Predicated region
    $region41: #{transformer_block.6} parent=5 // pred_check
      %p426 = pneg %p425
    $region42: #{transformer_block.6} parent=5 // pred_check_branch
      %428 = sbr.rel (%p426) target = $region44
    $region43: #{transformer_block.6} parent=5 // pred_region
      %s429 = ssub.s32 %s10, 2
      // Predicated region
      $region45: #{transformer_block.6} parent=43 // pred_check
        %p430 = pneg %p133
      $region46: #{transformer_block.6} parent=43 // pred_check_branch
        %432 = sbr.rel (%p430) target = $region48
      $region47: #{transformer_block.6} parent=43 // pred_region
        %s433 = smul.u32 8, %s16
        %p434 = scmp.lt.s32.totalorder %s433, 15
        %s435 = scalar_select %p434, %s433, 15
        %s436 = smul.addr %s435, 8
        %s437 = scalar_lea.vmem %s4, %s436
      $region48: #{transformer_block.6} parent=43 // pred_fallthru
        _
    $region44: #{transformer_block.6} parent=5 // pred_fallthru
      _
  $region6: #{transformer_block.6} parent=0 // loop_footer
    %s14 = sadd.s32 1, %s10
  $region7: #{transformer_block.6} parent=0 // loop_footer_branch
    %9 = sbr.rel target = $region3
  $region8: #{transformer_block.6} parent=0 // loop_exit
    _

// kernel: transformer_block.5
$region0: #{transformer_block.5}
  #allocation0 [shape = 'u32[]', space=smem, size = 0x4, offset = 0x4, fixed_abs, tag = 'smem constant byte address 0x4 - core index']
  #allocation1 [shape = 'u32[144,128]{1,0:T(1,128)}', space=vmem, size = 0x12000, scoped, tag = 'internal scratch']
  %s0 = inlined_call_operand.vmem [shape: bf16[2,64,384], index: 0, kind: input, shape index: {}]
  %s1 = inlined_call_operand.vmem [shape: bf16[2,64,128], index: 1, kind: output, shape index: {}]
  %s2 = sld [smem:[#allocation0]]
  $region37: #{transformer_block.5} parent=0
    _
  %s4 = ssub.s32 1, %s2
  %s5 = scalar_select 0, %s4, %s2
  loop: start=0, step=1, limit=4
  $region2: #{transformer_block.5} parent=0 // loop_pre_header
    _
  $region3: #{transformer_block.5} parent=0 // loop_header
    %s7 = sphi 0, %s11
    %p8 = scmp.ge.s32.totalorder %s7, 4
    %s17 = sphi 0, %s19
    %s20 = sphi 0, %s17
    %s21 = sphi 0, %s20
    %s37 = sphi 0, %s21
    %s43 = sphi 0, %s45
    %s46 = sphi 0, %s43
    %s47 = sphi 0, %s46
    %s63 = sphi 0, %s47
  $region4: #{transformer_block.5} parent=0 // loop_header_branch
    %10 = sbr.rel (%p8) target = $region8
  $region5: #{transformer_block.5} parent=0 // loop_body
    %s12 = ssub.s32 %s7, 1
    %s13 = ssub.s32 %s7, 2
    %s14 = sadd.s32 %s7, 1
    %s15 = ssub.s32 %s7, %s14
    %p16 = scmp.eq.s32.totalorder %s15, 0
    %s18 = sadd.s32 %s17, 1
    %s19 = scalar_select %p16, %s17, %s18
    %p22 = pneg %p16
    %p23 = scmp.eq.s32.totalorder %s7, 1
    %p24 = por %p22, %p23
    %p25 = scmp.ne.s32.totalorder %s17, %s20
    %p26 = scmp.eq.s32.totalorder %s7, 0
    %p27 = por %p25, %p26
    %p28 = scmp.ne.s32.totalorder %s17, %s20
    %p29 = scmp.eq.s32.totalorder %s12, 1
    %p30 = por %p28, %p29
    %p31 = scmp.ne.s32.totalorder %s20, %s21
    %p32 = scmp.eq.s32.totalorder %s12, 0
    %p33 = por %p31, %p32
    %p34 = scmp.ne.s32.totalorder %s20, %s21
    %p35 = scmp.eq.s32.totalorder %s13, 1
    %p36 = por %p34, %p35
    %p38 = scmp.ne.s32.totalorder %s21, %s37
    %p39 = scmp.eq.s32.totalorder %s13, 0
    %p40 = por %p38, %p39
    %s41 = ssub.s32 %s7, %s14
    %p42 = scmp.eq.s32.totalorder %s41, 0
    %s44 = sadd.s32 %s43, 1
    %s45 = scalar_select %p42, %s43, %s44
    %p48 = pneg %p42
    %p49 = scmp.eq.s32.totalorder %s7, 1
    %p50 = por %p48, %p49
    %p51 = scmp.ne.s32.totalorder %s43, %s46
    %p52 = scmp.eq.s32.totalorder %s7, 0
    %p53 = por %p51, %p52
    %p54 = scmp.ne.s32.totalorder %s43, %s46
    %p55 = scmp.eq.s32.totalorder %s12, 1
    %p56 = por %p54, %p55
    %p57 = scmp.ne.s32.totalorder %s46, %s47
    %p58 = scmp.eq.s32.totalorder %s12, 0
    %p59 = por %p57, %p58
    %p60 = scmp.ne.s32.totalorder %s46, %s47
    %p61 = scmp.eq.s32.totalorder %s13, 1
    %p62 = por %p60, %p61
    %p64 = scmp.ne.s32.totalorder %s47, %s63
    %p65 = scmp.eq.s32.totalorder %s13, 0
    %p66 = por %p64, %p65
    %p67 = scmp.le.s32.totalorder 1, %s7
    %p68 = scmp.lt.s32.totalorder %s7, 3
    %p69 = pnand %p67, %p68
    %p70 = pneg %p69
    // Predicated region
    $region9: #{transformer_block.5} parent=5 // pred_check
      _
    $region10: #{transformer_block.5} parent=5 // pred_check_branch
      %72 = sbr.rel (%p69) target = $region12
    $region11: #{transformer_block.5} parent=5 // pred_region
      %s73 = ssub.s32 %s7, 1
    $region12: #{transformer_block.5} parent=5 // pred_fallthru
      _
    %p74 = scmp.lt.s32.totalorder %s7, 2
    // Predicated region
    $region13: #{transformer_block.5} parent=5 // pred_check
      %p75 = pneg %p74
    $region14: #{transformer_block.5} parent=5 // pred_check_branch
      %77 = sbr.rel (%p75) target = $region16
    $region15: #{transformer_block.5} parent=5 // pred_region
      // Predicated region
      $region17: #{transformer_block.5} parent=15 // pred_check
        %p78 = pneg %p27
      $region18: #{transformer_block.5} parent=15 // pred_check_branch
        %80 = sbr.rel (%p78) target = $region20
      $region19: #{transformer_block.5} parent=15 // pred_region
        %p81 = scmp.lt.s32.totalorder %s7, 1
        %s82 = scalar_select %p81, %s7, 1
        %s83 = smul.addr %s82, 24
        %s84 = smul.addr %s83, 4
        %s85 = scalar_lea.vmem %s0, %s84
      $region20: #{transformer_block.5} parent=15 // pred_fallthru
        _
    $region16: #{transformer_block.5} parent=5 // pred_fallthru
      _
    %p86 = scmp.le.s32.totalorder 1, %s7
    %p87 = scmp.lt.s32.totalorder %s7, 3
    %p88 = pnand %p86, %p87
    %p89 = pneg %p88
    // Predicated region
    $region21: #{transformer_block.5} parent=5 // pred_check
      _
    $region22: #{transformer_block.5} parent=5 // pred_check_branch
      %91 = sbr.rel (%p88) target = $region24
    $region23: #{transformer_block.5} parent=5 // pred_region
      %s92 = ssub.s32 %s7, 1
      %p93 = scmp.lt.s32.totalorder %s12, 1
      %s94 = scalar_select %p93, %s12, 1
      %s95 = smul.addr %s94, 24
      %s96 = smul.addr %s95, 4
      %s97 = scalar_lea.vmem %s0, %s96
      %p98 = pneg %p33
      %p99 = pneg %p30
      %p100 = pneg %p59
      %p101 = pneg %p56
      %p102 = scmp.lt.s32.totalorder %s12, 1
      %s103 = scalar_select %p102, %s12, 1
      %s104 = smul.addr %s103, 8
      %s105 = smul.addr %s104, 4
      %s106 = scalar_lea.vmem %s1, %s105
      %p107 = scmp.lt.s32.totalorder %s12, 1
      %s108 = scalar_select %p107, %s12, 1
      %s109 = smul.addr %s108, 24
      %s110 = smul.addr %s109, 4
      %s111 = scalar_lea.vmem %s0, %s110
      %p112 = scmp.lt.s32.totalorder %s12, 1
      %s113 = scalar_select %p112, %s12, 1
      %s114 = smul.addr %s113, 8
      %s115 = smul.addr %s114, 4
      %s116 = scalar_lea.vmem %s1, %s115
      %v118 = vld [vmem:[%s111] sm:$0xff]
      %v119 = vld [vmem:[%s111 + $0x8] sm:$0xf]
      %v120 = vld [vmem:[%s111 + $0xc] sm:$0xff]
      %v121 = vld [vmem:[%s111 + $0x14] sm:$0xf]
      %v122 = vld [vmem:[%s111 + $0x18] sm:$0xff]
      %v123 = vld [vmem:[%s111 + $0x20] sm:$0xf]
      %v124 = vld [vmem:[%s111 + $0x24] sm:$0xff]
      %v125 = vld [vmem:[%s111 + $0x2c] sm:$0xf]
      %v126 = vld [vmem:[%s111 + $0x30] sm:$0xff]
      %v127 = vld [vmem:[%s111 + $0x38] sm:$0xf]
      %v128 = vld [vmem:[%s111 + $0x3c] sm:$0xff]
      %v129 = vld [vmem:[%s111 + $0x44] sm:$0xf]
      %v130 = vld [vmem:[%s111 + $0x48] sm:$0xff]
      %v131 = vld [vmem:[%s111 + $0x50] sm:$0xf]
      %v132 = vld [vmem:[%s111 + $0x54] sm:$0xff]
      %v133 = vld [vmem:[%s111 + $0x5c] sm:$0xf]
      %v134 = vlaneseq
      %v135 = vshrl.u32 %v134, 7
      %v136 = vadd.s32 %v135, 8
      %v137 = vadd.s32 %v135, 16
      %v138 = vadd.s32 %v135, 24
      %v139 = vadd.s32 %v135, 32
      %v140 = vadd.s32 %v135, 40
      %v141 = vadd.s32 %v135, 48
      %v142 = vadd.s32 %v135, 56
      %v143 = vlaneseq
      %v144 = vand.u32 %v143, 127
      %vm145 = vcmp.gt.s32.totalorder %v144, %v135
      %vm146 = vcmp.gt.s32.totalorder %v144, %v136
      %vm147 = vcmp.gt.s32.totalorder %v144, %v137
      %vm148 = vcmp.gt.s32.totalorder %v144, %v138
      %vm149 = vcmp.gt.s32.totalorder %v144, %v139
      %vm150 = vcmp.gt.s32.totalorder %v144, %v140
      %vm151 = vcmp.gt.s32.totalorder %v144, %v141
      %vm152 = vcmp.gt.s32.totalorder %v144, %v142
      %v161 = vunpack.c.l.b16 %v118
      %v162 = vunpack.c.l.b16 %v120
      %v163 = vunpack.c.l.b16 %v122
      %v164 = vunpack.c.l.b16 %v124
      %v165 = vunpack.c.l.b16 %v126
      %v166 = vunpack.c.l.b16 %v128
      %v167 = vunpack.c.l.b16 %v130
      %v168 = vunpack.c.l.b16 %v132
      %v169 = vpack.c.b16 %v162, %v161
      %v170 = vpack.c.b16 %v164, %v163
      %v171 = vpack.c.b16 %v166, %v165
      %v172 = vpack.c.b16 %v168, %v167
      %v173 = vunpack.c.h.b16 %v118
      %v174 = vunpack.c.h.b16 %v120
      %v175 = vunpack.c.h.b16 %v122
      %v176 = vunpack.c.h.b16 %v124
      %v177 = vunpack.c.h.b16 %v126
      %v178 = vunpack.c.h.b16 %v128
      %v179 = vunpack.c.h.b16 %v130
      %v180 = vunpack.c.h.b16 %v132
      %v181 = vpack.c.b16 %v174, %v173
      %v182 = vpack.c.b16 %v176, %v175
      %v183 = vpack.c.b16 %v178, %v177
      %v184 = vpack.c.b16 %v180, %v179
      %vm185 = vcmask 261120
      %v187 = vsel %vm185, %v169, 0
      %v190 = vsel %vm185, %v170, 0
      %v193 = vsel %vm185, %v171, 0
      %v196 = vsel %vm185, %v172, 0
      %v199 = vsel %vm185, %v181, 0
      %v202 = vsel %vm185, %v182, 0
      %v205 = vsel %vm185, %v183, 0
      %v208 = vsel %vm185, %v184, 0
      %210 = vmatprep.subr.bf16.mxu0 0
      %211 = vmatpush1.bf16.xpose.msra.mxu0 %v199
      %212 = vmatprep.subr.bf16.mxu0 0
      %213 = vmatpush1.bf16.xpose.msra.mxu0 %v202
      %214 = vmatprep.subr.bf16.mxu0 0
      %215 = vmatpush1.bf16.xpose.msra.mxu0 %v205
      %216 = vmatprep.subr.bf16.mxu0 0
      %217 = vmatpush1.bf16.xpose.msra.mxu0 %v208
      %218 = vmatprep.subr.bf16.mxu0 0
      %219 = vmatpush1.bf16.xpose.msra.mxu0 0
      %220 = vmatprep.subr.bf16.mxu0 0
      %221 = vmatpush1.bf16.xpose.msra.mxu0 0
      %222 = vmatprep.subr.bf16.mxu0 0
      %223 = vmatpush1.bf16.xpose.msra.mxu0 0
      %224 = vmatprep.subr.bf16.mxu0 0
      %225 = vmatpush1.bf16.xpose.msra.mxu0 0
      %226 = vmatprep.subr.bf16.mxu0 0
      %227 = vmatpush1.bf16.xpose.msra.mxu0 0
      %228 = vmatprep.subr.bf16.mxu0 0
      %229 = vmatpush1.bf16.xpose.msra.mxu0 0
      %230 = vmatprep.subr.bf16.mxu0 0
      %231 = vmatpush1.bf16.xpose.msra.mxu0 0
      %232 = vmatprep.subr.bf16.mxu0 0
      %233 = vmatpush1.bf16.xpose.msra.mxu0 0
      %234 = vmatprep.subr.bf16.mxu0 0
      %235 = vmatpush1.bf16.xpose.msra.mxu0 0
      %236 = vmatprep.subr.bf16.mxu0 0
      %237 = vmatpush1.bf16.xpose.msra.mxu0 0
      %238 = vmatprep.subr.bf16.mxu0 0
      %239 = vmatpush1.bf16.xpose.msra.mxu0 0
      %240 = vmatprep.subr.bf16.mxu0 0
      %241 = vmatpush1.bf16.xpose.msra.mxu0 0
      %242 = vmatprep.mubr.bf16.mxu0 0
      %243 = vmatmul.mubr.bf16.gmra.mrb[0].mxu0 %v187
      %v244 = vpop.f32.mrb[0].mxu0
      %v245 = vadd.f32 0.0, %v244
      %v246 = vpop.f32.mrb[0].mxu0
      %v247 = vpop.f32.mrb[0].mxu0
      %v248 = vadd.f32 0.0, %v247
      %v249 = vpop.f32.mrb[0].mxu0
      %250 = vmatprep.mubr.bf16.mxu0 0
      %251 = vmatmul.mubr.bf16.gmra.mrb[0].mxu0 %v190
      %v252 = vpop.f32.mrb[0].mxu0
      %v253 = vadd.f32 0.0, %v252
      %v254 = vpop.f32.mrb[0].mxu0
      %v255 = vpop.f32.mrb[0].mxu0
      %v256 = vadd.f32 0.0, %v255
      %v257 = vpop.f32.mrb[0].mxu0
      %258 = vmatprep.mubr.bf16.mxu0 0
      %259 = vmatmul.mubr.bf16.gmra.mrb[0].mxu0 %v193
      %v260 = vpop.f32.mrb[0].mxu0
      %v261 = vadd.f32 0.0, %v260
      %v262 = vpop.f32.mrb[0].mxu0
      %v263 = vpop.f32.mrb[0].mxu0
      %v264 = vadd.f32 0.0, %v263
      %v265 = vpop.f32.mrb[0].mxu0
      %266 = vmatprep.mubr.bf16.mxu0 0
      %267 = vmatmul.mubr.bf16.gmra.mrb[0].mxu0 %v196
      %v268 = vpop.f32.mrb[0].mxu0
      %v269 = vadd.f32 0.0, %v268
      %v270 = vpop.f32.mrb[0].mxu0
      %v271 = vpop.f32.mrb[0].mxu0
      %v272 = vadd.f32 0.0, %v271
      %v273 = vpop.f32.mrb[0].mxu0
      %274 = vdwg.mxu0
      %v275 = vmul.f32 %v245, 0.17677669
      %v276 = vmul.f32 %v248, 0.17677669
      %v277 = vmul.f32 %v253, 0.17677669
      %v278 = vmul.f32 %v256, 0.17677669
      %v279 = vmul.f32 %v261, 0.17677669
      %v280 = vmul.f32 %v264, 0.17677669
      %v281 = vmul.f32 %v269, 0.17677669
      %v282 = vmul.f32 %v272, 0.17677669
      %v283 = vsel %vm145, -inf, %v275
      %v284 = vsel %vm146, -inf, %v276
      %v285 = vsel %vm147, -inf, %v277
      %v286 = vsel %vm148, -inf, %v278
      %v287 = vsel %vm149, -inf, %v279
      %v288 = vsel %vm150, -inf, %v280
      %v289 = vsel %vm151, -inf, %v281
      %v290 = vsel %vm152, -inf, %v282
      %vm291 = vcmask 523264
      %v292 = vsel %vm291, %v283, -inf
      %293 = vmax.xlane.f32.xlu0 %v292
      %v294 = vpop.xlane.xlu0 %293
      %v295 = vsel %vm291, %v284, -inf
      %296 = vmax.xlane.f32.xlu0 %v295
      %v297 = vpop.xlane.xlu0 %296
      %v298 = vsel %vm291, %v285, -inf
      %299 = vmax.xlane.f32.xlu0 %v298
      %v300 = vpop.xlane.xlu0 %299
      %v301 = vsel %vm291, %v286, -inf
      %302 = vmax.xlane.f32.xlu0 %v301
      %v303 = vpop.xlane.xlu0 %302
      %v304 = vsel %vm291, %v287, -inf
      %305 = vmax.xlane.f32.xlu0 %v304
      %v306 = vpop.xlane.xlu0 %305
      %v307 = vsel %vm291, %v288, -inf
      %308 = vmax.xlane.f32.xlu0 %v307
      %v309 = vpop.xlane.xlu0 %308
      %v310 = vsel %vm291, %v289, -inf
      %311 = vmax.xlane.f32.xlu0 %v310
      %v312 = vpop.xlane.xlu0 %311
      %v313 = vsel %vm291, %v290, -inf
      %314 = vmax.xlane.f32.xlu0 %v313
      %v315 = vpop.xlane.xlu0 %314
      %v316 = vsub.f32 %v283, %v294
      %v317 = vsub.f32 %v284, %v297
      %v318 = vsub.f32 %v285, %v300
      %v319 = vsub.f32 %v286, %v303
      %v320 = vsub.f32 %v287, %v306
      %v321 = vsub.f32 %v288, %v309
      %v322 = vsub.f32 %v289, %v312
      %v323 = vsub.f32 %v290, %v315
      %v324 = vmul.f32 %v316, 1.442695
      %v325 = vpow.pop %v324
      %v326 = vmul.f32 %v317, 1.442695
      %v327 = vpow.pop %v326
      %v328 = vmul.f32 %v318, 1.442695
      %v329 = vpow.pop %v328
      %v330 = vmul.f32 %v319, 1.442695
      %v331 = vpow.pop %v330
      %v332 = vmul.f32 %v320, 1.442695
      %v333 = vpow.pop %v332
      %v334 = vmul.f32 %v321, 1.442695
      %v335 = vpow.pop %v334
      %v336 = vmul.f32 %v322, 1.442695
      %v337 = vpow.pop %v336
      %v338 = vmul.f32 %v323, 1.442695
      %v339 = vpow.pop %v338
      %v340 = vsel %vm291, %v325, 0.0
      %341 = vadd.xlane.f32.xlu0 %v340
      %v342 = vpop.xlane.xlu0 %341
      %v343 = vsel %vm291, %v327, 0.0
      %344 = vadd.xlane.f32.xlu0 %v343
      %v345 = vpop.xlane.xlu0 %344
      %v346 = vsel %vm291, %v329, 0.0
      %347 = vadd.xlane.f32.xlu0 %v346
      %v348 = vpop.xlane.xlu0 %347
      %v349 = vsel %vm291, %v331, 0.0
      %350 = vadd.xlane.f32.xlu0 %v349
      %v351 = vpop.xlane.xlu0 %350
      %v352 = vsel %vm291, %v333, 0.0
      %353 = vadd.xlane.f32.xlu0 %v352
      %v354 = vpop.xlane.xlu0 %353
      %v355 = vsel %vm291, %v335, 0.0
      %356 = vadd.xlane.f32.xlu0 %v355
      %v357 = vpop.xlane.xlu0 %356
      %v358 = vsel %vm291, %v337, 0.0
      %359 = vadd.xlane.f32.xlu0 %v358
      %v360 = vpop.xlane.xlu0 %359
      %v361 = vsel %vm291, %v339, 0.0
      %362 = vadd.xlane.f32.xlu0 %v361
      %v363 = vpop.xlane.xlu0 %362
      %v364 = vrcp.pop %v342
      %v365 = vrcp.pop %v345
      %v366 = vrcp.pop %v348
      %v367 = vrcp.pop %v351
      %v368 = vrcp.pop %v354
      %v369 = vrcp.pop %v357
      %v370 = vrcp.pop %v360
      %v371 = vrcp.pop %v363
      %v372 = vmul.f32 %v325, %v364
      %v373 = vmul.f32 %v327, %v365
      %v374 = vmul.f32 %v329, %v366
      %v375 = vmul.f32 %v331, %v367
      %v376 = vmul.f32 %v333, %v368
      %v377 = vmul.f32 %v335, %v369
      %v378 = vmul.f32 %v337, %v370
      %v379 = vmul.f32 %v339, %v371
      %v380 = vpack.c.bf16 %v373, %v372
      %v381 = vpack.c.bf16 %v375, %v374
      %v382 = vpack.c.bf16 %v377, %v376
      %v383 = vpack.c.bf16 %v379, %v378
      %v392 = vunpack.c.l.b16 %v119
      %v393 = vunpack.c.l.b16 %v121
      %v394 = vunpack.c.l.b16 %v123
      %v395 = vunpack.c.l.b16 %v125
      %v396 = vunpack.c.l.b16 %v127
      %v397 = vunpack.c.l.b16 %v129
      %v398 = vunpack.c.l.b16 %v131
      %v399 = vunpack.c.l.b16 %v133
      %v400 = vpack.c.b16 %v393, %v392
      %v401 = vpack.c.b16 %v395, %v394
      %v402 = vpack.c.b16 %v397, %v396
      %v403 = vpack.c.b16 %v399, %v398
      %v409 = vsel %vm291, %v380, 0
      %v412 = vsel %vm291, %v381, 0
      %v415 = vsel %vm291, %v382, 0
      %v418 = vsel %vm291, %v383, 0
      %420 = vmatprep.subr.bf16.mxu0 0
      %421 = vmatpush1.bf16.msra.mxu0 %v400
      %422 = vmatprep.subr.bf16.mxu0 0
      %423 = vmatpush1.bf16.msra.mxu0 %v401
      %424 = vmatprep.subr.bf16.mxu0 0
      %425 = vmatpush1.bf16.msra.mxu0 %v402
      %426 = vmatprep.subr.bf16.mxu0 0
      %427 = vmatpush1.bf16.msra.mxu0 %v403
      %428 = vmatprep.subr.bf16.mxu0 0
      %429 = vmatpush1.bf16.msra.mxu0 0
      %430 = vmatprep.subr.bf16.mxu0 0
      %431 = vmatpush1.bf16.msra.mxu0 0
      %432 = vmatprep.subr.bf16.mxu0 0
      %433 = vmatpush1.bf16.msra.mxu0 0
      %434 = vmatprep.subr.bf16.mxu0 0
      %435 = vmatpush1.bf16.msra.mxu0 0
      %436 = vmatprep.subr.bf16.mxu0 0
      %437 = vmatpush1.bf16.msra.mxu0 0
      %438 = vmatprep.subr.bf16.mxu0 0
      %439 = vmatpush1.bf16.msra.mxu0 0
      %440 = vmatprep.subr.bf16.mxu0 0
      %441 = vmatpush1.bf16.msra.mxu0 0
      %442 = vmatprep.subr.bf16.mxu0 0
      %443 = vmatpush1.bf16.msra.mxu0 0
      %444 = vmatprep.subr.bf16.mxu0 0
      %445 = vmatpush1.bf16.msra.mxu0 0
      %446 = vmatprep.subr.bf16.mxu0 0
      %447 = vmatpush1.bf16.msra.mxu0 0
      %448 = vmatprep.subr.bf16.mxu0 0
      %449 = vmatpush1.bf16.msra.mxu0 0
      %450 = vmatprep.subr.bf16.mxu0 0
      %451 = vmatpush1.bf16.msra.mxu0 0
      %452 = vmatprep.mubr.bf16.mxu0 0
      %453 = vmatmul.mubr.bf16.gmra.mrb[0].mxu0 %v409
      %v454 = vpop.f32.mrb[0].mxu0
      %v455 = vadd.f32 0.0, %v454
      %v456 = vpop.f32.mrb[0].mxu0
      %v457 = vpop.f32.mrb[0].mxu0
      %v458 = vadd.f32 0.0, %v457
      %v459 = vpop.f32.mrb[0].mxu0
      %460 = vmatprep.mubr.bf16.mxu0 0
      %461 = vmatmul.mubr.bf16.gmra.mrb[0].mxu0 %v412
      %v462 = vpop.f32.mrb[0].mxu0
      %v463 = vadd.f32 0.0, %v462
      %v464 = vpop.f32.mrb[0].mxu0
      %v465 = vpop.f32.mrb[0].mxu0
      %v466 = vadd.f32 0.0, %v465
      %v467 = vpop.f32.mrb[0].mxu0
      %468 = vmatprep.mubr.bf16.mxu0 0
      %469 = vmatmul.mubr.bf16.gmra.mrb[0].mxu0 %v415
      %v470 = vpop.f32.mrb[0].mxu0
      %v471 = vadd.f32 0.0, %v470
      %v472 = vpop.f32.mrb[0].mxu0
      %v473 = vpop.f32.mrb[0].mxu0
      %v474 = vadd.f32 0.0, %v473
      %v475 = vpop.f32.mrb[0].mxu0
      %476 = vmatprep.mubr.bf16.mxu0 0
      %477 = vmatmul.mubr.bf16.gmra.mrb[0].mxu0 %v418
      %v478 = vpop.f32.mrb[0].mxu0
      %v479 = vadd.f32 0.0, %v478
      %v480 = vpop.f32.mrb[0].mxu0
      %v481 = vpop.f32.mrb[0].mxu0
      %v482 = vadd.f32 0.0, %v481
      %v483 = vpop.f32.mrb[0].mxu0
      %484 = vdwg.mxu0
      %485 = vrot.lane.b32.xlu0 %v169, 96
      %v486 = vpop.permute.xlu0 %485
      %487 = vrot.lane.b32.xlu0 %v170, 96
      %v488 = vpop.permute.xlu0 %487
      %489 = vrot.lane.b32.xlu0 %v171, 96
      %v490 = vpop.permute.xlu0 %489
      %491 = vrot.lane.b32.xlu0 %v172, 96
      %v492 = vpop.permute.xlu0 %491
      %493 = vrot.lane.b32.xlu0 %v181, 96
      %v494 = vpop.permute.xlu0 %493
      %495 = vrot.lane.b32.xlu0 %v182, 96
      %v496 = vpop.permute.xlu0 %495
      %497 = vrot.lane.b32.xlu0 %v183, 96
      %v498 = vpop.permute.xlu0 %497
      %499 = vrot.lane.b32.xlu0 %v184, 96
      %v500 = vpop.permute.xlu0 %499
      %v502 = vsel %vm185, %v486, 0
      %v505 = vsel %vm185, %v488, 0
      %v508 = vsel %vm185, %v490, 0
      %v511 = vsel %vm185, %v492, 0
      %v514 = vsel %vm185, %v494, 0
      %v517 = vsel %vm185, %v496, 0
      %v520 = vsel %vm185, %v498, 0
      %v523 = vsel %vm185, %v500, 0
      %525 = vmatprep.subr.bf16.mxu0 0
      %526 = vmatpush1.bf16.xpose.msra.mxu0 %v514
      %527 = vmatprep.subr.bf16.mxu0 0
      %528 = vmatpush1.bf16.xpose.msra.mxu0 %v517
      %529 = vmatprep.subr.bf16.mxu0 0
      %530 = vmatpush1.bf16.xpose.msra.mxu0 %v520
      %531 = vmatprep.subr.bf16.mxu0 0
      %532 = vmatpush1.bf16.xpose.msra.mxu0 %v523
      %533 = vmatprep.subr.bf16.mxu0 0
      %534 = vmatpush1.bf16.xpose.msra.mxu0 0
      %535 = vmatprep.subr.bf16.mxu0 0
      %536 = vmatpush1.bf16.xpose.msra.mxu0 0
      %537 = vmatprep.subr.bf16.mxu0 0
      %538 = vmatpush1.bf16.xpose.msra.mxu0 0
      %539 = vmatprep.subr.bf16.mxu0 0
      %540 = vmatpush1.bf16.xpose.msra.mxu0 0
      %541 = vmatprep.subr.bf16.mxu0 0
      %542 = vmatpush1.bf16.xpose.msra.mxu0 0
      %543 = vmatprep.subr.bf16.mxu0 0
      %544 = vmatpush1.bf16.xpose.msra.mxu0 0
      %545 = vmatprep.subr.bf16.mxu0 0
      %546 = vmatpush1.bf16.xpose.msra.mxu0 0
      %547 = vmatprep.subr.bf16.mxu0 0
      %548 = vmatpush1.bf16.xpose.msra.mxu0 0
      %549 = vmatprep.subr.bf16.mxu0 0
      %550 = vmatpush1.bf16.xpose.msra.mxu0 0
      %551 = vmatprep.subr.bf16.mxu0 0
      %552 = vmatpush1.bf16.xpose.msra.mxu0 0
      %553 = vmatprep.subr.bf16.mxu0 0
      %554 = vmatpush1.bf16.xpose.msra.mxu0 0
      %555 = vmatprep.subr.bf16.mxu0 0
      %556 = vmatpush1.bf16.xpose.msra.mxu0 0
      %557 = vmatprep.mubr.bf16.mxu0 0
      %558 = vmatmul.mubr.bf16.gmra.mrb[0].mxu0 %v502
      %v559 = vpop.f32.mrb[0].mxu0
      %v560 = vadd.f32 0.0, %v559
      %v561 = vpop.f32.mrb[0].mxu0
      %v562 = vpop.f32.mrb[0].mxu0
      %v563 = vadd.f32 0.0, %v562
      %v564 = vpop.f32.mrb[0].mxu0
      %565 = vmatprep.mubr.bf16.mxu0 0
      %566 = vmatmul.mubr.bf16.gmra.mrb[0].mxu0 %v505
      %v567 = vpop.f32.mrb[0].mxu0
      %v568 = vadd.f32 0.0, %v567
      %v569 = vpop.f32.mrb[0].mxu0
      %v570 = vpop.f32.mrb[0].mxu0
      %v571 = vadd.f32 0.0, %v570
      %v572 = vpop.f32.mrb[0].mxu0
      %573 = vmatprep.mubr.bf16.mxu0 0
      %574 = vmatmul.mubr.bf16.gmra.mrb[0].mxu0 %v508
      %v575 = vpop.f32.mrb[0].mxu0
      %v576 = vadd.f32 0.0, %v575
      %v577 = vpop.f32.mrb[0].mxu0
      %v578 = vpop.f32.mrb[0].mxu0
      %v579 = vadd.f32 0.0, %v578
      %v580 = vpop.f32.mrb[0].mxu0
      %581 = vmatprep.mubr.bf16.mxu0 0
      %582 = vmatmul.mubr.bf16.gmra.mrb[0].mxu0 %v511
      %v583 = vpop.f32.mrb[0].mxu0
      %v584 = vadd.f32 0.0, %v583
      %v585 = vpop.f32.mrb[0].mxu0
      %v586 = vpop.f32.mrb[0].mxu0
      %v587 = vadd.f32 0.0, %v586
      %v588 = vpop.f32.mrb[0].mxu0
      %589 = vdwg.mxu0
      %v590 = vmul.f32 %v560, 0.17677669
      %v591 = vmul.f32 %v563, 0.17677669
      %v592 = vmul.f32 %v568, 0.17677669
      %v593 = vmul.f32 %v571, 0.17677669
      %v594 = vmul.f32 %v576, 0.17677669
      %v595 = vmul.f32 %v579, 0.17677669
      %v596 = vmul.f32 %v584, 0.17677669
      %v597 = vmul.f32 %v587, 0.17677669
      %v598 = vsel %vm145, -inf, %v590
      %v599 = vsel %vm146, -inf, %v591
      %v600 = vsel %vm147, -inf, %v592
      %v601 = vsel %vm148, -inf, %v593
      %v602 = vsel %vm149, -inf, %v594
      %v603 = vsel %vm150, -inf, %v595
      %v604 = vsel %vm151, -inf, %v596
      %v605 = vsel %vm152, -inf, %v597
      %v606 = vsel %vm291, %v598, -inf
      %607 = vmax.xlane.f32.xlu0 %v606
      %v608 = vpop.xlane.xlu0 %607
      %v609 = vsel %vm291, %v599, -inf
      %610 = vmax.xlane.f32.xlu0 %v609
      %v611 = vpop.xlane.xlu0 %610
      %v612 = vsel %vm291, %v600, -inf
      %613 = vmax.xlane.f32.xlu0 %v612
      %v614 = vpop.xlane.xlu0 %613
      %v615 = vsel %vm291, %v601, -inf
      %616 = vmax.xlane.f32.xlu0 %v615
      %v617 = vpop.xlane.xlu0 %616
      %v618 = vsel %vm291, %v602, -inf
      %619 = vmax.xlane.f32.xlu0 %v618
      %v620 = vpop.xlane.xlu0 %619
      %v621 = vsel %vm291, %v603, -inf
      %622 = vmax.xlane.f32.xlu0 %v621
      %v623 = vpop.xlane.xlu0 %622
      %v624 = vsel %vm291, %v604, -inf
      %625 = vmax.xlane.f32.xlu0 %v624
      %v626 = vpop.xlane.xlu0 %625
      %v627 = vsel %vm291, %v605, -inf
      %628 = vmax.xlane.f32.xlu0 %v627
      %v629 = vpop.xlane.xlu0 %628
      %v630 = vsub.f32 %v598, %v608
      %v631 = vsub.f32 %v599, %v611
      %v632 = vsub.f32 %v600, %v614
      %v633 = vsub.f32 %v601, %v617
      %v634 = vsub.f32 %v602, %v620
      %v635 = vsub.f32 %v603, %v623
      %v636 = vsub.f32 %v604, %v626
      %v637 = vsub.f32 %v605, %v629
      %v638 = vmul.f32 %v630, 1.442695
      %v639 = vpow.pop %v638
      %v640 = vmul.f32 %v631, 1.442695
      %v641 = vpow.pop %v640
      %v642 = vmul.f32 %v632, 1.442695
      %v643 = vpow.pop %v642
      %v644 = vmul.f32 %v633, 1.442695
      %v645 = vpow.pop %v644
      %v646 = vmul.f32 %v634, 1.442695
      %v647 = vpow.pop %v646
      %v648 = vmul.f32 %v635, 1.442695
      %v649 = vpow.pop %v648
      %v650 = vmul.f32 %v636, 1.442695
      %v651 = vpow.pop %v650
      %v652 = vmul.f32 %v637, 1.442695
      %v653 = vpow.pop %v652
      %v654 = vsel %vm291, %v639, 0.0
      %655 = vadd.xlane.f32.xlu0 %v654
      %v656 = vpop.xlane.xlu0 %655
      %v657 = vsel %vm291, %v641, 0.0
      %658 = vadd.xlane.f32.xlu0 %v657
      %v659 = vpop.xlane.xlu0 %658
      %v660 = vsel %vm291, %v643, 0.0
      %661 = vadd.xlane.f32.xlu0 %v660
      %v662 = vpop.xlane.xlu0 %661
      %v663 = vsel %vm291, %v645, 0.0
      %664 = vadd.xlane.f32.xlu0 %v663
      %v665 = vpop.xlane.xlu0 %664
      %v666 = vsel %vm291, %v647, 0.0
      %667 = vadd.xlane.f32.xlu0 %v666
      %v668 = vpop.xlane.xlu0 %667
      %v669 = vsel %vm291, %v649, 0.0
      %670 = vadd.xlane.f32.xlu0 %v669
      %v671 = vpop.xlane.xlu0 %670
      %v672 = vsel %vm291, %v651, 0.0
      %673 = vadd.xlane.f32.xlu0 %v672
      %v674 = vpop.xlane.xlu0 %673
      %v675 = vsel %vm291, %v653, 0.0
      %676 = vadd.xlane.f32.xlu0 %v675
      %v677 = vpop.xlane.xlu0 %676
      %v678 = vrcp.pop %v656
      %v679 = vrcp.pop %v659
      %v680 = vrcp.pop %v662
      %v681 = vrcp.pop %v665
      %v682 = vrcp.pop %v668
      %v683 = vrcp.pop %v671
      %v684 = vrcp.pop %v674
      %v685 = vrcp.pop %v677
      %v686 = vmul.f32 %v639, %v678
      %v687 = vmul.f32 %v641, %v679
      %v688 = vmul.f32 %v643, %v680
      %v689 = vmul.f32 %v645, %v681
      %v690 = vmul.f32 %v647, %v682
      %v691 = vmul.f32 %v649, %v683
      %v692 = vmul.f32 %v651, %v684
      %v693 = vmul.f32 %v653, %v685
      %v694 = vpack.c.bf16 %v687, %v686
      %v695 = vpack.c.bf16 %v689, %v688
      %v696 = vpack.c.bf16 %v691, %v690
      %v697 = vpack.c.bf16 %v693, %v692
      %698 = vrot.lane.b32.xlu0 %v400, 96
      %v699 = vpop.permute.xlu0 %698
      %700 = vrot.lane.b32.xlu0 %v401, 96
      %v701 = vpop.permute.xlu0 %700
      %702 = vrot.lane.b32.xlu0 %v402, 96
      %v703 = vpop.permute.xlu0 %702
      %704 = vrot.lane.b32.xlu0 %v403, 96
      %v705 = vpop.permute.xlu0 %704
      %v711 = vsel %vm291, %v694, 0
      %v714 = vsel %vm291, %v695, 0
      %v717 = vsel %vm291, %v696, 0
      %v720 = vsel %vm291, %v697, 0
      %722 = vmatprep.subr.bf16.mxu0 0
      %723 = vmatpush1.bf16.msra.mxu0 %v699
      %724 = vmatprep.subr.bf16.mxu0 0
      %725 = vmatpush1.bf16.msra.mxu0 %v701
      %726 = vmatprep.subr.bf16.mxu0 0
      %727 = vmatpush1.bf16.msra.mxu0 %v703
      %728 = vmatprep.subr.bf16.mxu0 0
      %729 = vmatpush1.bf16.msra.mxu0 %v705
      %730 = vmatprep.subr.bf16.mxu0 0
      %731 = vmatpush1.bf16.msra.mxu0 0
      %732 = vmatprep.subr.bf16.mxu0 0
      %733 = vmatpush1.bf16.msra.mxu0 0
      %734 = vmatprep.subr.bf16.mxu0 0
      %735 = vmatpush1.bf16.msra.mxu0 0
      %736 = vmatprep.subr.bf16.mxu0 0
      %737 = vmatpush1.bf16.msra.mxu0 0
      %738 = vmatprep.subr.bf16.mxu0 0
      %739 = vmatpush1.bf16.msra.mxu0 0
      %740 = vmatprep.subr.bf16.mxu0 0
      %741 = vmatpush1.bf16.msra.mxu0 0
      %742 = vmatprep.subr.bf16.mxu0 0
      %743 = vmatpush1.bf16.msra.mxu0 0
      %744 = vmatprep.subr.bf16.mxu0 0
      %745 = vmatpush1.bf16.msra.mxu0 0
      %746 = vmatprep.subr.bf16.mxu0 0
      %747 = vmatpush1.bf16.msra.mxu0 0
      %748 = vmatprep.subr.bf16.mxu0 0
      %749 = vmatpush1.bf16.msra.mxu0 0
      %750 = vmatprep.subr.bf16.mxu0 0
      %751 = vmatpush1.bf16.msra.mxu0 0
      %752 = vmatprep.subr.bf16.mxu0 0
      %753 = vmatpush1.bf16.msra.mxu0 0
      %754 = vmatprep.mubr.bf16.mxu0 0
      %755 = vmatmul.mubr.bf16.gmra.mrb[0].mxu0 %v711
      %v756 = vpop.f32.mrb[0].mxu0
      %v757 = vadd.f32 0.0, %v756
      %v758 = vpop.f32.mrb[0].mxu0
      %v759 = vpop.f32.mrb[0].mxu0
      %v760 = vadd.f32 0.0, %v759
      %v761 = vpop.f32.mrb[0].mxu0
      %762 = vmatprep.mubr.bf16.mxu0 0
      %763 = vmatmul.mubr.bf16.gmra.mrb[0].mxu0 %v714
      %v764 = vpop.f32.mrb[0].mxu0
      %v765 = vadd.f32 0.0, %v764
      %v766 = vpop.f32.mrb[0].mxu0
      %v767 = vpop.f32.mrb[0].mxu0
      %v768 = vadd.f32 0.0, %v767
      %v769 = vpop.f32.mrb[0].mxu0
      %770 = vmatprep.mubr.bf16.mxu0 0
      %771 = vmatmul.mubr.bf16.gmra.mrb[0].mxu0 %v717
      %v772 = vpop.f32.mrb[0].mxu0
      %v773 = vadd.f32 0.0, %v772
      %v774 = vpop.f32.mrb[0].mxu0
      %v775 = vpop.f32.mrb[0].mxu0
      %v776 = vadd.f32 0.0, %v775
      %v777 = vpop.f32.mrb[0].mxu0
      %778 = vmatprep.mubr.bf16.mxu0 0
      %779 = vmatmul.mubr.bf16.gmra.mrb[0].mxu0 %v720
      %v780 = vpop.f32.mrb[0].mxu0
      %v781 = vadd.f32 0.0, %v780
      %v782 = vpop.f32.mrb[0].mxu0
      %v783 = vpop.f32.mrb[0].mxu0
      %v784 = vadd.f32 0.0, %v783
      %v785 = vpop.f32.mrb[0].mxu0
      %786 = vdwg.mxu0
      %787 = vrot.lane.b32.xlu0 %v169, 64
      %v788 = vpop.permute.xlu0 %787
      %789 = vrot.lane.b32.xlu0 %v170, 64
      %v790 = vpop.permute.xlu0 %789
      %791 = vrot.lane.b32.xlu0 %v171, 64
      %v792 = vpop.permute.xlu0 %791
      %793 = vrot.lane.b32.xlu0 %v172, 64
      %v794 = vpop.permute.xlu0 %793
      %795 = vrot.lane.b32.xlu0 %v181, 64
      %v796 = vpop.permute.xlu0 %795
      %797 = vrot.lane.b32.xlu0 %v182, 64
      %v798 = vpop.permute.xlu0 %797
      %799 = vrot.lane.b32.xlu0 %v183, 64
      %v800 = vpop.permute.xlu0 %799
      %801 = vrot.lane.b32.xlu0 %v184, 64
      %v802 = vpop.permute.xlu0 %801
      %v804 = vsel %vm185, %v788, 0
      %v807 = vsel %vm185, %v790, 0
      %v810 = vsel %vm185, %v792, 0
      %v813 = vsel %vm185, %v794, 0
      %v816 = vsel %vm185, %v796, 0
      %v819 = vsel %vm185, %v798, 0
      %v822 = vsel %vm185, %v800, 0
      %v825 = vsel %vm185, %v802, 0
      %827 = vmatprep.subr.bf16.mxu0 0
      %828 = vmatpush1.bf16.xpose.msra.mxu0 %v816
      %829 = vmatprep.subr.bf16.mxu0 0
      %830 = vmatpush1.bf16.xpose.msra.mxu0 %v819
      %831 = vmatprep.subr.bf16.mxu0 0
      %832 = vmatpush1.bf16.xpose.msra.mxu0 %v822
      %833 = vmatprep.subr.bf16.mxu0 0
      %834 = vmatpush1.bf16.xpose.msra.mxu0 %v825
      %835 = vmatprep.subr.bf16.mxu0 0
      %836 = vmatpush1.bf16.xpose.msra.mxu0 0
      %837 = vmatprep.subr.bf16.mxu0 0
      %838 = vmatpush1.bf16.xpose.msra.mxu0 0
      %839 = vmatprep.subr.bf16.mxu0 0
      %840 = vmatpush1.bf16.xpose.msra.mxu0 0
      %841 = vmatprep.subr.bf16.mxu0 0
      %842 = vmatpush1.bf16.xpose.msra.mxu0 0
      %843 = vmatprep.subr.bf16.mxu0 0
      %844 = vmatpush1.bf16.xpose.msra.mxu0 0
      %845 = vmatprep.subr.bf16.mxu0 0
      %846 = vmatpush1.bf16.xpose.msra.mxu0 0
      %847 = vmatprep.subr.bf16.mxu0 0
      %848 = vmatpush1.bf16.xpose.msra.mxu0 0
      %849 = vmatprep.subr.bf16.mxu0 0
      %850 = vmatpush1.bf16.xpose.msra.mxu0 0
      %851 = vmatprep.subr.bf16.mxu0 0
      %852 = vmatpush1.bf16.xpose.msra.mxu0 0
      %853 = vmatprep.subr.bf16.mxu0 0
      %854 = vmatpush1.bf16.xpose.msra.mxu0 0
      %855 = vmatprep.subr.bf16.mxu0 0
      %856 = vmatpush1.bf16.xpose.msra.mxu0 0
      %857 = vmatprep.subr.bf16.mxu0 0
      %858 = vmatpush1.bf16.xpose.msra.mxu0 0
      %859 = vmatprep.mubr.bf16.mxu0 0
      %860 = vmatmul.mubr.bf16.gmra.mrb[0].mxu0 %v804
      %v861 = vpop.f32.mrb[0].mxu0
      %v862 = vadd.f32 0.0, %v861
      %v863 = vpop.f32.mrb[0].mxu0
      %v864 = vpop.f32.mrb[0].mxu0
      %v865 = vadd.f32 0.0, %v864
      %v866 = vpop.f32.mrb[0].mxu0
      %867 = vmatprep.mubr.bf16.mxu0 0
      %868 = vmatmul.mubr.bf16.gmra.mrb[0].mxu0 %v807
      %v869 = vpop.f32.mrb[0].mxu0
      %v870 = vadd.f32 0.0, %v869
      %v871 = vpop.f32.mrb[0].mxu0
      %v872 = vpop.f32.mrb[0].mxu0
      %v873 = vadd.f32 0.0, %v872
      %v874 = vpop.f32.mrb[0].mxu0
      %875 = vmatprep.mubr.bf16.mxu0 0
      %876 = vmatmul.mubr.bf16.gmra.mrb[0].mxu0 %v810
      %v877 = vpop.f32.mrb[0].mxu0
      %v878 = vadd.f32 0.0, %v877
      %v879 = vpop.f32.mrb[0].mxu0
      %v880 = vpop.f32.mrb[0].mxu0
      %v881 = vadd.f32 0.0, %v880
      %v882 = vpop.f32.mrb[0].mxu0
      %883 = vmatprep.mubr.bf16.mxu0 0
      %884 = vmatmul.mubr.bf16.gmra.mrb[0].mxu0 %v813
      %v885 = vpop.f32.mrb[0].mxu0
      %v886 = vadd.f32 0.0, %v885
      %v887 = vpop.f32.mrb[0].mxu0
      %v888 = vpop.f32.mrb[0].mxu0
      %v889 = vadd.f32 0.0, %v888
      %v890 = vpop.f32.mrb[0].mxu0
      %891 = vdwg.mxu0
      %v892 = vmul.f32 %v862, 0.17677669
      %v893 = vmul.f32 %v865, 0.17677669
      %v894 = vmul.f32 %v870, 0.17677669
      %v895 = vmul.f32 %v873, 0.17677669
      %v896 = vmul.f32 %v878, 0.17677669
      %v897 = vmul.f32 %v881, 0.17677669
      %v898 = vmul.f32 %v886, 0.17677669
      %v899 = vmul.f32 %v889, 0.17677669
      %v900 = vsel %vm145, -inf, %v892
      %v901 = vsel %vm146, -inf, %v893
      %v902 = vsel %vm147, -inf, %v894
      %v903 = vsel %vm148, -inf, %v895
      %v904 = vsel %vm149, -inf, %v896
      %v905 = vsel %vm150, -inf, %v897
      %v906 = vsel %vm151, -inf, %v898
      %v907 = vsel %vm152, -inf, %v899
      %v908 = vsel %vm291, %v900, -inf
      %909 = vmax.xlane.f32.xlu0 %v908
      %v910 = vpop.xlane.xlu0 %909
      %v911 = vsel %vm291, %v901, -inf
      %912 = vmax.xlane.f32.xlu0 %v911
      %v913 = vpop.xlane.xlu0 %912
      %v914 = vsel %vm291, %v902, -inf
      %915 = vmax.xlane.f32.xlu0 %v914
      %v916 = vpop.xlane.xlu0 %915
      %v917 = vsel %vm291, %v903, -inf
      %918 = vmax.xlane.f32.xlu0 %v917
      %v919 = vpop.xlane.xlu0 %918
      %v920 = vsel %vm291, %v904, -inf
      %921 = vmax.xlane.f32.xlu0 %v920
      %v922 = vpop.xlane.xlu0 %921
      %v923 = vsel %vm291, %v905, -inf
      %924 = vmax.xlane.f32.xlu0 %v923
      %v925 = vpop.xlane.xlu0 %924
      %v926 = vsel %vm291, %v906, -inf
      %927 = vmax.xlane.f32.xlu0 %v926
      %v928 = vpop.xlane.xlu0 %927
      %v929 = vsel %vm291, %v907, -inf
      %930 = vmax.xlane.f32.xlu0 %v929
      %v931 = vpop.xlane.xlu0 %930
      %v932 = vsub.f32 %v900, %v910
      %v933 = vsub.f32 %v901, %v913
      %v934 = vsub.f32 %v902, %v916
      %v935 = vsub.f32 %v903, %v919
      %v936 = vsub.f32 %v904, %v922
      %v937 = vsub.f32 %v905, %v925
      %v938 = vsub.f32 %v906, %v928
      %v939 = vsub.f32 %v907, %v931
      %v940 = vmul.f32 %v932, 1.442695
      %v941 = vpow.pop %v940
      %v942 = vmul.f32 %v933, 1.442695
      %v943 = vpow.pop %v942
      %v944 = vmul.f32 %v934, 1.442695
      %v945 = vpow.pop %v944
      %v946 = vmul.f32 %v935, 1.442695
      %v947 = vpow.pop %v946
      %v948 = vmul.f32 %v936, 1.442695
      %v949 = vpow.pop %v948
      %v950 = vmul.f32 %v937, 1.442695
      %v951 = vpow.pop %v950
      %v952 = vmul.f32 %v938, 1.442695
      %v953 = vpow.pop %v952
      %v954 = vmul.f32 %v939, 1.442695
      %v955 = vpow.pop %v954
      %v956 = vsel %vm291, %v941, 0.0
      %957 = vadd.xlane.f32.xlu0 %v956
      %v958 = vpop.xlane.xlu0 %957
      %v959 = vsel %vm291, %v943, 0.0
      %960 = vadd.xlane.f32.xlu0 %v959
      %v961 = vpop.xlane.xlu0 %960
      %v962 = vsel %vm291, %v945, 0.0
      %963 = vadd.xlane.f32.xlu0 %v962
      %v964 = vpop.xlane.xlu0 %963
      %v965 = vsel %vm291, %v947, 0.0
      %966 = vadd.xlane.f32.xlu0 %v965
      %v967 = vpop.xlane.xlu0 %966
      %v968 = vsel %vm291, %v949, 0.0
      %969 = vadd.xlane.f32.xlu0 %v968
      %v970 = vpop.xlane.xlu0 %969
      %v971 = vsel %vm291, %v951, 0.0
      %972 = vadd.xlane.f32.xlu0 %v971
      %v973 = vpop.xlane.xlu0 %972
      %v974 = vsel %vm291, %v953, 0.0
      %975 = vadd.xlane.f32.xlu0 %v974
      %v976 = vpop.xlane.xlu0 %975
      %v977 = vsel %vm291, %v955, 0.0
      %978 = vadd.xlane.f32.xlu0 %v977
      %v979 = vpop.xlane.xlu0 %978
      %v980 = vrcp.pop %v958
      %v981 = vrcp.pop %v961
      %v982 = vrcp.pop %v964
      %v983 = vrcp.pop %v967
      %v984 = vrcp.pop %v970
      %v985 = vrcp.pop %v973
      %v986 = vrcp.pop %v976
      %v987 = vrcp.pop %v979
      %v988 = vmul.f32 %v941, %v980
      %v989 = vmul.f32 %v943, %v981
      %v990 = vmul.f32 %v945, %v982
      %v991 = vmul.f32 %v947, %v983
      %v992 = vmul.f32 %v949, %v984
      %v993 = vmul.f32 %v951, %v985
      %v994 = vmul.f32 %v953, %v986
      %v995 = vmul.f32 %v955, %v987
      %v996 = vpack.c.bf16 %v989, %v988
      %v997 = vpack.c.bf16 %v991, %v990
      %v998 = vpack.c.bf16 %v993, %v992
      %v999 = vpack.c.bf16 %v995, %v994
      %1000 = vrot.lane.b32.xlu0 %v400, 64
      %v1001 = vpop.permute.xlu0 %1000
      %1002 = vrot.lane.b32.xlu0 %v401, 64
      %v1003 = vpop.permute.xlu0 %1002
      %1004 = vrot.lane.b32.xlu0 %v402, 64
      %v1005 = vpop.permute.xlu0 %1004
      %1006 = vrot.lane.b32.xlu0 %v403, 64
      %v1007 = vpop.permute.xlu0 %1006
      %v1013 = vsel %vm291, %v996, 0
      %v1016 = vsel %vm291, %v997, 0
      %v1019 = vsel %vm291, %v998, 0
      %v1022 = vsel %vm291, %v999, 0
      %1024 = vmatprep.subr.bf16.mxu0 0
      %1025 = vmatpush1.bf16.msra.mxu0 %v1001
      %1026 = vmatprep.subr.bf16.mxu0 0
      %1027 = vmatpush1.bf16.msra.mxu0 %v1003
      %1028 = vmatprep.subr.bf16.mxu0 0
      %1029 = vmatpush1.bf16.msra.mxu0 %v1005
      %1030 = vmatprep.subr.bf16.mxu0 0
      %1031 = vmatpush1.bf16.msra.mxu0 %v1007
      %1032 = vmatprep.subr.bf16.mxu0 0
      %1033 = vmatpush1.bf16.msra.mxu0 0
      %1034 = vmatprep.subr.bf16.mxu0 0
      %1035 = vmatpush1.bf16.msra.mxu0 0
      %1036 = vmatprep.subr.bf16.mxu0 0
      %1037 = vmatpush1.bf16.msra.mxu0 0
      %1038 = vmatprep.subr.bf16.mxu0 0
      %1039 = vmatpush1.bf16.msra.mxu0 0
      %1040 = vmatprep.subr.bf16.mxu0 0
      %1041 = vmatpush1.bf16.msra.mxu0 0
      %1042 = vmatprep.subr.bf16.mxu0 0
      %1043 = vmatpush1.bf16.msra.mxu0 0
      %1044 = vmatprep.subr.bf16.mxu0 0
      %1045 = vmatpush1.bf16.msra.mxu0 0
      %1046 = vmatprep.subr.bf16.mxu0 0
      %1047 = vmatpush1.bf16.msra.mxu0 0
      %1048 = vmatprep.subr.bf16.mxu0 0
      %1049 = vmatpush1.bf16.msra.mxu0 0
      %1050 = vmatprep.subr.bf16.mxu0 0
      %1051 = vmatpush1.bf16.msra.mxu0 0
      %1052 = vmatprep.subr.bf16.mxu0 0
      %1053 = vmatpush1.bf16.msra.mxu0 0
      %1054 = vmatprep.subr.bf16.mxu0 0
      %1055 = vmatpush1.bf16.msra.mxu0 0
      %1056 = vmatprep.mubr.bf16.mxu0 0
      %1057 = vmatmul.mubr.bf16.gmra.mrb[0].mxu0 %v1013
      %v1058 = vpop.f32.mrb[0].mxu0
      %v1059 = vadd.f32 0.0, %v1058
      %v1060 = vpop.f32.mrb[0].mxu0
      %v1061 = vpop.f32.mrb[0].mxu0
      %v1062 = vadd.f32 0.0, %v1061
      %v1063 = vpop.f32.mrb[0].mxu0
      %1064 = vmatprep.mubr.bf16.mxu0 0
      %1065 = vmatmul.mubr.bf16.gmra.mrb[0].mxu0 %v1016
      %v1066 = vpop.f32.mrb[0].mxu0
      %v1067 = vadd.f32 0.0, %v1066
      %v1068 = vpop.f32.mrb[0].mxu0
      %v1069 = vpop.f32.mrb[0].mxu0
      %v1070 = vadd.f32 0.0, %v1069
      %v1071 = vpop.f32.mrb[0].mxu0
      %1072 = vmatprep.mubr.bf16.mxu0 0
      %1073 = vmatmul.mubr.bf16.gmra.mrb[0].mxu0 %v1019
      %v1074 = vpop.f32.mrb[0].mxu0
      %v1075 = vadd.f32 0.0, %v1074
      %v1076 = vpop.f32.mrb[0].mxu0
      %v1077 = vpop.f32.mrb[0].mxu0
      %v1078 = vadd.f32 0.0, %v1077
      %v1079 = vpop.f32.mrb[0].mxu0
      %1080 = vmatprep.mubr.bf16.mxu0 0
      %1081 = vmatmul.mubr.bf16.gmra.mrb[0].mxu0 %v1022
      %v1082 = vpop.f32.mrb[0].mxu0
      %v1083 = vadd.f32 0.0, %v1082
      %v1084 = vpop.f32.mrb[0].mxu0
      %v1085 = vpop.f32.mrb[0].mxu0
      %v1086 = vadd.f32 0.0, %v1085
      %v1087 = vpop.f32.mrb[0].mxu0
      %1088 = vdwg.mxu0
      %1089 = vrot.lane.b32.xlu0 %v169, 32
      %v1090 = vpop.permute.xlu0 %1089
      %1091 = vrot.lane.b32.xlu0 %v170, 32
      %v1092 = vpop.permute.xlu0 %1091
      %1093 = vrot.lane.b32.xlu0 %v171, 32
      %v1094 = vpop.permute.xlu0 %1093
      %1095 = vrot.lane.b32.xlu0 %v172, 32
      %v1096 = vpop.permute.xlu0 %1095
      %1097 = vrot.lane.b32.xlu0 %v181, 32
      %v1098 = vpop.permute.xlu0 %1097
      %1099 = vrot.lane.b32.xlu0 %v182, 32
      %v1100 = vpop.permute.xlu0 %1099
      %1101 = vrot.lane.b32.xlu0 %v183, 32
      %v1102 = vpop.permute.xlu0 %1101
      %1103 = vrot.lane.b32.xlu0 %v184, 32
      %v1104 = vpop.permute.xlu0 %1103
      %v1106 = vsel %vm185, %v1090, 0
      %v1109 = vsel %vm185, %v1092, 0
      %v1112 = vsel %vm185, %v1094, 0
      %v1115 = vsel %vm185, %v1096, 0
      %v1118 = vsel %vm185, %v1098, 0
      %v1121 = vsel %vm185, %v1100, 0
      %v1124 = vsel %vm185, %v1102, 0
      %v1127 = vsel %vm185, %v1104, 0
      %1129 = vmatprep.subr.bf16.mxu0 0
      %1130 = vmatpush1.bf16.xpose.msra.mxu0 %v1118
      %1131 = vmatprep.subr.bf16.mxu0 0
      %1132 = vmatpush1.bf16.xpose.msra.mxu0 %v1121
      %1133 = vmatprep.subr.bf16.mxu0 0
      %1134 = vmatpush1.bf16.xpose.msra.mxu0 %v1124
      %1135 = vmatprep.subr.bf16.mxu0 0
      %1136 = vmatpush1.bf16.xpose.msra.mxu0 %v1127
      %1137 = vmatprep.subr.bf16.mxu0 0
      %1138 = vmatpush1.bf16.xpose.msra.mxu0 0
      %1139 = vmatprep.subr.bf16.mxu0 0
      %1140 = vmatpush1.bf16.xpose.msra.mxu0 0
      %1141 = vmatprep.subr.bf16.mxu0 0
      %1142 = vmatpush1.bf16.xpose.msra.mxu0 0
      %1143 = vmatprep.subr.bf16.mxu0 0
      %1144 = vmatpush1.bf16.xpose.msra.mxu0 0
      %1145 = vmatprep.subr.bf16.mxu0 0
      %1146 = vmatpush1.bf16.xpose.msra.mxu0 0
      %1147 = vmatprep.subr.bf16.mxu0 0
      %1148 = vmatpush1.bf16.xpose.msra.mxu0 0
      %1149 = vmatprep.subr.bf16.mxu0 0
      %1150 = vmatpush1.bf16.xpose.msra.mxu0 0
      %1151 = vmatprep.subr.bf16.mxu0 0
      %1152 = vmatpush1.bf16.xpose.msra.mxu0 0
      %1153 = vmatprep.subr.bf16.mxu0 0
      %1154 = vmatpush1.bf16.xpose.msra.mxu0 0
      %1155 = vmatprep.subr.bf16.mxu0 0
      %1156 = vmatpush1.bf16.xpose.msra.mxu0 0
      %1157 = vmatprep.subr.bf16.mxu0 0
      %1158 = vmatpush1.bf16.xpose.msra.mxu0 0
      %1159 = vmatprep.subr.bf16.mxu0 0
      %1160 = vmatpush1.bf16.xpose.msra.mxu0 0
      %1161 = vmatprep.mubr.bf16.mxu0 0
      %1162 = vmatmul.mubr.bf16.gmra.mrb[0].mxu0 %v1106
      %v1163 = vpop.f32.mrb[0].mxu0
      %v1164 = vadd.f32 0.0, %v1163
      %v1165 = vpop.f32.mrb[0].mxu0
      %v1166 = vpop.f32.mrb[0].mxu0
      %v1167 = vadd.f32 0.0, %v1166
      %v1168 = vpop.f32.mrb[0].mxu0
      %1169 = vmatprep.mubr.bf16.mxu0 0
      %1170 = vmatmul.mubr.bf16.gmra.mrb[0].mxu0 %v1109
      %v1171 = vpop.f32.mrb[0].mxu0
      %v1172 = vadd.f32 0.0, %v1171
      %v1173 = vpop.f32.mrb[0].mxu0
      %v1174 = vpop.f32.mrb[0].mxu0
      %v1175 = vadd.f32 0.0, %v1174
      %v1176 = vpop.f32.mrb[0].mxu0
      %1177 = vmatprep.mubr.bf16.mxu0 0
      %1178 = vmatmul.mubr.bf16.gmra.mrb[0].mxu0 %v1112
      %v1179 = vpop.f32.mrb[0].mxu0
      %v1180 = vadd.f32 0.0, %v1179
      %v1181 = vpop.f32.mrb[0].mxu0
      %v1182 = vpop.f32.mrb[0].mxu0
      %v1183 = vadd.f32 0.0, %v1182
      %v1184 = vpop.f32.mrb[0].mxu0
      %1185 = vmatprep.mubr.bf16.mxu0 0
      %1186 = vmatmul.mubr.bf16.gmra.mrb[0].mxu0 %v1115
      %v1187 = vpop.f32.mrb[0].mxu0
      %v1188 = vadd.f32 0.0, %v1187
      %v1189 = vpop.f32.mrb[0].mxu0
      %v1190 = vpop.f32.mrb[0].mxu0
      %v1191 = vadd.f32 0.0, %v1190
      %v1192 = vpop.f32.mrb[0].mxu0
      %1193 = vdwg.mxu0
      %v1194 = vmul.f32 %v1164, 0.17677669
      %v1195 = vmul.f32 %v1167, 0.17677669
      %v1196 = vmul.f32 %v1172, 0.17677669
      %v1197 = vmul.f32 %v1175, 0.17677669
      %v1198 = vmul.f32 %v1180, 0.17677669
      %v1199 = vmul.f32 %v1183, 0.17677669
      %v1200 = vmul.f32 %v1188, 0.17677669
      %v1201 = vmul.f32 %v1191, 0.17677669
      %v1202 = vsel %vm145, -inf, %v1194
      %v1203 = vsel %vm146, -inf, %v1195
      %v1204 = vsel %vm147, -inf, %v1196
      %v1205 = vsel %vm148, -inf, %v1197
      %v1206 = vsel %vm149, -inf, %v1198
      %v1207 = vsel %vm150, -inf, %v1199
      %v1208 = vsel %vm151, -inf, %v1200
      %v1209 = vsel %vm152, -inf, %v1201
      %v1210 = vsel %vm291, %v1202, -inf
      %1211 = vmax.xlane.f32.xlu0 %v1210
      %v1212 = vpop.xlane.xlu0 %1211
      %v1213 = vsel %vm291, %v1203, -inf
      %1214 = vmax.xlane.f32.xlu0 %v1213
      %v1215 = vpop.xlane.xlu0 %1214
      %v1216 = vsel %vm291, %v1204, -inf
      %1217 = vmax.xlane.f32.xlu0 %v1216
      %v1218 = vpop.xlane.xlu0 %1217
      %v1219 = vsel %vm291, %v1205, -inf
      %1220 = vmax.xlane.f32.xlu0 %v1219
      %v1221 = vpop.xlane.xlu0 %1220
      %v1222 = vsel %vm291, %v1206, -inf
      %1223 = vmax.xlane.f32.xlu0 %v1222
      %v1224 = vpop.xlane.xlu0 %1223
      %v1225 = vsel %vm291, %v1207, -inf
      %1226 = vmax.xlane.f32.xlu0 %v1225
      %v1227 = vpop.xlane.xlu0 %1226
      %v1228 = vsel %vm291, %v1208, -inf
      %1229 = vmax.xlane.f32.xlu0 %v1228
      %v1230 = vpop.xlane.xlu0 %1229
      %v1231 = vsel %vm291, %v1209, -inf
      %1232 = vmax.xlane.f32.xlu0 %v1231
      %v1233 = vpop.xlane.xlu0 %1232
      %v1234 = vsub.f32 %v1202, %v1212
      %v1235 = vsub.f32 %v1203, %v1215
      %v1236 = vsub.f32 %v1204, %v1218
      %v1237 = vsub.f32 %v1205, %v1221
      %v1238 = vsub.f32 %v1206, %v1224
      %v1239 = vsub.f32 %v1207, %v1227
      %v1240 = vsub.f32 %v1208, %v1230
      %v1241 = vsub.f32 %v1209, %v1233
      %v1242 = vmul.f32 %v1234, 1.442695
      %v1243 = vpow.pop %v1242
      %v1244 = vmul.f32 %v1235, 1.442695
      %v1245 = vpow.pop %v1244
      %v1246 = vmul.f32 %v1236, 1.442695
      %v1247 = vpow.pop %v1246
      %v1248 = vmul.f32 %v1237, 1.442695
      %v1249 = vpow.pop %v1248
      %v1250 = vmul.f32 %v1238, 1.442695
      %v1251 = vpow.pop %v1250
      %v1252 = vmul.f32 %v1239, 1.442695
      %v1253 = vpow.pop %v1252
      %v1254 = vmul.f32 %v1240, 1.442695
      %v1255 = vpow.pop %v1254
      %v1256 = vmul.f32 %v1241, 1.442695
      %v1257 = vpow.pop %v1256
      %v1258 = vsel %vm291, %v1243, 0.0
      %1259 = vadd.xlane.f32.xlu0 %v1258
      %v1260 = vpop.xlane.xlu0 %1259
      %v1261 = vsel %vm291, %v1245, 0.0
      %1262 = vadd.xlane.f32.xlu0 %v1261
      %v1263 = vpop.xlane.xlu0 %1262
      %v1264 = vsel %vm291, %v1247, 0.0
      %1265 = vadd.xlane.f32.xlu0 %v1264
      %v1266 = vpop.xlane.xlu0 %1265
      %v1267 = vsel %vm291, %v1249, 0.0
      %1268 = vadd.xlane.f32.xlu0 %v1267
      %v1269 = vpop.xlane.xlu0 %1268
      %v1270 = vsel %vm291, %v1251, 0.0
      %1271 = vadd.xlane.f32.xlu0 %v1270
      %v1272 = vpop.xlane.xlu0 %1271
      %v1273 = vsel %vm291, %v1253, 0.0
      %1274 = vadd.xlane.f32.xlu0 %v1273
      %v1275 = vpop.xlane.xlu0 %1274
      %v1276 = vsel %vm291, %v1255, 0.0
      %1277 = vadd.xlane.f32.xlu0 %v1276
      %v1278 = vpop.xlane.xlu0 %1277
      %v1279 = vsel %vm291, %v1257, 0.0
      %1280 = vadd.xlane.f32.xlu0 %v1279
      %v1281 = vpop.xlane.xlu0 %1280
      %v1282 = vrcp.pop %v1260
      %v1283 = vrcp.pop %v1263
      %v1284 = vrcp.pop %v1266
      %v1285 = vrcp.pop %v1269
      %v1286 = vrcp.pop %v1272
      %v1287 = vrcp.pop %v1275
      %v1288 = vrcp.pop %v1278
      %v1289 = vrcp.pop %v1281
      %v1290 = vmul.f32 %v1243, %v1282
      %v1291 = vmul.f32 %v1245, %v1283
      %v1292 = vmul.f32 %v1247, %v1284
      %v1293 = vmul.f32 %v1249, %v1285
      %v1294 = vmul.f32 %v1251, %v1286
      %v1295 = vmul.f32 %v1253, %v1287
      %v1296 = vmul.f32 %v1255, %v1288
      %v1297 = vmul.f32 %v1257, %v1289
      %v1298 = vpack.c.bf16 %v1291, %v1290
      %v1299 = vpack.c.bf16 %v1293, %v1292
      %v1300 = vpack.c.bf16 %v1295, %v1294
      %v1301 = vpack.c.bf16 %v1297, %v1296
      %1302 = vrot.lane.b32.xlu0 %v400, 32
      %v1303 = vpop.permute.xlu0 %1302
      %1304 = vrot.lane.b32.xlu0 %v401, 32
      %v1305 = vpop.permute.xlu0 %1304
      %1306 = vrot.lane.b32.xlu0 %v402, 32
      %v1307 = vpop.permute.xlu0 %1306
      %1308 = vrot.lane.b32.xlu0 %v403, 32
      %v1309 = vpop.permute.xlu0 %1308
      %v1315 = vsel %vm291, %v1298, 0
      %v1318 = vsel %vm291, %v1299, 0
      %v1321 = vsel %vm291, %v1300, 0
      %v1324 = vsel %vm291, %v1301, 0
      %1326 = vmatprep.subr.bf16.mxu0 0
      %1327 = vmatpush1.bf16.msra.mxu0 %v1303
      %1328 = vmatprep.subr.bf16.mxu0 0
      %1329 = vmatpush1.bf16.msra.mxu0 %v1305
      %1330 = vmatprep.subr.bf16.mxu0 0
      %1331 = vmatpush1.bf16.msra.mxu0 %v1307
      %1332 = vmatprep.subr.bf16.mxu0 0
      %1333 = vmatpush1.bf16.msra.mxu0 %v1309
      %1334 = vmatprep.subr.bf16.mxu0 0
      %1335 = vmatpush1.bf16.msra.mxu0 0
      %1336 = vmatprep.subr.bf16.mxu0 0
      %1337 = vmatpush1.bf16.msra.mxu0 0
      %1338 = vmatprep.subr.bf16.mxu0 0
      %1339 = vmatpush1.bf16.msra.mxu0 0
      %1340 = vmatprep.subr.bf16.mxu0 0
      %1341 = vmatpush1.bf16.msra.mxu0 0
      %1342 = vmatprep.subr.bf16.mxu0 0
      %1343 = vmatpush1.bf16.msra.mxu0 0
      %1344 = vmatprep.subr.bf16.mxu0 0
      %1345 = vmatpush1.bf16.msra.mxu0 0
      %1346 = vmatprep.subr.bf16.mxu0 0
      %1347 = vmatpush1.bf16.msra.mxu0 0
      %1348 = vmatprep.subr.bf16.mxu0 0
      %1349 = vmatpush1.bf16.msra.mxu0 0
      %1350 = vmatprep.subr.bf16.mxu0 0
      %1351 = vmatpush1.bf16.msra.mxu0 0
      %1352 = vmatprep.subr.bf16.mxu0 0
      %1353 = vmatpush1.bf16.msra.mxu0 0
      %1354 = vmatprep.subr.bf16.mxu0 0
      %1355 = vmatpush1.bf16.msra.mxu0 0
      %1356 = vmatprep.subr.bf16.mxu0 0
      %1357 = vmatpush1.bf16.msra.mxu0 0
      %1358 = vmatprep.mubr.bf16.mxu0 0
      %1359 = vmatmul.mubr.bf16.gmra.mrb[0].mxu0 %v1315
      %v1360 = vpop.f32.mrb[0].mxu0
      %v1361 = vadd.f32 0.0, %v1360
      %v1362 = vpop.f32.mrb[0].mxu0
      %v1363 = vpop.f32.mrb[0].mxu0
      %v1364 = vadd.f32 0.0, %v1363
      %v1365 = vpop.f32.mrb[0].mxu0
      %1366 = vmatprep.mubr.bf16.mxu0 0
      %1367 = vmatmul.mubr.bf16.gmra.mrb[0].mxu0 %v1318
      %v1368 = vpop.f32.mrb[0].mxu0
      %v1369 = vadd.f32 0.0, %v1368
      %v1370 = vpop.f32.mrb[0].mxu0
      %v1371 = vpop.f32.mrb[0].mxu0
      %v1372 = vadd.f32 0.0, %v1371
      %v1373 = vpop.f32.mrb[0].mxu0
      %1374 = vmatprep.mubr.bf16.mxu0 0
      %1375 = vmatmul.mubr.bf16.gmra.mrb[0].mxu0 %v1321
      %v1376 = vpop.f32.mrb[0].mxu0
      %v1377 = vadd.f32 0.0, %v1376
      %v1378 = vpop.f32.mrb[0].mxu0
      %v1379 = vpop.f32.mrb[0].mxu0
      %v1380 = vadd.f32 0.0, %v1379
      %v1381 = vpop.f32.mrb[0].mxu0
      %1382 = vmatprep.mubr.bf16.mxu0 0
      %1383 = vmatmul.mubr.bf16.gmra.mrb[0].mxu0 %v1324
      %v1384 = vpop.f32.mrb[0].mxu0
      %v1385 = vadd.f32 0.0, %v1384
      %v1386 = vpop.f32.mrb[0].mxu0
      %v1387 = vpop.f32.mrb[0].mxu0
      %v1388 = vadd.f32 0.0, %v1387
      %v1389 = vpop.f32.mrb[0].mxu0
      %1390 = vdwg.mxu0
      %1399 = vrot.lane.b32.xlu0 %v757, 32
      %v1400 = vpop.permute.xlu0 %1399
      %1401 = vrot.lane.b32.xlu0 %v760, 32
      %v1402 = vpop.permute.xlu0 %1401
      %1403 = vrot.lane.b32.xlu0 %v765, 32
      %v1404 = vpop.permute.xlu0 %1403
      %1405 = vrot.lane.b32.xlu0 %v768, 32
      %v1406 = vpop.permute.xlu0 %1405
      %1407 = vrot.lane.b32.xlu0 %v773, 32
      %v1408 = vpop.permute.xlu0 %1407
      %1409 = vrot.lane.b32.xlu0 %v776, 32
      %v1410 = vpop.permute.xlu0 %1409
      %1411 = vrot.lane.b32.xlu0 %v781, 32
      %v1412 = vpop.permute.xlu0 %1411
      %1413 = vrot.lane.b32.xlu0 %v784, 32
      %v1414 = vpop.permute.xlu0 %1413
      %1431 = vrot.lane.b32.xlu0 %v1059, 64
      %v1432 = vpop.permute.xlu0 %1431
      %1433 = vrot.lane.b32.xlu0 %v1062, 64
      %v1434 = vpop.permute.xlu0 %1433
      %1435 = vrot.lane.b32.xlu0 %v1067, 64
      %v1436 = vpop.permute.xlu0 %1435
      %1437 = vrot.lane.b32.xlu0 %v1070, 64
      %v1438 = vpop.permute.xlu0 %1437
      %1439 = vrot.lane.b32.xlu0 %v1075, 64
      %v1440 = vpop.permute.xlu0 %1439
      %1441 = vrot.lane.b32.xlu0 %v1078, 64
      %v1442 = vpop.permute.xlu0 %1441
      %1443 = vrot.lane.b32.xlu0 %v1083, 64
      %v1444 = vpop.permute.xlu0 %1443
      %1445 = vrot.lane.b32.xlu0 %v1086, 64
      %v1446 = vpop.permute.xlu0 %1445
      %1463 = vrot.lane.b32.xlu0 %v1361, 96
      %v1464 = vpop.permute.xlu0 %1463
      %1465 = vrot.lane.b32.xlu0 %v1364, 96
      %v1466 = vpop.permute.xlu0 %1465
      %1467 = vrot.lane.b32.xlu0 %v1369, 96
      %v1468 = vpop.permute.xlu0 %1467
      %1469 = vrot.lane.b32.xlu0 %v1372, 96
      %v1470 = vpop.permute.xlu0 %1469
      %1471 = vrot.lane.b32.xlu0 %v1377, 96
      %v1472 = vpop.permute.xlu0 %1471
      %1473 = vrot.lane.b32.xlu0 %v1380, 96
      %v1474 = vpop.permute.xlu0 %1473
      %1475 = vrot.lane.b32.xlu0 %v1385, 96
      %v1476 = vpop.permute.xlu0 %1475
      %1477 = vrot.lane.b32.xlu0 %v1388, 96
      %v1478 = vpop.permute.xlu0 %1477
      %v1487 = vsel %vm185, %v455, %v1400
      %v1488 = vsel %vm185, %v458, %v1402
      %v1489 = vsel %vm185, %v463, %v1404
      %v1490 = vsel %vm185, %v466, %v1406
      %v1491 = vsel %vm185, %v471, %v1408
      %v1492 = vsel %vm185, %v474, %v1410
      %v1493 = vsel %vm185, %v479, %v1412
      %v1494 = vsel %vm185, %v482, %v1414
      %v1495 = vsel %vm291, %v1487, %v1432
      %v1496 = vsel %vm291, %v1488, %v1434
      %v1497 = vsel %vm291, %v1489, %v1436
      %v1498 = vsel %vm291, %v1490, %v1438
      %v1499 = vsel %vm291, %v1491, %v1440
      %v1500 = vsel %vm291, %v1492, %v1442
      %v1501 = vsel %vm291, %v1493, %v1444
      %v1502 = vsel %vm291, %v1494, %v1446
      %vm1503 = vcmask 785408
      %v1504 = vsel %vm1503, %v1495, %v1464
      %v1505 = vsel %vm1503, %v1496, %v1466
      %v1506 = vsel %vm1503, %v1497, %v1468
      %v1507 = vsel %vm1503, %v1498, %v1470
      %v1508 = vsel %vm1503, %v1499, %v1472
      %v1509 = vsel %vm1503, %v1500, %v1474
      %v1510 = vsel %vm1503, %v1501, %v1476
      %v1511 = vsel %vm1503, %v1502, %v1478
      %v1512 = vpack.c.bf16 %v1505, %v1504
      %v1513 = vpack.c.bf16 %v1507, %v1506
      %v1514 = vpack.c.bf16 %v1509, %v1508
      %v1515 = vpack.c.bf16 %v1511, %v1510
      %v1520 = vunpack.c.l.b16 %v1512
      %v1521 = vunpack.c.h.b16 %v1512
      %v1522 = vunpack.c.l.b16 %v1513
      %v1523 = vunpack.c.h.b16 %v1513
      %v1524 = vunpack.c.l.b16 %v1514
      %v1525 = vunpack.c.h.b16 %v1514
      %v1526 = vunpack.c.l.b16 %v1515
      %v1527 = vunpack.c.h.b16 %v1515
      %v1528 = vpack.c.b16 %v1520, %v1520
      %v1529 = vpack.c.b16 %v1521, %v1521
      %v1530 = vpack.c.b16 %v1522, %v1522
      %v1531 = vpack.c.b16 %v1523, %v1523
      %v1532 = vpack.c.b16 %v1524, %v1524
      %v1533 = vpack.c.b16 %v1525, %v1525
      %v1534 = vpack.c.b16 %v1526, %v1526
      %v1535 = vpack.c.b16 %v1527, %v1527
      %1544 = vst [vmem:[%s116] sm:$0xf] %v1528
      %1545 = vst [vmem:[%s116 + $0x4] sm:$0xf] %v1529
      %1546 = vst [vmem:[%s116 + $0x8] sm:$0xf] %v1530
      %1547 = vst [vmem:[%s116 + $0xc] sm:$0xf] %v1531
      %1548 = vst [vmem:[%s116 + $0x10] sm:$0xf] %v1532
      %1549 = vst [vmem:[%s116 + $0x14] sm:$0xf] %v1533
      %1550 = vst [vmem:[%s116 + $0x18] sm:$0xf] %v1534
      %1551 = vst [vmem:[%s116 + $0x1c] sm:$0xf] %v1535
      %p1552 = scmp.lt.s32.totalorder %s12, 1
      %s1553 = scalar_select %p1552, %s12, 1
      %s1554 = smul.addr %s1553, 8
      %s1555 = smul.addr %s1554, 4
      %s1556 = scalar_lea.vmem %s1, %s1555
      // Predicated region
      $region25: #{transformer_block.5} parent=23 // pred_check
        %p1557 = pneg %p56
      $region26: #{transformer_block.5} parent=23 // pred_check_branch
        %1559 = sbr.rel (%p1557) target = $region28
      $region27: #{transformer_block.5} parent=23 // pred_region
        _
      $region28: #{transformer_block.5} parent=23 // pred_fallthru
        _
    $region24: #{transformer_block.5} parent=5 // pred_fallthru
      _
    %p1560 = scmp.le.s32.totalorder 2, %s7
    // Predicated region
    $region29: #{transformer_block.5} parent=5 // pred_check
      %p1561 = pneg %p1560
    $region30: #{transformer_block.5} parent=5 // pred_check_branch
      %1563 = sbr.rel (%p1561) target = $region32
    $region31: #{transformer_block.5} parent=5 // pred_region
      %s1564 = ssub.s32 %s7, 2
      // Predicated region
      $region33: #{transformer_block.5} parent=31 // pred_check
        %p1565 = pneg %p62
      $region34: #{transformer_block.5} parent=31 // pred_check_branch
        %1567 = sbr.rel (%p1565) target = $region36
      $region35: #{transformer_block.5} parent=31 // pred_region
        %p1568 = scmp.lt.s32.totalorder %s13, 1
        %s1569 = scalar_select %p1568, %s13, 1
        %s1570 = smul.addr %s1569, 8
        %s1571 = smul.addr %s1570, 4
        %s1572 = scalar_lea.vmem %s1, %s1571
      $region36: #{transformer_block.5} parent=31 // pred_fallthru
        _
    $region32: #{transformer_block.5} parent=5 // pred_fallthru
      _
  $region6: #{transformer_block.5} parent=0 // loop_footer
    %s11 = sadd.s32 1, %s7
  $region7: #{transformer_block.5} parent=0 // loop_footer_branch
    %6 = sbr.rel target = $region3
  $region8: #{transformer_block.5} parent=0 // loop_exit
    _

// kernel: transformer_block.7
$region0: #{transformer_block.7}
  #allocation0 [shape = 'u32[]', space=smem, size = 0x4, offset = 0x4, fixed_abs, tag = 'smem constant byte address 0x4 - core index']
  #allocation1 [shape = 'u32[144,128]{1,0:T(1,128)}', space=vmem, size = 0x12000, scoped, tag = 'internal scratch']
  #allocation2 [shape = 'bf16[64,128]{1,0:T(16,128)(2,1)}', space=vmem, size = 0x4000, scoped, tag = 'scratch operand']
  %s0 = inlined_call_operand.vmem [shape: f32[128,128], index: 0, kind: input, shape index: {}]
  %s1 = inlined_call_operand.vmem [shape: f32[1,128], index: 1, kind: input, shape index: {}]
  %s2 = inlined_call_operand.vmem [shape: f32[1,128], index: 2, kind: input, shape index: {}]
  %s3 = inlined_call_operand.vmem [shape: bf16[128,512], index: 3, kind: input, shape index: {}]
  %s4 = inlined_call_operand.vmem [shape: f32[1,512], index: 4, kind: input, shape index: {}]
  %s5 = inlined_call_operand.vmem [shape: bf16[512,128], index: 5, kind: input, shape index: {}]
  %s6 = inlined_call_operand.vmem [shape: f32[1,128], index: 6, kind: input, shape index: {}]
  %s7 = inlined_call_operand.hbm [shape: f32[128,128], index: 7, kind: output, shape index: {}]
  %s8 = sld [smem:[#allocation0]]
  $region103: #{transformer_block.7} parent=0
    _
  %s10 = ssub.s32 1, %s8
  %s11 = scalar_select 0, %s10, %s8
  $region1: #{transformer_block.7} parent=0
    #allocation3 [shape = 'u8[131072]{0}', space=vmem, size = 0x20000, scoped, tag = 'input window, operand 3']
    #allocation4 [shape = 'u8[65536]{0}', space=vmem, size = 0x10000, scoped, tag = 'output window, operand 0']
    #allocation5 [shape = 's32[2]{0}', space=sflag, size = 0x8, scoped, tag = 'scoped memory for transformer_block.7']
    %12 = vsyncpa [#allocation5], 0
    %s13 = scalar_lea.sflag [#allocation5], 1
    %14 = vsyncpa %s13, 0
    loop: start=0, step=1, limit=6
    $region2: #{transformer_block.7} parent=1 // loop_pre_header
      _
    $region3: #{transformer_block.7} parent=1 // loop_header
      %s16 = sphi 0, %s20
      %p17 = scmp.ge.s32.totalorder %s16, 6
      %s23 = sphi 0, %s35
      %s24 = sphi 0, %s31
      %s25 = sphi 0, %s23
      %s26 = sphi 0, %s24
      %s27 = sphi 0, %s25
      %s28 = sphi 0, %s26
      %s38 = sphi 0, %s40
      %s41 = sphi 0, %s38
      %s42 = sphi 0, %s41
      %s58 = sphi 0, %s42
      %s62 = sphi 0, %s62
      %s64 = sphi 0, %s62
      %s65 = sphi 0, %s64
      %s79 = sphi 0, %s65
      %s83 = sphi 0, %s83
      %s85 = sphi 0, %s83
      %s86 = sphi 0, %s85
      %s100 = sphi 0, %s86
      %s106 = sphi 0, %s108
      %s109 = sphi 0, %s106
      %s110 = sphi 0, %s109
      %s126 = sphi 0, %s110
      %s132 = sphi 0, %s134
      %s135 = sphi 0, %s132
      %s136 = sphi 0, %s135
      %s152 = sphi 0, %s136
      %s158 = sphi 0, %s160
      %s161 = sphi 0, %s158
      %s162 = sphi 0, %s161
      %s178 = sphi 0, %s162
      %s182 = sphi 0, %s182
      %s184 = sphi 0, %s182
      %s185 = sphi 0, %s184
      %s199 = sphi 0, %s185
      %s205 = sphi 0, %s207
      %s208 = sphi 0, %s205
      %s209 = sphi 0, %s208
      %s225 = sphi 0, %s209
    $region4: #{transformer_block.7} parent=1 // loop_header_branch
      %19 = sbr.rel (%p17) target = $region8
    $region5: #{transformer_block.7} parent=1 // loop_body
      %s21 = ssub.s32 %s16, 1
      %s22 = ssub.s32 %s16, 2
      %s29 = sadd.s32 1, %s24
      %p30 = scmp.ge.s32.totalorder %s29, 2
      %s31 = scalar_select %p30, 0, %s29
      %s32 = sadd.s32 1, %s23
      %s33 = scalar_select %p30, %s32, %s23
      %p34 = scmp.ge.s32.totalorder %s33, 2
      %s35 = scalar_select %p34, 0, %s33
      %s36 = ssub.s32 %s23, %s35
      %p37 = scmp.eq.s32.totalorder %s36, 0
      %s39 = sadd.s32 %s38, 1
      %s40 = scalar_select %p37, %s38, %s39
      %p43 = pneg %p37
      %p44 = scmp.eq.s32.totalorder %s16, 3
      %p45 = por %p43, %p44
      %p46 = scmp.ne.s32.totalorder %s38, %s41
      %p47 = scmp.eq.s32.totalorder %s16, 0
      %p48 = por %p46, %p47
      %p49 = scmp.ne.s32.totalorder %s38, %s41
      %p50 = scmp.eq.s32.totalorder %s21, 3
      %p51 = por %p49, %p50
      %p52 = scmp.ne.s32.totalorder %s41, %s42
      %p53 = scmp.eq.s32.totalorder %s21, 0
      %p54 = por %p52, %p53
      %p55 = scmp.ne.s32.totalorder %s41, %s42
      %p56 = scmp.eq.s32.totalorder %s22, 3
      %p57 = por %p55, %p56
      %p59 = scmp.ne.s32.totalorder %s42, %s58
      %p60 = scmp.eq.s32.totalorder %s22, 0
      %p61 = por %p59, %p60
      %s63 = sadd.s32 %s62, 1
      %p66 = scmp.eq.s32.totalorder %s16, 3
      %p67 = scmp.ne.s32.totalorder %s62, %s64
      %p68 = scmp.eq.s32.totalorder %s16, 0
      %p69 = por %p67, %p68
      %p70 = scmp.ne.s32.totalorder %s62, %s64
      %p71 = scmp.eq.s32.totalorder %s21, 3
      %p72 = por %p70, %p71
      %p73 = scmp.ne.s32.totalorder %s64, %s65
      %p74 = scmp.eq.s32.totalorder %s21, 0
      %p75 = por %p73, %p74
      %p76 = scmp.ne.s32.totalorder %s64, %s65
      %p77 = scmp.eq.s32.totalorder %s22, 3
      %p78 = por %p76, %p77
      %p80 = scmp.ne.s32.totalorder %s65, %s79
      %p81 = scmp.eq.s32.totalorder %s22, 0
      %p82 = por %p80, %p81
      %s84 = sadd.s32 %s83, 1
      %p87 = scmp.eq.s32.totalorder %s16, 3
      %p88 = scmp.ne.s32.totalorder %s83, %s85
      %p89 = scmp.eq.s32.totalorder %s16, 0
      %p90 = por %p88, %p89
      %p91 = scmp.ne.s32.totalorder %s83, %s85
      %p92 = scmp.eq.s32.totalorder %s21, 3
      %p93 = por %p91, %p92
      %p94 = scmp.ne.s32.totalorder %s85, %s86
      %p95 = scmp.eq.s32.totalorder %s21, 0
      %p96 = por %p94, %p95
      %p97 = scmp.ne.s32.totalorder %s85, %s86
      %p98 = scmp.eq.s32.totalorder %s22, 3
      %p99 = por %p97, %p98
      %p101 = scmp.ne.s32.totalorder %s86, %s100
      %p102 = scmp.eq.s32.totalorder %s22, 0
      %p103 = por %p101, %p102
      %s104 = ssub.s32 %s24, %s31
      %p105 = scmp.eq.s32.totalorder %s104, 0
      %s107 = sadd.s32 %s106, 1
      %s108 = scalar_select %p105, %s106, %s107
      %p111 = pneg %p105
      %p112 = scmp.eq.s32.totalorder %s16, 3
      %p113 = por %p111, %p112
      %p114 = scmp.ne.s32.totalorder %s106, %s109
      %p115 = scmp.eq.s32.totalorder %s16, 0
      %p116 = por %p114, %p115
      %p117 = scmp.ne.s32.totalorder %s106, %s109
      %p118 = scmp.eq.s32.totalorder %s21, 3
      %p119 = por %p117, %p118
      %p120 = scmp.ne.s32.totalorder %s109, %s110
      %p121 = scmp.eq.s32.totalorder %s21, 0
      %p122 = por %p120, %p121
      %p123 = scmp.ne.s32.totalorder %s109, %s110
      %p124 = scmp.eq.s32.totalorder %s22, 3
      %p125 = por %p123, %p124
      %p127 = scmp.ne.s32.totalorder %s110, %s126
      %p128 = scmp.eq.s32.totalorder %s22, 0
      %p129 = por %p127, %p128
      %s130 = ssub.s32 %s24, %s31
      %p131 = scmp.eq.s32.totalorder %s130, 0
      %s133 = sadd.s32 %s132, 1
      %s134 = scalar_select %p131, %s132, %s133
      %p137 = pneg %p131
      %p138 = scmp.eq.s32.totalorder %s16, 3
      %p139 = por %p137, %p138
      %p140 = scmp.ne.s32.totalorder %s132, %s135
      %p141 = scmp.eq.s32.totalorder %s16, 0
      %p142 = por %p140, %p141
      %p143 = scmp.ne.s32.totalorder %s132, %s135
      %p144 = scmp.eq.s32.totalorder %s21, 3
      %p145 = por %p143, %p144
      %p146 = scmp.ne.s32.totalorder %s135, %s136
      %p147 = scmp.eq.s32.totalorder %s21, 0
      %p148 = por %p146, %p147
      %p149 = scmp.ne.s32.totalorder %s135, %s136
      %p150 = scmp.eq.s32.totalorder %s22, 3
      %p151 = por %p149, %p150
      %p153 = scmp.ne.s32.totalorder %s136, %s152
      %p154 = scmp.eq.s32.totalorder %s22, 0
      %p155 = por %p153, %p154
      %s156 = ssub.s32 %s24, %s31
      %p157 = scmp.eq.s32.totalorder %s156, 0
      %s159 = sadd.s32 %s158, 1
      %s160 = scalar_select %p157, %s158, %s159
      %p163 = pneg %p157
      %p164 = scmp.eq.s32.totalorder %s16, 3
      %p165 = por %p163, %p164
      %p166 = scmp.ne.s32.totalorder %s158, %s161
      %p167 = scmp.eq.s32.totalorder %s16, 0
      %p168 = por %p166, %p167
      %p169 = scmp.ne.s32.totalorder %s158, %s161
      %p170 = scmp.eq.s32.totalorder %s21, 3
      %p171 = por %p169, %p170
      %p172 = scmp.ne.s32.totalorder %s161, %s162
      %p173 = scmp.eq.s32.totalorder %s21, 0
      %p174 = por %p172, %p173
      %p175 = scmp.ne.s32.totalorder %s161, %s162
      %p176 = scmp.eq.s32.totalorder %s22, 3
      %p177 = por %p175, %p176
      %p179 = scmp.ne.s32.totalorder %s162, %s178
      %p180 = scmp.eq.s32.totalorder %s22, 0
      %p181 = por %p179, %p180
      %s183 = sadd.s32 %s182, 1
      %p186 = scmp.eq.s32.totalorder %s16, 3
      %p187 = scmp.ne.s32.totalorder %s182, %s184
      %p188 = scmp.eq.s32.totalorder %s16, 0
      %p189 = por %p187, %p188
      %p190 = scmp.ne.s32.totalorder %s182, %s184
      %p191 = scmp.eq.s32.totalorder %s21, 3
      %p192 = por %p190, %p191
      %p193 = scmp.ne.s32.totalorder %s184, %s185
      %p194 = scmp.eq.s32.totalorder %s21, 0
      %p195 = por %p193, %p194
      %p196 = scmp.ne.s32.totalorder %s184, %s185
      %p197 = scmp.eq.s32.totalorder %s22, 3
      %p198 = por %p196, %p197
      %p200 = scmp.ne.s32.totalorder %s185, %s199
      %p201 = scmp.eq.s32.totalorder %s22, 0
      %p202 = por %p200, %p201
      %s203 = ssub.s32 %s23, %s35
      %p204 = scmp.eq.s32.totalorder %s203, 0
      %s206 = sadd.s32 %s205, 1
      %s207 = scalar_select %p204, %s205, %s206
      %p210 = pneg %p204
      %p211 = scmp.eq.s32.totalorder %s16, 3
      %p212 = por %p210, %p211
      %p213 = scmp.ne.s32.totalorder %s205, %s208
      %p214 = scmp.eq.s32.totalorder %s16, 0
      %p215 = por %p213, %p214
      %p216 = scmp.ne.s32.totalorder %s205, %s208
      %p217 = scmp.eq.s32.totalorder %s21, 3
      %p218 = por %p216, %p217
      %p219 = scmp.ne.s32.totalorder %s208, %s209
      %p220 = scmp.eq.s32.totalorder %s21, 0
      %p221 = por %p219, %p220
      %p222 = scmp.ne.s32.totalorder %s208, %s209
      %p223 = scmp.eq.s32.totalorder %s22, 3
      %p224 = por %p222, %p223
      %p226 = scmp.ne.s32.totalorder %s209, %s225
      %p227 = scmp.eq.s32.totalorder %s22, 0
      %p228 = por %p226, %p227
      %p229 = scmp.le.s32.totalorder 1, %s16
      %p230 = scmp.lt.s32.totalorder %s16, 5
      %p231 = pnand %p229, %p230
      %p232 = pneg %p231
      // Predicated region
      $region9: #{transformer_block.7} parent=5 // pred_check
        _
      $region10: #{transformer_block.7} parent=5 // pred_check_branch
        %234 = sbr.rel (%p231) target = $region12
      $region11: #{transformer_block.7} parent=5 // pred_region
        %s235 = ssub.s32 %s16, 1
        // Predicated region
        $region13: #{transformer_block.7} parent=11 // pred_check
          %p236 = pneg %p75
        $region14: #{transformer_block.7} parent=11 // pred_check_branch
          %238 = sbr.rel (%p236) target = $region16
        $region15: #{transformer_block.7} parent=11 // pred_region
          _
        $region16: #{transformer_block.7} parent=11 // pred_fallthru
          _
        // Predicated region
        $region17: #{transformer_block.7} parent=11 // pred_check
          %p239 = pneg %p96
        $region18: #{transformer_block.7} parent=11 // pred_check_branch
          %241 = sbr.rel (%p239) target = $region20
        $region19: #{transformer_block.7} parent=11 // pred_region
          _
        $region20: #{transformer_block.7} parent=11 // pred_fallthru
          _
        // Predicated region
        $region21: #{transformer_block.7} parent=11 // pred_check
          %p242 = pneg %p195
        $region22: #{transformer_block.7} parent=11 // pred_check_branch
          %244 = sbr.rel (%p242) target = $region24
        $region23: #{transformer_block.7} parent=11 // pred_region
          _
        $region24: #{transformer_block.7} parent=11 // pred_fallthru
          _
      $region12: #{transformer_block.7} parent=5 // pred_fallthru
        _
      %p245 = scmp.lt.s32.totalorder %s16, 4
      // Predicated region
      $region25: #{transformer_block.7} parent=5 // pred_check
        %p246 = pneg %p245
      $region26: #{transformer_block.7} parent=5 // pred_check_branch
        %248 = sbr.rel (%p246) target = $region28
      $region27: #{transformer_block.7} parent=5 // pred_region
        // Predicated region
        $region29: #{transformer_block.7} parent=27 // pred_check
          %p249 = pneg %p48
        $region30: #{transformer_block.7} parent=27 // pred_check_branch
          %251 = sbr.rel (%p249) target = $region32
        $region31: #{transformer_block.7} parent=27 // pred_region
          %s252 = smul.u32 8, %s23
          %p253 = scmp.lt.s32.totalorder %s252, 15
          %s254 = scalar_select %p253, %s252, 15
          %s255 = smul.addr %s254, 8
          %s256 = scalar_lea.vmem %s0, %s255
          %s257 = smul.u32 8, %s23
        $region32: #{transformer_block.7} parent=27 // pred_fallthru
          _
        // Predicated region
        $region33: #{transformer_block.7} parent=27 // pred_check
          %p258 = pneg %p116
        $region34: #{transformer_block.7} parent=27 // pred_check_branch
          %260 = sbr.rel (%p258) target = $region36
        $region35: #{transformer_block.7} parent=27 // pred_region
          %s261 = sand.u32 %s106, 1
          %s262 = sand.u32 %s106, 1
          %s263 = smul.addr %s262, 128
          %s264 = scalar_lea.vmem [#allocation3], %s263
          %s265 = smul.u32 2, %s24
          %s266 = smul.addr %s265, 4
          %s267 = scalar_lea.vmem %s3, %s266
          // Predicated region
          $region37: #{transformer_block.7} parent=35 // pred_check
            _
          $region38: #{transformer_block.7} parent=35 // pred_check_branch
            %269 = sbr.rel (0) target = $region40
          $region39: #{transformer_block.7} parent=35 // pred_region
            // Predicated region
            $region41: #{transformer_block.7} parent=39 // pred_check
              _
            $region42: #{transformer_block.7} parent=39 // pred_check_branch
              %271 = sbr.rel (0) target = $region44
            $region43: #{transformer_block.7} parent=39 // pred_region
              // Predicated region
              $region56: #{transformer_block.7} parent=43 // pred_check
                _
              $region57: #{transformer_block.7} parent=43 // pred_check_branch
                %316 = sbr.rel (0) target = $region59
              $region58: #{transformer_block.7} parent=43 // pred_region
                loop: start=0, step=1, limit=1
                $region60: #{transformer_block.7} parent=58 // loop_pre_header
                  _
                $region61: #{transformer_block.7} parent=58 // loop_header
                  %s318 = sphi 0, %s322
                  %p319 = scmp.ge.s32.totalorder %s318, 1
                  %s323 = sphi %s267, %s267
                  %s324 = sphi %s264, %s264
                $region62: #{transformer_block.7} parent=58 // loop_header_branch
                  %321 = sbr.rel (%p319) target = $region66
                $region63: #{transformer_block.7} parent=58 // loop_body
                  %v325 = vld [vmem:[%s323] sm:$0xff]
                  %326 = vst [vmem:[%s324] sm:$0xff] %v325
                  %v327 = vld [vmem:[%s323 + $0x10] sm:$0xff]
                  %328 = vst [vmem:[%s324 + $0x8] sm:$0xff] %v327
                  %v329 = vld [vmem:[%s323 + $0x20] sm:$0xff]
                  %330 = vst [vmem:[%s324 + $0x10] sm:$0xff] %v329
                  %v331 = vld [vmem:[%s323 + $0x30] sm:$0xff]
                  %332 = vst [vmem:[%s324 + $0x18] sm:$0xff] %v331
                  %v333 = vld [vmem:[%s323 + $0x40] sm:$0xff]
                  %334 = vst [vmem:[%s324 + $0x20] sm:$0xff] %v333
                  %v335 = vld [vmem:[%s323 + $0x50] sm:$0xff]
                  %336 = vst [vmem:[%s324 + $0x28] sm:$0xff] %v335
                  %v337 = vld [vmem:[%s323 + $0x60] sm:$0xff]
                  %338 = vst [vmem:[%s324 + $0x30] sm:$0xff] %v337
                  %v339 = vld [vmem:[%s323 + $0x70] sm:$0xff]
                  %340 = vst [vmem:[%s324 + $0x38] sm:$0xff] %v339
                  %v341 = vld [vmem:[%s323 + $0x80] sm:$0xff]
                  %342 = vst [vmem:[%s324 + $0x40] sm:$0xff] %v341
                  %v343 = vld [vmem:[%s323 + $0x90] sm:$0xff]
                  %344 = vst [vmem:[%s324 + $0x48] sm:$0xff] %v343
                  %v345 = vld [vmem:[%s323 + $0xa0] sm:$0xff]
                  %346 = vst [vmem:[%s324 + $0x50] sm:$0xff] %v345
                  %v347 = vld [vmem:[%s323 + $0xb0] sm:$0xff]
                  %348 = vst [vmem:[%s324 + $0x58] sm:$0xff] %v347
                  %v349 = vld [vmem:[%s323 + $0xc0] sm:$0xff]
                  %350 = vst [vmem:[%s324 + $0x60] sm:$0xff] %v349
                  %v351 = vld [vmem:[%s323 + $0xd0] sm:$0xff]
                  %352 = vst [vmem:[%s324 + $0x68] sm:$0xff] %v351
                  %v353 = vld [vmem:[%s323 + $0xe0] sm:$0xff]
                  %354 = vst [vmem:[%s324 + $0x70] sm:$0xff] %v353
                  %v355 = vld [vmem:[%s323 + $0xf0] sm:$0xff]
                  %356 = vst [vmem:[%s324 + $0x78] sm:$0xff] %v355
                $region64: #{transformer_block.7} parent=58 // loop_footer
                  %s322 = sadd.s32 1, %s318
                $region65: #{transformer_block.7} parent=58 // loop_footer_branch
                  %317 = sbr.rel target = $region61
                $region66: #{transformer_block.7} parent=58 // loop_exit
                  _
              $region59: #{transformer_block.7} parent=43 // pred_fallthru
                _
              // Predicated region
              $region67: #{transformer_block.7} parent=43 // pred_check
                _
              $region68: #{transformer_block.7} parent=43 // pred_check_branch
                %358 = sbr.rel target = $region70
              $region69: #{transformer_block.7} parent=43 // pred_region
                _
              $region70: #{transformer_block.7} parent=43 // pred_fallthru
                _
            $region44: #{transformer_block.7} parent=39 // pred_fallthru
              _
            // Predicated region
            $region45: #{transformer_block.7} parent=39 // pred_check
              _
            $region46: #{transformer_block.7} parent=39 // pred_check_branch
              %273 = sbr.rel target = $region48
            $region47: #{transformer_block.7} parent=39 // pred_region
              loop: start=0, step=1, limit=1
              $region49: #{transformer_block.7} parent=47 // loop_pre_header
                _
              $region50: #{transformer_block.7} parent=47 // loop_header
                %s276 = sphi 0, %s280
                %p277 = scmp.ge.s32.totalorder %s276, 1
                %s281 = sphi %s267, %s267
                %s282 = sphi %s264, %s264
              $region51: #{transformer_block.7} parent=47 // loop_header_branch
                %279 = sbr.rel (%p277) target = $region55
              $region52: #{transformer_block.7} parent=47 // loop_body
                %v283 = vld [vmem:[%s281] sm:$0xff]
                %284 = vst [vmem:[%s282] sm:$0xff] %v283
                %v285 = vld [vmem:[%s281 + $0x10] sm:$0xff]
                %286 = vst [vmem:[%s282 + $0x8] sm:$0xff] %v285
                %v287 = vld [vmem:[%s281 + $0x20] sm:$0xff]
                %288 = vst [vmem:[%s282 + $0x10] sm:$0xff] %v287
                %v289 = vld [vmem:[%s281 + $0x30] sm:$0xff]
                %290 = vst [vmem:[%s282 + $0x18] sm:$0xff] %v289
                %v291 = vld [vmem:[%s281 + $0x40] sm:$0xff]
                %292 = vst [vmem:[%s282 + $0x20] sm:$0xff] %v291
                %v293 = vld [vmem:[%s281 + $0x50] sm:$0xff]
                %294 = vst [vmem:[%s282 + $0x28] sm:$0xff] %v293
                %v295 = vld [vmem:[%s281 + $0x60] sm:$0xff]
                %296 = vst [vmem:[%s282 + $0x30] sm:$0xff] %v295
                %v297 = vld [vmem:[%s281 + $0x70] sm:$0xff]
                %298 = vst [vmem:[%s282 + $0x38] sm:$0xff] %v297
                %v299 = vld [vmem:[%s281 + $0x80] sm:$0xff]
                %300 = vst [vmem:[%s282 + $0x40] sm:$0xff] %v299
                %v301 = vld [vmem:[%s281 + $0x90] sm:$0xff]
                %302 = vst [vmem:[%s282 + $0x48] sm:$0xff] %v301
                %v303 = vld [vmem:[%s281 + $0xa0] sm:$0xff]
                %304 = vst [vmem:[%s282 + $0x50] sm:$0xff] %v303
                %v305 = vld [vmem:[%s281 + $0xb0] sm:$0xff]
                %306 = vst [vmem:[%s282 + $0x58] sm:$0xff] %v305
                %v307 = vld [vmem:[%s281 + $0xc0] sm:$0xff]
                %308 = vst [vmem:[%s282 + $0x60] sm:$0xff] %v307
                %v309 = vld [vmem:[%s281 + $0xd0] sm:$0xff]
                %310 = vst [vmem:[%s282 + $0x68] sm:$0xff] %v309
                %v311 = vld [vmem:[%s281 + $0xe0] sm:$0xff]
                %312 = vst [vmem:[%s282 + $0x70] sm:$0xff] %v311
                %v313 = vld [vmem:[%s281 + $0xf0] sm:$0xff]
                %314 = vst [vmem:[%s282 + $0x78] sm:$0xff] %v313
              $region53: #{transformer_block.7} parent=47 // loop_footer
                %s280 = sadd.s32 1, %s276
              $region54: #{transformer_block.7} parent=47 // loop_footer_branch
                %275 = sbr.rel target = $region50
              $region55: #{transformer_block.7} parent=47 // loop_exit
                _
            $region48: #{transformer_block.7} parent=39 // pred_fallthru
              _
          $region40: #{transformer_block.7} parent=35 // pred_fallthru
            _
          %359 = vnop
        $region36: #{transformer_block.7} parent=27 // pred_fallthru
          _
        // Predicated region
        $region71: #{transformer_block.7} parent=27 // pred_check
          %p360 = pneg %p142
        $region72: #{transformer_block.7} parent=27 // pred_check_branch
          %362 = sbr.rel (%p360) target = $region74
        $region73: #{transformer_block.7} parent=27 // pred_region
          %s363 = smul.u32 2, %s24
          %p364 = scmp.lt.s32.totalorder %s363, 3
          %s365 = scalar_select %p364, %s363, 3
          %s366 = scalar_lea.vmem %s4, %s365
          %s367 = smul.u32 2, %s24
        $region74: #{transformer_block.7} parent=27 // pred_fallthru
          _
        // Predicated region
        $region75: #{transformer_block.7} parent=27 // pred_check
          %p368 = pneg %p168
        $region76: #{transformer_block.7} parent=27 // pred_check_branch
          %370 = sbr.rel (%p368) target = $region78
        $region77: #{transformer_block.7} parent=27 // pred_region
          %s371 = smul.u32 32, %s24
          %p372 = scmp.lt.s32.totalorder %s371, 63
          %s373 = scalar_select %p372, %s371, 63
          %s374 = smul.addr %s373, 4
          %s375 = scalar_lea.vmem %s5, %s374
          %s376 = smul.u32 32, %s24
        $region78: #{transformer_block.7} parent=27 // pred_fallthru
          _
      $region28: #{transformer_block.7} parent=5 // pred_fallthru
        _
      %p377 = scmp.le.s32.totalorder 1, %s16
      %p378 = scmp.lt.s32.totalorder %s16, 5
      %p379 = pnand %p377, %p378
      %p380 = pneg %p379
      // Predicated region
      $region79: #{transformer_block.7} parent=5 // pred_check
        _
      $region80: #{transformer_block.7} parent=5 // pred_check_branch
        %382 = sbr.rel (%p379) target = $region82
      $region81: #{transformer_block.7} parent=5 // pred_region
        %s383 = ssub.s32 %s16, 1
        %s384 = sand.u32 %s109, 1
        %s385 = sand.u32 %s109, 1
        %s386 = smul.addr %s385, 128
        %s387 = scalar_lea.vmem [#allocation3], %s386
        // Predicated region
        $region83: #{transformer_block.7} parent=81 // pred_check
          %p388 = pneg %p122
        $region84: #{transformer_block.7} parent=81 // pred_check_branch
          %390 = sbr.rel (%p388) target = $region86
        $region85: #{transformer_block.7} parent=81 // pred_region
          _
        $region86: #{transformer_block.7} parent=81 // pred_fallthru
          _
        %s391 = smul.u32 8, %s25
        %p392 = scmp.lt.s32.totalorder %s391, 15
        %s393 = scalar_select %p392, %s391, 15
        %s394 = smul.addr %s393, 8
        %s395 = scalar_lea.vmem %s0, %s394
        %p396 = pneg %p54
        %p397 = pneg %p51
        %p398 = pneg %p75
        %p399 = pneg %p72
        %p400 = pneg %p96
        %p401 = pneg %p93
        %s402 = sand.u32 %s109, 1
        %s403 = sand.u32 %s109, 1
        %s404 = smul.addr %s403, 128
        %s405 = scalar_lea.vmem [#allocation3], %s404
        %p406 = pneg %p122
        %p407 = pneg %p119
        %s408 = smul.u32 2, %s26
        %p409 = scmp.lt.s32.totalorder %s408, 3
        %s410 = scalar_select %p409, %s408, 3
        %s411 = scalar_lea.vmem %s4, %s410
        %p412 = pneg %p148
        %p413 = pneg %p145
        %s414 = smul.u32 32, %s26
        %p415 = scmp.lt.s32.totalorder %s414, 63
        %s416 = scalar_select %p415, %s414, 63
        %s417 = smul.addr %s416, 4
        %s418 = scalar_lea.vmem %s5, %s417
        %p419 = pneg %p174
        %p420 = pneg %p171
        %p421 = pneg %p195
        %p422 = pneg %p192
        %p423 = pneg %p221
        %p424 = pneg %p218
        %s425 = sand.u32 %s208, 1
        %s426 = scalar_lea.sflag [#allocation5], %s425
        %s427 = sand.u32 %s208, 1
        %s428 = smul.addr %s427, 64
        %s429 = scalar_lea.vmem [#allocation4], %s428
        %s430 = smul.u32 8, %s25
        %p431 = scmp.lt.s32.totalorder %s430, 15
        %s432 = scalar_select %p431, %s430, 15
        %s433 = smul.addr %s432, 8
        %s434 = scalar_lea.vmem %s0, %s433
        %s435 = smul.u32 8, %s25
        %s436 = smul.u32 2, %s26
        %s437 = smul.u32 2, %s26
        %p438 = scmp.lt.s32.totalorder %s437, 3
        %s439 = scalar_select %p438, %s437, 3
        %s440 = scalar_lea.vmem %s4, %s439
        %s441 = smul.u32 2, %s26
        %s442 = smul.u32 32, %s26
        %p443 = scmp.lt.s32.totalorder %s442, 63
        %s444 = scalar_select %p443, %s442, 63
        %s445 = smul.addr %s444, 4
        %s446 = scalar_lea.vmem %s5, %s445
        %s447 = smul.u32 32, %s26
        %s448 = smul.u32 8, %s25
        %p450 = scmp.eq.s32.totalorder %s26, 0
        // Predicated region
        $region87: #{transformer_block.7} parent=81 // pred_check
          %p451 = pneg %p450
        $region88: #{transformer_block.7} parent=81 // pred_check_branch
          %453 = sbr.rel (%p451) target = $region90
        $region89: #{transformer_block.7} parent=81 // pred_region
          %v454 = vld [vmem:[%s434] sm:$0xff]
          %v455 = vld [vmem:[%s434 + $0x8] sm:$0xff]
          %v456 = vld [vmem:[%s434 + $0x10] sm:$0xff]
          %v457 = vld [vmem:[%s434 + $0x18] sm:$0xff]
          %v458 = vld [vmem:[%s434 + $0x20] sm:$0xff]
          %v459 = vld [vmem:[%s434 + $0x28] sm:$0xff]
          %v460 = vld [vmem:[%s434 + $0x30] sm:$0xff]
          %v461 = vld [vmem:[%s434 + $0x38] sm:$0xff]
          %462 = vadd.xlane.f32.xlu0 %v454
          %v463 = vpop.xlane.xlu0 %462
          %464 = vadd.xlane.f32.xlu0 %v455
          %v465 = vpop.xlane.xlu0 %464
          %466 = vadd.xlane.f32.xlu0 %v456
          %v467 = vpop.xlane.xlu0 %466
          %468 = vadd.xlane.f32.xlu0 %v457
          %v469 = vpop.xlane.xlu0 %468
          %470 = vadd.xlane.f32.xlu0 %v458
          %v471 = vpop.xlane.xlu0 %470
          %472 = vadd.xlane.f32.xlu0 %v459
          %v473 = vpop.xlane.xlu0 %472
          %474 = vadd.xlane.f32.xlu0 %v460
          %v475 = vpop.xlane.xlu0 %474
          %476 = vadd.xlane.f32.xlu0 %v461
          %v477 = vpop.xlane.xlu0 %476
          %v478 = vrcp.pop 128.0
          %v479 = vmul.f32 %v463, %v478
          %v480 = vmul.f32 %v465, %v478
          %v481 = vmul.f32 %v467, %v478
          %v482 = vmul.f32 %v469, %v478
          %v483 = vmul.f32 %v471, %v478
          %v484 = vmul.f32 %v473, %v478
          %v485 = vmul.f32 %v475, %v478
          %v486 = vmul.f32 %v477, %v478
          %v487 = vsub.f32 %v454, %v479
          %v488 = vsub.f32 %v455, %v480
          %v489 = vsub.f32 %v456, %v481
          %v490 = vsub.f32 %v457, %v482
          %v491 = vsub.f32 %v458, %v483
          %v492 = vsub.f32 %v459, %v484
          %v493 = vsub.f32 %v460, %v485
          %v494 = vsub.f32 %v461, %v486
          %v495 = vmul.f32 %v487, %v487
          %v496 = vmul.f32 %v488, %v488
          %v497 = vmul.f32 %v489, %v489
          %v498 = vmul.f32 %v490, %v490
          %v499 = vmul.f32 %v491, %v491
          %v500 = vmul.f32 %v492, %v492
          %v501 = vmul.f32 %v493, %v493
          %v502 = vmul.f32 %v494, %v494
          %503 = vadd.xlane.f32.xlu0 %v495
          %v504 = vpop.xlane.xlu0 %503
          %505 = vadd.xlane.f32.xlu0 %v496
          %v506 = vpop.xlane.xlu0 %505
          %507 = vadd.xlane.f32.xlu0 %v497
          %v508 = vpop.xlane.xlu0 %507
          %509 = vadd.xlane.f32.xlu0 %v498
          %v510 = vpop.xlane.xlu0 %509
          %511 = vadd.xlane.f32.xlu0 %v499
          %v512 = vpop.xlane.xlu0 %511
          %513 = vadd.xlane.f32.xlu0 %v500
          %v514 = vpop.xlane.xlu0 %513
          %515 = vadd.xlane.f32.xlu0 %v501
          %v516 = vpop.xlane.xlu0 %515
          %517 = vadd.xlane.f32.xlu0 %v502
          %v518 = vpop.xlane.xlu0 %517
          %v519 = vmul.f32 %v504, %v478
          %v520 = vmul.f32 %v506, %v478
          %v521 = vmul.f32 %v508, %v478
          %v522 = vmul.f32 %v510, %v478
          %v523 = vmul.f32 %v512, %v478
          %v524 = vmul.f32 %v514, %v478
          %v525 = vmul.f32 %v516, %v478
          %v526 = vmul.f32 %v518, %v478
          %v527 = vadd.f32 %v519, 1e-05
          %v528 = vadd.f32 %v520, 1e-05
          %v529 = vadd.f32 %v521, 1e-05
          %v530 = vadd.f32 %v522, 1e-05
          %v531 = vadd.f32 %v523, 1e-05
          %v532 = vadd.f32 %v524, 1e-05
          %v533 = vadd.f32 %v525, 1e-05
          %v534 = vadd.f32 %v526, 1e-05
          %v535 = vrsqrt.pop %v527
          %v536 = vrsqrt.pop %v528
          %v537 = vrsqrt.pop %v529
          %v538 = vrsqrt.pop %v530
          %v539 = vrsqrt.pop %v531
          %v540 = vrsqrt.pop %v532
          %v541 = vrsqrt.pop %v533
          %v542 = vrsqrt.pop %v534
          %v543 = vmul.f32 %v487, %v535
          %v544 = vmul.f32 %v488, %v536
          %v545 = vmul.f32 %v489, %v537
          %v546 = vmul.f32 %v490, %v538
          %v547 = vmul.f32 %v491, %v539
          %v548 = vmul.f32 %v492, %v540
          %v549 = vmul.f32 %v493, %v541
          %v550 = vmul.f32 %v494, %v542
          %v551 = vld [vmem:[%s1] sm:$0x1]
          %v553 = vlaneseq
          %v554 = vshrl.u32 %v553, 7
          %v555 = vsub.s32 0, %v554
          %v556 = vrot.slane %v551, %v555
          %v558 = vmul.f32 %v543, %v556
          %v559 = vmul.f32 %v544, %v556
          %v560 = vmul.f32 %v545, %v556
          %v561 = vmul.f32 %v546, %v556
          %v562 = vmul.f32 %v547, %v556
          %v563 = vmul.f32 %v548, %v556
          %v564 = vmul.f32 %v549, %v556
          %v565 = vmul.f32 %v550, %v556
          %v566 = vld [vmem:[%s2] sm:$0x1]
          %v568 = vlaneseq
          %v569 = vshrl.u32 %v568, 7
          %v570 = vsub.s32 0, %v569
          %v571 = vrot.slane %v566, %v570
          %v573 = vadd.f32 %v558, %v571
          %v574 = vadd.f32 %v559, %v571
          %v575 = vadd.f32 %v560, %v571
          %v576 = vadd.f32 %v561, %v571
          %v577 = vadd.f32 %v562, %v571
          %v578 = vadd.f32 %v563, %v571
          %v579 = vadd.f32 %v564, %v571
          %v580 = vadd.f32 %v565, %v571
          %v581 = vpack.c.bf16 %v574, %v573
          %v582 = vpack.c.bf16 %v576, %v575
          %v583 = vpack.c.bf16 %v578, %v577
          %v584 = vpack.c.bf16 %v580, %v579
          %585 = vst [vmem:[#allocation2] sm:$0xff] %v581
          %586 = vst [vmem:[#allocation2 + $0x8] sm:$0xff] %v582
          %587 = vst [vmem:[#allocation2 + $0x10] sm:$0xff] %v583
          %588 = vst [vmem:[#allocation2 + $0x18] sm:$0xff] %v584
          %v589 = vld [vmem:[%s6] sm:$0x1]
          %v591 = vlaneseq
          %v592 = vshrl.u32 %v591, 7
          %v593 = vsub.s32 0, %v592
          %v594 = vrot.slane %v589, %v593
          %v596 = vadd.f32 %v454, %v594
          %v597 = vadd.f32 %v455, %v594
          %v598 = vadd.f32 %v456, %v594
          %v599 = vadd.f32 %v457, %v594
          %v600 = vadd.f32 %v458, %v594
          %v601 = vadd.f32 %v459, %v594
          %v602 = vadd.f32 %v460, %v594
          %v603 = vadd.f32 %v461, %v594
          %604 = vst [vmem:[%s429] sm:$0xff] %v596
          %605 = vst [vmem:[%s429 + $0x8] sm:$0xff] %v597
          %606 = vst [vmem:[%s429 + $0x10] sm:$0xff] %v598
          %607 = vst [vmem:[%s429 + $0x18] sm:$0xff] %v599
          %608 = vst [vmem:[%s429 + $0x20] sm:$0xff] %v600
          %609 = vst [vmem:[%s429 + $0x28] sm:$0xff] %v601
          %610 = vst [vmem:[%s429 + $0x30] sm:$0xff] %v602
          %611 = vst [vmem:[%s429 + $0x38] sm:$0xff] %v603
        $region90: #{transformer_block.7} parent=81 // pred_fallthru
          _
        %v612 = vld [vmem:[#allocation2] sm:$0xff]
        %v613 = vld [vmem:[#allocation2 + $0x8] sm:$0xff]
        %v614 = vld [vmem:[#allocation2 + $0x10] sm:$0xff]
        %v615 = vld [vmem:[#allocation2 + $0x18] sm:$0xff]
        %v616 = vld [vmem:[%s387] sm:$0xff]
        %v617 = vld [vmem:[%s387 + $0x8] sm:$0xff]
        %v618 = vld [vmem:[%s387 + $0x10] sm:$0xff]
        %v619 = vld [vmem:[%s387 + $0x18] sm:$0xff]
        %v620 = vld [vmem:[%s387 + $0x20] sm:$0xff]
        %v621 = vld [vmem:[%s387 + $0x28] sm:$0xff]
        %v622 = vld [vmem:[%s387 + $0x30] sm:$0xff]
        %v623 = vld [vmem:[%s387 + $0x38] sm:$0xff]
        %v624 = vld [vmem:[%s387 + $0x40] sm:$0xff]
        %v625 = vld [vmem:[%s387 + $0x48] sm:$0xff]
        %v626 = vld [vmem:[%s387 + $0x50] sm:$0xff]
        %v627 = vld [vmem:[%s387 + $0x58] sm:$0xff]
        %v628 = vld [vmem:[%s387 + $0x60] sm:$0xff]
        %v629 = vld [vmem:[%s387 + $0x68] sm:$0xff]
        %v630 = vld [vmem:[%s387 + $0x70] sm:$0xff]
        %v631 = vld [vmem:[%s387 + $0x78] sm:$0xff]
        %v632 = vld [vmem:[%s440] sm:$0x3]
        %v634 = vlaneseq
        %v635 = vshrl.u32 %v634, 7
        %v636 = vsub.s32 0, %v635
        %v637 = vrot.slane %v632, %v636
        %v638 = vlaneseq
        %v639 = vshrl.u32 %v638, 7
        %v640 = vsub.s32 1, %v639
        %v641 = vrot.slane %v632, %v640
        %v660 = vunpack.c.l.b16 %v616
        %v661 = vunpack.c.h.b16 %v616
        %v662 = vunpack.c.l.b16 %v617
        %v663 = vunpack.c.h.b16 %v617
        %v664 = vunpack.c.l.b16 %v618
        %v665 = vunpack.c.h.b16 %v618
        %v666 = vunpack.c.l.b16 %v619
        %v667 = vunpack.c.h.b16 %v619
        %v668 = vunpack.c.l.b16 %v620
        %v669 = vunpack.c.h.b16 %v620
        %v670 = vunpack.c.l.b16 %v621
        %v671 = vunpack.c.h.b16 %v621
        %v672 = vunpack.c.l.b16 %v622
        %v673 = vunpack.c.h.b16 %v622
        %v674 = vunpack.c.l.b16 %v623
        %v675 = vunpack.c.h.b16 %v623
        %v676 = vunpack.c.l.b16 %v624
        %v677 = vunpack.c.h.b16 %v624
        %v678 = vunpack.c.l.b16 %v625
        %v679 = vunpack.c.h.b16 %v625
        %v680 = vunpack.c.l.b16 %v626
        %v681 = vunpack.c.h.b16 %v626
        %v682 = vunpack.c.l.b16 %v627
        %v683 = vunpack.c.h.b16 %v627
        %v684 = vunpack.c.l.b16 %v628
        %v685 = vunpack.c.h.b16 %v628
        %v686 = vunpack.c.l.b16 %v629
        %v687 = vunpack.c.h.b16 %v629
        %v688 = vunpack.c.l.b16 %v630
        %v689 = vunpack.c.h.b16 %v630
        %v690 = vunpack.c.l.b16 %v631
        %v691 = vunpack.c.h.b16 %v631
        %v692 = vpack.c.b16 %v662, %v660
        %v693 = vpack.c.b16 %v663, %v661
        %v694 = vpack.c.b16 %v666, %v664
        %v695 = vpack.c.b16 %v667, %v665
        %v696 = vpack.c.b16 %v670, %v668
        %v697 = vpack.c.b16 %v671, %v669
        %v698 = vpack.c.b16 %v674, %v672
        %v699 = vpack.c.b16 %v675, %v673
        %v700 = vpack.c.b16 %v678, %v676
        %v701 = vpack.c.b16 %v679, %v677
        %v702 = vpack.c.b16 %v682, %v680
        %v703 = vpack.c.b16 %v683, %v681
        %v704 = vpack.c.b16 %v686, %v684
        %v705 = vpack.c.b16 %v687, %v685
        %v706 = vpack.c.b16 %v690, %v688
        %v707 = vpack.c.b16 %v691, %v689
        %724 = vmatprep.subr.bf16.mxu0 %v693
        %725 = vmatpush1.bf16.msra.mxu0 %v692
        %726 = vmatprep.subr.bf16.mxu0 %v695
        %727 = vmatpush1.bf16.msra.mxu0 %v694
        %728 = vmatprep.subr.bf16.mxu0 %v697
        %729 = vmatpush1.bf16.msra.mxu0 %v696
        %730 = vmatprep.subr.bf16.mxu0 %v699
        %731 = vmatpush1.bf16.msra.mxu0 %v698
        %732 = vmatprep.subr.bf16.mxu0 %v701
        %733 = vmatpush1.bf16.msra.mxu0 %v700
        %734 = vmatprep.subr.bf16.mxu0 %v703
        %735 = vmatpush1.bf16.msra.mxu0 %v702
        %736 = vmatprep.subr.bf16.mxu0 %v705
        %737 = vmatpush1.bf16.msra.mxu0 %v704
        %738 = vmatprep.subr.bf16.mxu0 %v707
        %739 = vmatpush1.bf16.msra.mxu0 %v706
        %740 = vmatprep.subr.bf16.mxu0 0
        %741 = vmatpush1.bf16.msra.mxu0 0
        %742 = vmatprep.subr.bf16.mxu0 0
        %743 = vmatpush1.bf16.msra.mxu0 0
        %744 = vmatprep.subr.bf16.mxu0 0
        %745 = vmatpush1.bf16.msra.mxu0 0
        %746 = vmatprep.subr.bf16.mxu0 0
        %747 = vmatpush1.bf16.msra.mxu0 0
        %748 = vmatprep.subr.bf16.mxu0 0
        %749 = vmatpush1.bf16.msra.mxu0 0
        %750 = vmatprep.subr.bf16.mxu0 0
        %751 = vmatpush1.bf16.msra.mxu0 0
        %752 = vmatprep.subr.bf16.mxu0 0
        %753 = vmatpush1.bf16.msra.mxu0 0
        %754 = vmatprep.subr.bf16.mxu0 0
        %755 = vmatpush1.bf16.msra.mxu0 0
        %756 = vmatprep.mubr.bf16.mxu0 0
        %757 = vmatmul.mubr.bf16.gmra.mrb[0].mxu0 %v612
        %v758 = vpop.f32.mrb[0].mxu0
        %v759 = vadd.f32 %v637, %v758
        %v760 = vpop.f32.mrb[0].mxu0
        %v761 = vadd.f32 %v641, %v760
        %v762 = vpop.f32.mrb[0].mxu0
        %v763 = vadd.f32 %v637, %v762
        %v764 = vpop.f32.mrb[0].mxu0
        %v765 = vadd.f32 %v641, %v764
        %766 = vmatprep.mubr.bf16.mxu0 0
        %767 = vmatmul.mubr.bf16.gmra.mrb[0].mxu0 %v613
        %v768 = vpop.f32.mrb[0].mxu0
        %v769 = vadd.f32 %v637, %v768
        %v770 = vpop.f32.mrb[0].mxu0
        %v771 = vadd.f32 %v641, %v770
        %v772 = vpop.f32.mrb[0].mxu0
        %v773 = vadd.f32 %v637, %v772
        %v774 = vpop.f32.mrb[0].mxu0
        %v775 = vadd.f32 %v641, %v774
        %776 = vmatprep.mubr.bf16.mxu0 0
        %777 = vmatmul.mubr.bf16.gmra.mrb[0].mxu0 %v614
        %v778 = vpop.f32.mrb[0].mxu0
        %v779 = vadd.f32 %v637, %v778
        %v780 = vpop.f32.mrb[0].mxu0
        %v781 = vadd.f32 %v641, %v780
        %v782 = vpop.f32.mrb[0].mxu0
        %v783 = vadd.f32 %v637, %v782
        %v784 = vpop.f32.mrb[0].mxu0
        %v785 = vadd.f32 %v641, %v784
        %786 = vmatprep.mubr.bf16.mxu0 0
        %787 = vmatmul.mubr.bf16.gmra.mrb[0].mxu0 %v615
        %v788 = vpop.f32.mrb[0].mxu0
        %v789 = vadd.f32 %v637, %v788
        %v790 = vpop.f32.mrb[0].mxu0
        %v791 = vadd.f32 %v641, %v790
        %v792 = vpop.f32.mrb[0].mxu0
        %v793 = vadd.f32 %v637, %v792
        %v794 = vpop.f32.mrb[0].mxu0
        %v795 = vadd.f32 %v641, %v794
        %796 = vdwg.mxu0
        %v797 = vmul.f32 %v759, 0.5
        %v798 = vmul.f32 %v761, 0.5
        %v799 = vmul.f32 %v763, 0.5
        %v800 = vmul.f32 %v765, 0.5
        %v801 = vmul.f32 %v769, 0.5
        %v802 = vmul.f32 %v771, 0.5
        %v803 = vmul.f32 %v773, 0.5
        %v804 = vmul.f32 %v775, 0.5
        %v805 = vmul.f32 %v779, 0.5
        %v806 = vmul.f32 %v781, 0.5
        %v807 = vmul.f32 %v783, 0.5
        %v808 = vmul.f32 %v785, 0.5
        %v809 = vmul.f32 %v789, 0.5
        %v810 = vmul.f32 %v791, 0.5
        %v811 = vmul.f32 %v793, 0.5
        %v812 = vmul.f32 %v795, 0.5
        %v813 = vmul.f32 %v759, 0.7978846
        %v814 = vmul.f32 %v761, 0.7978846
        %v815 = vmul.f32 %v763, 0.7978846
        %v816 = vmul.f32 %v765, 0.7978846
        %v817 = vmul.f32 %v769, 0.7978846
        %v818 = vmul.f32 %v771, 0.7978846
        %v819 = vmul.f32 %v773, 0.7978846
        %v820 = vmul.f32 %v775, 0.7978846
        %v821 = vmul.f32 %v779, 0.7978846
        %v822 = vmul.f32 %v781, 0.7978846
        %v823 = vmul.f32 %v783, 0.7978846
        %v824 = vmul.f32 %v785, 0.7978846
        %v825 = vmul.f32 %v789, 0.7978846
        %v826 = vmul.f32 %v791, 0.7978846
        %v827 = vmul.f32 %v793, 0.7978846
        %v828 = vmul.f32 %v795, 0.7978846
        %v829 = vmul.f32 %v759, %v759
        %v830 = vmul.f32 %v761, %v761
        %v831 = vmul.f32 %v763, %v763
        %v832 = vmul.f32 %v765, %v765
        %v833 = vmul.f32 %v769, %v769
        %v834 = vmul.f32 %v771, %v771
        %v835 = vmul.f32 %v773, %v773
        %v836 = vmul.f32 %v775, %v775
        %v837 = vmul.f32 %v779, %v779
        %v838 = vmul.f32 %v781, %v781
        %v839 = vmul.f32 %v783, %v783
        %v840 = vmul.f32 %v785, %v785
        %v841 = vmul.f32 %v789, %v789
        %v842 = vmul.f32 %v791, %v791
        %v843 = vmul.f32 %v793, %v793
        %v844 = vmul.f32 %v795, %v795
        %v845 = vmul.f32 %v829, 0.044715
        %v846 = vmul.f32 %v830, 0.044715
        %v847 = vmul.f32 %v831, 0.044715
        %v848 = vmul.f32 %v832, 0.044715
        %v849 = vmul.f32 %v833, 0.044715
        %v850 = vmul.f32 %v834, 0.044715
        %v851 = vmul.f32 %v835, 0.044715
        %v852 = vmul.f32 %v836, 0.044715
        %v853 = vmul.f32 %v837, 0.044715
        %v854 = vmul.f32 %v838, 0.044715
        %v855 = vmul.f32 %v839, 0.044715
        %v856 = vmul.f32 %v840, 0.044715
        %v857 = vmul.f32 %v841, 0.044715
        %v858 = vmul.f32 %v842, 0.044715
        %v859 = vmul.f32 %v843, 0.044715
        %v860 = vmul.f32 %v844, 0.044715
        %v861 = vadd.f32 %v845, 1.0
        %v862 = vadd.f32 %v846, 1.0
        %v863 = vadd.f32 %v847, 1.0
        %v864 = vadd.f32 %v848, 1.0
        %v865 = vadd.f32 %v849, 1.0
        %v866 = vadd.f32 %v850, 1.0
        %v867 = vadd.f32 %v851, 1.0
        %v868 = vadd.f32 %v852, 1.0
        %v869 = vadd.f32 %v853, 1.0
        %v870 = vadd.f32 %v854, 1.0
        %v871 = vadd.f32 %v855, 1.0
        %v872 = vadd.f32 %v856, 1.0
        %v873 = vadd.f32 %v857, 1.0
        %v874 = vadd.f32 %v858, 1.0
        %v875 = vadd.f32 %v859, 1.0
        %v876 = vadd.f32 %v860, 1.0
        %v877 = vmul.f32 %v813, %v861
        %v878 = vmul.f32 %v814, %v862
        %v879 = vmul.f32 %v815, %v863
        %v880 = vmul.f32 %v816, %v864
        %v881 = vmul.f32 %v817, %v865
        %v882 = vmul.f32 %v818, %v866
        %v883 = vmul.f32 %v819, %v867
        %v884 = vmul.f32 %v820, %v868
        %v885 = vmul.f32 %v821, %v869
        %v886 = vmul.f32 %v822, %v870
        %v887 = vmul.f32 %v823, %v871
        %v888 = vmul.f32 %v824, %v872
        %v889 = vmul.f32 %v825, %v873
        %v890 = vmul.f32 %v826, %v874
        %v891 = vmul.f32 %v827, %v875
        %v892 = vmul.f32 %v828, %v876
        %v893 = vtanh.pop %v877
        %v894 = vtanh.pop %v878
        %v895 = vtanh.pop %v879
        %v896 = vtanh.pop %v880
        %v897 = vtanh.pop %v881
        %v898 = vtanh.pop %v882
        %v899 = vtanh.pop %v883
        %v900 = vtanh.pop %v884
        %v901 = vtanh.pop %v885
        %v902 = vtanh.pop %v886
        %v903 = vtanh.pop %v887
        %v904 = vtanh.pop %v888
        %v905 = vtanh.pop %v889
        %v906 = vtanh.pop %v890
        %v907 = vtanh.pop %v891
        %v908 = vtanh.pop %v892
        %v909 = vadd.f32 %v893, 1.0
        %v910 = vadd.f32 %v894, 1.0
        %v911 = vadd.f32 %v895, 1.0
        %v912 = vadd.f32 %v896, 1.0
        %v913 = vadd.f32 %v897, 1.0
        %v914 = vadd.f32 %v898, 1.0
        %v915 = vadd.f32 %v899, 1.0
        %v916 = vadd.f32 %v900, 1.0
        %v917 = vadd.f32 %v901, 1.0
        %v918 = vadd.f32 %v902, 1.0
        %v919 = vadd.f32 %v903, 1.0
        %v920 = vadd.f32 %v904, 1.0
        %v921 = vadd.f32 %v905, 1.0
        %v922 = vadd.f32 %v906, 1.0
        %v923 = vadd.f32 %v907, 1.0
        %v924 = vadd.f32 %v908, 1.0
        %v925 = vmul.f32 %v797, %v909
        %v926 = vmul.f32 %v798, %v910
        %v927 = vmul.f32 %v799, %v911
        %v928 = vmul.f32 %v800, %v912
        %v929 = vmul.f32 %v801, %v913
        %v930 = vmul.f32 %v802, %v914
        %v931 = vmul.f32 %v803, %v915
        %v932 = vmul.f32 %v804, %v916
        %v933 = vmul.f32 %v805, %v917
        %v934 = vmul.f32 %v806, %v918
        %v935 = vmul.f32 %v807, %v919
        %v936 = vmul.f32 %v808, %v920
        %v937 = vmul.f32 %v809, %v921
        %v938 = vmul.f32 %v810, %v922
        %v939 = vmul.f32 %v811, %v923
        %v940 = vmul.f32 %v812, %v924
        %v941 = vld [vmem:[%s429] sm:$0xff]
        %v942 = vld [vmem:[%s429 + $0x8] sm:$0xff]
        %v943 = vld [vmem:[%s429 + $0x10] sm:$0xff]
        %v944 = vld [vmem:[%s429 + $0x18] sm:$0xff]
        %v945 = vld [vmem:[%s429 + $0x20] sm:$0xff]
        %v946 = vld [vmem:[%s429 + $0x28] sm:$0xff]
        %v947 = vld [vmem:[%s429 + $0x30] sm:$0xff]
        %v948 = vld [vmem:[%s429 + $0x38] sm:$0xff]
        %v949 = vpack.c.bf16 %v927, %v925
        %v950 = vpack.c.bf16 %v928, %v926
        %v951 = vpack.c.bf16 %v931, %v929
        %v952 = vpack.c.bf16 %v932, %v930
        %v953 = vpack.c.bf16 %v935, %v933
        %v954 = vpack.c.bf16 %v936, %v934
        %v955 = vpack.c.bf16 %v939, %v937
        %v956 = vpack.c.bf16 %v940, %v938
        %v957 = vld [vmem:[%s446] sm:$0xf]
        %v958 = vld [vmem:[%s446 + $0x4] sm:$0xf]
        %v959 = vld [vmem:[%s446 + $0x8] sm:$0xf]
        %v960 = vld [vmem:[%s446 + $0xc] sm:$0xf]
        %v961 = vld [vmem:[%s446 + $0x10] sm:$0xf]
        %v962 = vld [vmem:[%s446 + $0x14] sm:$0xf]
        %v963 = vld [vmem:[%s446 + $0x18] sm:$0xf]
        %v964 = vld [vmem:[%s446 + $0x1c] sm:$0xf]
        %v965 = vld [vmem:[%s446 + $0x20] sm:$0xf]
        %v966 = vld [vmem:[%s446 + $0x24] sm:$0xf]
        %v967 = vld [vmem:[%s446 + $0x28] sm:$0xf]
        %v968 = vld [vmem:[%s446 + $0x2c] sm:$0xf]
        %v969 = vld [vmem:[%s446 + $0x30] sm:$0xf]
        %v970 = vld [vmem:[%s446 + $0x34] sm:$0xf]
        %v971 = vld [vmem:[%s446 + $0x38] sm:$0xf]
        %v972 = vld [vmem:[%s446 + $0x3c] sm:$0xf]
        %v973 = vld [vmem:[%s446 + $0x40] sm:$0xf]
        %v974 = vld [vmem:[%s446 + $0x44] sm:$0xf]
        %v975 = vld [vmem:[%s446 + $0x48] sm:$0xf]
        %v976 = vld [vmem:[%s446 + $0x4c] sm:$0xf]
        %v977 = vld [vmem:[%s446 + $0x50] sm:$0xf]
        %v978 = vld [vmem:[%s446 + $0x54] sm:$0xf]
        %v979 = vld [vmem:[%s446 + $0x58] sm:$0xf]
        %v980 = vld [vmem:[%s446 + $0x5c] sm:$0xf]
        %v981 = vld [vmem:[%s446 + $0x60] sm:$0xf]
        %v982 = vld [vmem:[%s446 + $0x64] sm:$0xf]
        %v983 = vld [vmem:[%s446 + $0x68] sm:$0xf]
        %v984 = vld [vmem:[%s446 + $0x6c] sm:$0xf]
        %v985 = vld [vmem:[%s446 + $0x70] sm:$0xf]
        %v986 = vld [vmem:[%s446 + $0x74] sm:$0xf]
        %v987 = vld [vmem:[%s446 + $0x78] sm:$0xf]
        %v988 = vld [vmem:[%s446 + $0x7c] sm:$0xf]
        %v1021 = vunpack.c.l.b16 %v957
        %v1022 = vunpack.c.l.b16 %v958
        %v1023 = vunpack.c.l.b16 %v959
        %v1024 = vunpack.c.l.b16 %v960
        %v1025 = vunpack.c.l.b16 %v961
        %v1026 = vunpack.c.l.b16 %v962
        %v1027 = vunpack.c.l.b16 %v963
        %v1028 = vunpack.c.l.b16 %v964
        %v1029 = vunpack.c.l.b16 %v965
        %v1030 = vunpack.c.l.b16 %v966
        %v1031 = vunpack.c.l.b16 %v967
        %v1032 = vunpack.c.l.b16 %v968
        %v1033 = vunpack.c.l.b16 %v969
        %v1034 = vunpack.c.l.b16 %v970
        %v1035 = vunpack.c.l.b16 %v971
        %v1036 = vunpack.c.l.b16 %v972
        %v1037 = vunpack.c.l.b16 %v973
        %v1038 = vunpack.c.l.b16 %v974
        %v1039 = vunpack.c.l.b16 %v975
        %v1040 = vunpack.c.l.b16 %v976
        %v1041 = vunpack.c.l.b16 %v977
        %v1042 = vunpack.c.l.b16 %v978
        %v1043 = vunpack.c.l.b16 %v979
        %v1044 = vunpack.c.l.b16 %v980
        %v1045 = vunpack.c.l.b16 %v981
        %v1046 = vunpack.c.l.b16 %v982
        %v1047 = vunpack.c.l.b16 %v983
        %v1048 = vunpack.c.l.b16 %v984
        %v1049 = vunpack.c.l.b16 %v985
        %v1050 = vunpack.c.l.b16 %v986
        %v1051 = vunpack.c.l.b16 %v987
        %v1052 = vunpack.c.l.b16 %v988
        %v1053 = vpack.c.b16 %v1022, %v1021
        %v1054 = vpack.c.b16 %v1024, %v1023
        %v1055 = vpack.c.b16 %v1026, %v1025
        %v1056 = vpack.c.b16 %v1028, %v1027
        %v1057 = vpack.c.b16 %v1030, %v1029
        %v1058 = vpack.c.b16 %v1032, %v1031
        %v1059 = vpack.c.b16 %v1034, %v1033
        %v1060 = vpack.c.b16 %v1036, %v1035
        %v1061 = vpack.c.b16 %v1038, %v1037
        %v1062 = vpack.c.b16 %v1040, %v1039
        %v1063 = vpack.c.b16 %v1042, %v1041
        %v1064 = vpack.c.b16 %v1044, %v1043
        %v1065 = vpack.c.b16 %v1046, %v1045
        %v1066 = vpack.c.b16 %v1048, %v1047
        %v1067 = vpack.c.b16 %v1050, %v1049
        %v1068 = vpack.c.b16 %v1052, %v1051
        %1085 = vmatprep.subr.bf16.mxu0 0
        %1086 = vmatpush1.bf16.msra.mxu0 %v1053
        %1087 = vmatprep.subr.bf16.mxu0 0
        %1088 = vmatpush1.bf16.msra.mxu0 %v1054
        %1089 = vmatprep.subr.bf16.mxu0 0
        %1090 = vmatpush1.bf16.msra.mxu0 %v1055
        %1091 = vmatprep.subr.bf16.mxu0 0
        %1092 = vmatpush1.bf16.msra.mxu0 %v1056
        %1093 = vmatprep.subr.bf16.mxu0 0
        %1094 = vmatpush1.bf16.msra.mxu0 %v1057
        %1095 = vmatprep.subr.bf16.mxu0 0
        %1096 = vmatpush1.bf16.msra.mxu0 %v1058
        %1097 = vmatprep.subr.bf16.mxu0 0
        %1098 = vmatpush1.bf16.msra.mxu0 %v1059
        %1099 = vmatprep.subr.bf16.mxu0 0
        %1100 = vmatpush1.bf16.msra.mxu0 %v1060
        %1101 = vmatprep.subr.bf16.mxu0 0
        %1102 = vmatpush1.bf16.msra.mxu0 %v1061
        %1103 = vmatprep.subr.bf16.mxu0 0
        %1104 = vmatpush1.bf16.msra.mxu0 %v1062
        %1105 = vmatprep.subr.bf16.mxu0 0
        %1106 = vmatpush1.bf16.msra.mxu0 %v1063
        %1107 = vmatprep.subr.bf16.mxu0 0
        %1108 = vmatpush1.bf16.msra.mxu0 %v1064
        %1109 = vmatprep.subr.bf16.mxu0 0
        %1110 = vmatpush1.bf16.msra.mxu0 %v1065
        %1111 = vmatprep.subr.bf16.mxu0 0
        %1112 = vmatpush1.bf16.msra.mxu0 %v1066
        %1113 = vmatprep.subr.bf16.mxu0 0
        %1114 = vmatpush1.bf16.msra.mxu0 %v1067
        %1115 = vmatprep.subr.bf16.mxu0 0
        %1116 = vmatpush1.bf16.msra.mxu0 %v1068
        %1117 = vmatprep.mubr.bf16.mxu0 %v950
        %1118 = vmatmul.mubr.bf16.gmra.mrb[0].mxu0 %v949
        %v1119 = vpop.f32.mrb[0].mxu0
        %v1120 = vadd.f32 0.0, %v1119
        %v1121 = vpop.f32.mrb[0].mxu0
        %v1122 = vpop.f32.mrb[0].mxu0
        %v1123 = vadd.f32 0.0, %v1122
        %v1124 = vpop.f32.mrb[0].mxu0
        %1125 = vmatprep.mubr.bf16.mxu0 %v952
        %1126 = vmatmul.mubr.bf16.gmra.mrb[0].mxu0 %v951
        %v1127 = vpop.f32.mrb[0].mxu0
        %v1128 = vadd.f32 0.0, %v1127
        %v1129 = vpop.f32.mrb[0].mxu0
        %v1130 = vpop.f32.mrb[0].mxu0
        %v1131 = vadd.f32 0.0, %v1130
        %v1132 = vpop.f32.mrb[0].mxu0
        %1133 = vmatprep.mubr.bf16.mxu0 %v954
        %1134 = vmatmul.mubr.bf16.gmra.mrb[0].mxu0 %v953
        %v1135 = vpop.f32.mrb[0].mxu0
        %v1136 = vadd.f32 0.0, %v1135
        %v1137 = vpop.f32.mrb[0].mxu0
        %v1138 = vpop.f32.mrb[0].mxu0
        %v1139 = vadd.f32 0.0, %v1138
        %v1140 = vpop.f32.mrb[0].mxu0
        %1141 = vmatprep.mubr.bf16.mxu0 %v956
        %1142 = vmatmul.mubr.bf16.gmra.mrb[0].mxu0 %v955
        %v1143 = vpop.f32.mrb[0].mxu0
        %v1144 = vadd.f32 0.0, %v1143
        %v1145 = vpop.f32.mrb[0].mxu0
        %v1146 = vpop.f32.mrb[0].mxu0
        %v1147 = vadd.f32 0.0, %v1146
        %v1148 = vpop.f32.mrb[0].mxu0
        %1149 = vdwg.mxu0
        %v1150 = vadd.f32 %v941, %v1120
        %v1151 = vadd.f32 %v942, %v1123
        %v1152 = vadd.f32 %v943, %v1128
        %v1153 = vadd.f32 %v944, %v1131
        %v1154 = vadd.f32 %v945, %v1136
        %v1155 = vadd.f32 %v946, %v1139
        %v1156 = vadd.f32 %v947, %v1144
        %v1157 = vadd.f32 %v948, %v1147
        %1158 = vst [vmem:[%s429] sm:$0xff] %v1150
        %1159 = vst [vmem:[%s429 + $0x8] sm:$0xff] %v1151
        %1160 = vst [vmem:[%s429 + $0x10] sm:$0xff] %v1152
        %1161 = vst [vmem:[%s429 + $0x18] sm:$0xff] %v1153
        %1162 = vst [vmem:[%s429 + $0x20] sm:$0xff] %v1154
        %1163 = vst [vmem:[%s429 + $0x28] sm:$0xff] %v1155
        %1164 = vst [vmem:[%s429 + $0x30] sm:$0xff] %v1156
        %1165 = vst [vmem:[%s429 + $0x38] sm:$0xff] %v1157
        %s1166 = sand.u32 %s208, 1
        %s1167 = scalar_lea.sflag [#allocation5], %s1166
        %s1168 = sand.u32 %s208, 1
        %s1169 = smul.addr %s1168, 64
        %s1170 = scalar_lea.vmem [#allocation4], %s1169
        // Predicated region
        $region91: #{transformer_block.7} parent=81 // pred_check
          %p1171 = pneg %p218
        $region92: #{transformer_block.7} parent=81 // pred_check_branch
          %1173 = sbr.rel (%p1171) target = $region94
        $region93: #{transformer_block.7} parent=81 // pred_region
          %s1174 = smul.u32 8, %s25
          %s1176 = ssub.s32 1024, 1024
          %1177 = vsyncadd %s1167, %s1176
          %s1178 = smul.addr %s1174, 128
          %s1179 = scalar_lea.hbm %s7, %s1178
          %s1180 = sshll.u32 %s1170, 4
          %s1181 = int_to_ptr.vmem [resolvable:$true] %s1180
          %1186 = dma.vmem_to_hbm [thread:$0]  %s1181, 1024, %s1179, %s1167, 128, 128, 8
        $region94: #{transformer_block.7} parent=81 // pred_fallthru
          _
      $region82: #{transformer_block.7} parent=5 // pred_fallthru
        _
      %p1187 = scmp.le.s32.totalorder 2, %s16
      // Predicated region
      $region95: #{transformer_block.7} parent=5 // pred_check
        %p1188 = pneg %p1187
      $region96: #{transformer_block.7} parent=5 // pred_check_branch
        %1190 = sbr.rel (%p1188) target = $region98
      $region97: #{transformer_block.7} parent=5 // pred_region
        %s1191 = ssub.s32 %s16, 2
        // Predicated region
        $region99: #{transformer_block.7} parent=97 // pred_check
          %p1192 = pneg %p224
        $region100: #{transformer_block.7} parent=97 // pred_check_branch
          %1194 = sbr.rel (%p1192) target = $region102
        $region101: #{transformer_block.7} parent=97 // pred_region
          %s1195 = sand.u32 %s209, 1
          %s1196 = scalar_lea.sflag [#allocation5], %s1195
          %s1197 = sand.u32 %s209, 1
          %s1198 = smul.addr %s1197, 64
          %s1199 = scalar_lea.vmem [#allocation4], %s1198
          %1200 = dma.done %s1196, 1024
        $region102: #{transformer_block.7} parent=97 // pred_fallthru
          _
      $region98: #{transformer_block.7} parent=5 // pred_fallthru
        _
    $region6: #{transformer_block.7} parent=1 // loop_footer
      %s20 = sadd.s32 1, %s16
    $region7: #{transformer_block.7} parent=1 // loop_footer_branch
      %15 = sbr.rel target = $region3
    $region8: #{transformer_block.7} parent=1 // loop_exit
      _
    %1201 = vsyncpa [#allocation5], 1
    %s1202 = scalar_lea.sflag [#allocation5], 1
    %1203 = vsyncpa %s1202, 1

</llo_original>
